<compile_context>
chip_gen: v6e
topology: v6e:2x2x1
jax: 0.10.0
libtpu: 0.0.40
codegen_flags: <defaults>
</compile_context>

<pallas_src>
import math

import jax
import jax.numpy as jnp
from jax.experimental import pallas as pl
from jax.experimental.pallas import tpu as pltpu

BN_EPS = 1e-5
ROW_TILE = 512       # target row tile for the flat MLP (multiple of 8)
EDGE_TILE = 512      # target edge-row tile for the fused edge kernels
NODE_TILE = 512      # target node-row tile for the fused edge2node kernel
VMEM_LIMIT = 32 * 1024 * 1024


def _tile(n, target):
    """Full extent for small n, else a pipeline-friendly multiple-of-8 tile."""
    return n if n <= target else target


def _elu(x):
    # ELU(alpha=1): x if x > 0 else exp(x) - 1
    return jnp.where(x > 0, x, jnp.exp(jnp.minimum(x, 0.0)) - 1.0)


def _affine_from_bn(gamma, beta, dout):
    # BatchNorm1d eval with running_mean=0, running_var=1.
    scale = (gamma / jnp.sqrt(1.0 + BN_EPS)).reshape(1, dout)
    shift = beta.reshape(1, dout)
    return scale, shift


# ---------------------------------------------------------------------------
# Kernel 1: plain fused MLP (Linear -> ELU -> Linear -> ELU -> BN affine),
#           row-tiled over the flattened (B*M) axis.
# ---------------------------------------------------------------------------
def _mlp_kernel(x_ref, w1_ref, b1_ref, w2_ref, b2_ref, sc_ref, sh_ref, o_ref):
    h = _elu(jnp.dot(x_ref[...], w1_ref[...],
                     preferred_element_type=jnp.float32) + b1_ref[...])
    y = _elu(jnp.dot(h, w2_ref[...],
                     preferred_element_type=jnp.float32) + b2_ref[...])
    o_ref[...] = y * sc_ref[...] + sh_ref[...]


def mlp_forward(x, params):
    """x: (B, M, Din) -> (B, M, Dout) through the fused, row-tiled MLP."""
    w1, b1, w2, b2, gamma, beta = params
    B, M, Din = x.shape
    H = w1.shape[1]
    Dout = w2.shape[1]
    R = B * M
    xf = x.reshape(R, Din)
    scale, shift = _affine_from_bn(gamma, beta, Dout)

    tr = _tile(R, ROW_TILE)
    const = lambda i: (0, 0)
    out = pl.pallas_call(
        _mlp_kernel,
        out_shape=jax.ShapeDtypeStruct((R, Dout), jnp.float32),
        grid=(pl.cdiv(R, tr),),
        in_specs=[
            pl.BlockSpec((tr, Din), lambda i: (i, 0)),
            pl.BlockSpec((Din, H), const),
            pl.BlockSpec((1, H), const),
            pl.BlockSpec((H, Dout), const),
            pl.BlockSpec((1, Dout), const),
            pl.BlockSpec((1, Dout), const),
            pl.BlockSpec((1, Dout), const),
        ],
        out_specs=pl.BlockSpec((tr, Dout), lambda i: (i, 0)),
        compiler_params=pltpu.CompilerParams(
            dimension_semantics=("parallel",),
            vmem_limit_bytes=VMEM_LIMIT),
    )(xf, w1, b1.reshape(1, H), w2, b2.reshape(1, Dout), scale, shift)
    return out.reshape(B, M, Dout)


# ---------------------------------------------------------------------------
# Kernel 2: node2edge (senders/receivers gather) + 2-way concat + MLP, fused.
#           cat([S@x, R@x]) @ W1  ==  (S@x) @ W1[:D] + (R@x) @ W1[D:]
# ---------------------------------------------------------------------------
def _node2edge_mlp_kernel(rs_ref, rr_ref, x_ref, w1s_ref, w1r_ref, b1_ref,
                          w2_ref, b2_ref, sc_ref, sh_ref, o_ref):
    xb = x_ref[0]                                              # (N, D)
    s = jnp.dot(rs_ref[...], xb, preferred_element_type=jnp.float32)
    r = jnp.dot(rr_ref[...], xb, preferred_element_type=jnp.float32)
    h = _elu(jnp.dot(s, w1s_ref[...], preferred_element_type=jnp.float32)
             + jnp.dot(r, w1r_ref[...], preferred_element_type=jnp.float32)
             + b1_ref[...])
    y = _elu(jnp.dot(h, w2_ref[...], preferred_element_type=jnp.float32)
             + b2_ref[...])
    o_ref[0] = y * sc_ref[...] + sh_ref[...]


def node2edge_mlp(x, rel_send, rel_rec, params):
    """x: (B, N, D) -> (B, E, Dout); fuses gather + concat + MLP (mlp_e1)."""
    w1, b1, w2, b2, gamma, beta = params
    B, N, D = x.shape
    E = rel_send.shape[0]
    H = w1.shape[1]
    Dout = w2.shape[1]
    # node2edge concat order is [senders, receivers] -> split W1 accordingly
    w1s, w1r = w1[:D], w1[D:]
    scale, shift = _affine_from_bn(gamma, beta, Dout)

    te = _tile(E, EDGE_TILE)
    const = lambda b, e: (0, 0)
    return pl.pallas_call(
        _node2edge_mlp_kernel,
        out_shape=jax.ShapeDtypeStruct((B, E, Dout), jnp.float32),
        grid=(B, pl.cdiv(E, te)),
        in_specs=[
            pl.BlockSpec((te, N), lambda b, e: (e, 0)),
            pl.BlockSpec((te, N), lambda b, e: (e, 0)),
            pl.BlockSpec((1, N, D), lambda b, e: (b, 0, 0)),
            pl.BlockSpec((D, H), const),
            pl.BlockSpec((D, H), const),
            pl.BlockSpec((1, H), const),
            pl.BlockSpec((H, Dout), const),
            pl.BlockSpec((1, Dout), const),
            pl.BlockSpec((1, Dout), const),
            pl.BlockSpec((1, Dout), const),
        ],
        out_specs=pl.BlockSpec((1, te, Dout), lambda b, e: (b, e, 0)),
        compiler_params=pltpu.CompilerParams(
            dimension_semantics=("parallel", "parallel"),
            vmem_limit_bytes=VMEM_LIMIT),
    )(rel_send, rel_rec, x, w1s, w1r, b1.reshape(1, H), w2,
      b2.reshape(1, Dout), scale, shift)


# ---------------------------------------------------------------------------
# Kernel 3: edge2node aggregation (rel_rec.T @ x / n_atoms) + MLP, fused.
# ---------------------------------------------------------------------------
def _edge2node_mlp_kernel(rt_ref, x_ref, w1_ref, b1_ref, w2_ref, b2_ref,
                          sc_ref, sh_ref, o_ref):
    agg = jnp.dot(rt_ref[...], x_ref[0],
                  preferred_element_type=jnp.float32)          # (TN, D)
    h = _elu(jnp.dot(agg, w1_ref[...], preferred_element_type=jnp.float32)
             + b1_ref[...])
    y = _elu(jnp.dot(h, w2_ref[...], preferred_element_type=jnp.float32)
             + b2_ref[...])
    o_ref[0] = y * sc_ref[...] + sh_ref[...]


def edge2node_mlp(x, rel_rec, n_atoms, params):
    """x: (B, E, D) -> (B, N, Dout); fuses aggregation + MLP (mlp_n1)."""
    w1, b1, w2, b2, gamma, beta = params
    B, E, D = x.shape
    N = rel_rec.shape[1]
    H = w1.shape[1]
    Dout = w2.shape[1]
    rt = rel_rec.T / float(n_atoms)                            # (N, E), 1/N folded
    scale, shift = _affine_from_bn(gamma, beta, Dout)

    tn = _tile(N, NODE_TILE)
    const = lambda b, n: (0, 0)
    return pl.pallas_call(
        _edge2node_mlp_kernel,
        out_shape=jax.ShapeDtypeStruct((B, N, Dout), jnp.float32),
        grid=(B, pl.cdiv(N, tn)),
        in_specs=[
            pl.BlockSpec((tn, E), lambda b, n: (n, 0)),
            pl.BlockSpec((1, E, D), lambda b, n: (b, 0, 0)),
            pl.BlockSpec((D, H), const),
            pl.BlockSpec((1, H), const),
            pl.BlockSpec((H, Dout), const),
            pl.BlockSpec((1, Dout), const),
            pl.BlockSpec((1, Dout), const),
            pl.BlockSpec((1, Dout), const),
        ],
        out_specs=pl.BlockSpec((1, tn, Dout), lambda b, n: (b, n, 0)),
        compiler_params=pltpu.CompilerParams(
            dimension_semantics=("parallel", "parallel"),
            vmem_limit_bytes=VMEM_LIMIT),
    )(rt, x, w1, b1.reshape(1, H), w2, b2.reshape(1, Dout), scale, shift)


# ---------------------------------------------------------------------------
# Kernel 4: node2edge + skip concat + MLP, fused (3-way W1 split).
# ---------------------------------------------------------------------------
def _node2edge_skip_mlp_kernel(rs_ref, rr_ref, x_ref, skip_ref,
                               w1s_ref, w1r_ref, w1k_ref, b1_ref,
                               w2_ref, b2_ref, sc_ref, sh_ref, o_ref):
    xb = x_ref[0]                                              # (N, Dn)
    s = jnp.dot(rs_ref[...], xb, preferred_element_type=jnp.float32)
    r = jnp.dot(rr_ref[...], xb, preferred_element_type=jnp.float32)
    h = _elu(jnp.dot(s, w1s_ref[...], preferred_element_type=jnp.float32)
             + jnp.dot(r, w1r_ref[...], preferred_element_type=jnp.float32)
             + jnp.dot(skip_ref[0], w1k_ref[...],
                       preferred_element_type=jnp.float32)
             + b1_ref[...])
    y = _elu(jnp.dot(h, w2_ref[...], preferred_element_type=jnp.float32)
             + b2_ref[...])
    o_ref[0] = y * sc_ref[...] + sh_ref[...]


def node2edge_skip_mlp(x, x_skip, rel_send, rel_rec, params):
    """x: (B, N, Dn), x_skip: (B, E, Dk) -> (B, E, Dout)  (mlp_e2)."""
    w1, b1, w2, b2, gamma, beta = params
    B, N, Dn = x.shape
    E, Dk = x_skip.shape[1], x_skip.shape[2]
    H = w1.shape[1]
    Dout = w2.shape[1]
    # concat order: [senders(Dn), receivers(Dn), skip(Dk)]  (module needs
    # n_edge == n_node for its declared 3*n_node input width)
    w1s, w1r, w1k = w1[:Dn], w1[Dn:2 * Dn], w1[2 * Dn:]
    scale, shift = _affine_from_bn(gamma, beta, Dout)

    te = _tile(E, EDGE_TILE)
    const = lambda b, e: (0, 0)
    return pl.pallas_call(
        _node2edge_skip_mlp_kernel,
        out_shape=jax.ShapeDtypeStruct((B, E, Dout), jnp.float32),
        grid=(B, pl.cdiv(E, te)),
        in_specs=[
            pl.BlockSpec((te, N), lambda b, e: (e, 0)),
            pl.BlockSpec((te, N), lambda b, e: (e, 0)),
            pl.BlockSpec((1, N, Dn), lambda b, e: (b, 0, 0)),
            pl.BlockSpec((1, te, Dk), lambda b, e: (b, e, 0)),
            pl.BlockSpec((Dn, H), const),
            pl.BlockSpec((Dn, H), const),
            pl.BlockSpec((Dk, H), const),
            pl.BlockSpec((1, H), const),
            pl.BlockSpec((H, Dout), const),
            pl.BlockSpec((1, Dout), const),
            pl.BlockSpec((1, Dout), const),
            pl.BlockSpec((1, Dout), const),
        ],
        out_specs=pl.BlockSpec((1, te, Dout), lambda b, e: (b, e, 0)),
        compiler_params=pltpu.CompilerParams(
            dimension_semantics=("parallel", "parallel"),
            vmem_limit_bytes=VMEM_LIMIT),
    )(rel_send, rel_rec, x, x_skip, w1s, w1r, w1k, b1.reshape(1, H), w2,
      b2.reshape(1, Dout), scale, shift)


# ---------------------------------------------------------------------------
# Parameter init (matches MLP.init_weights: xavier_normal weights, bias=0.1,
# BN gamma=1, beta=0).  PyTorch Linear weight (out, in) stored transposed.
# ---------------------------------------------------------------------------
def init_mlp_params(key, n_in, n_hid, n_out):
    k1, k2 = jax.random.split(key)
    std1 = math.sqrt(2.0 / (n_in + n_hid))
    std2 = math.sqrt(2.0 / (n_hid + n_out))
    w1 = std1 * jax.random.normal(k1, (n_in, n_hid), jnp.float32)
    b1 = jnp.full((n_hid,), 0.1, jnp.float32)
    w2 = std2 * jax.random.normal(k2, (n_hid, n_out), jnp.float32)
    b2 = jnp.full((n_out,), 0.1, jnp.float32)
    gamma = jnp.ones((n_out,), jnp.float32)
    beta = jnp.zeros((n_out,), jnp.float32)
    return (w1, b1, w2, b2, gamma, beta)


def init_temp_mp_params(key, n_in, n_emb, n_edge, n_node):
    k = jax.random.split(key, 4)
    return (
        init_mlp_params(k[0], n_in, n_emb, n_emb),          # mlp_emb
        init_mlp_params(k[1], 2 * n_emb, n_edge, n_edge),   # mlp_e1
        init_mlp_params(k[2], n_edge, n_node, n_node),      # mlp_n1
        init_mlp_params(k[3], 3 * n_node, n_edge, n_edge),  # mlp_e2
    )


# ---------------------------------------------------------------------------
# TempMP forward (4 fused pallas_calls, no HBM concat/gather intermediates)
# ---------------------------------------------------------------------------
def temp_mp_forward(params, inputs, rel_rec, rel_send):
    p_emb, p_e1, p_n1, p_e2 = params
    n_atoms = inputs.shape[1]

    x = mlp_forward(inputs, p_emb)                               # (B, N, n_emb)
    x = node2edge_mlp(x, rel_send, rel_rec, p_e1)                # (B, E, n_edge)
    x_skip = x
    x = edge2node_mlp(x, rel_rec, n_atoms, p_n1)                 # (B, N, n_node)
    x = node2edge_skip_mlp(x, x_skip, rel_send, rel_rec, p_e2)   # (B, E, n_edge)
    return x


# ---------------------------------------------------------------------------
# Pure-JAX reference (same eval-mode semantics) for a correctness check
# ---------------------------------------------------------------------------
def _mlp_ref(x, params):
    w1, b1, w2, b2, gamma, beta = params
    h = jax.nn.elu(x @ w1 + b1)
    y = jax.nn.elu(h @ w2 + b2)
    return y * (gamma / jnp.sqrt(1.0 + BN_EPS)) + beta


def _ref_forward(params, inputs, rel_rec, rel_send):
    p_emb, p_e1, p_n1, p_e2 = params
    n_atoms = inputs.shape[1]
    x = _mlp_ref(inputs, p_emb)
    x = jnp.concatenate(
        [jnp.einsum('en,bnd->bed', rel_send, x),
         jnp.einsum('en,bnd->bed', rel_rec, x)], axis=2)
    x = _mlp_ref(x, p_e1)
    x_skip = x
    x = jnp.einsum('en,bed->bnd', rel_rec, x) / float(n_atoms)
    x = _mlp_ref(x, p_n1)
    x = jnp.concatenate(
        [jnp.einsum('en,bnd->bed', rel_send, x),
         jnp.einsum('en,bnd->bed', rel_rec, x)], axis=2)
    x = jnp.concatenate([x, x_skip], axis=2)
    return _mlp_ref(x, p_e2)


if __name__ == "__main__":
    # Small shapes consistent with the forward pass.
    B, N = 2, 5                  # batch, atoms
    n_in, n_emb = 8, 16
    n_edge = n_node = 32         # mlp_e2 input 3*n_node requires n_edge == n_node
    E = N * (N - 1)              # fully-connected graph, no self-loops

    key = jax.random.PRNGKey(0)
    k_params, k_inputs = jax.random.split(key)

    params = init_temp_mp_params(k_params, n_in, n_emb, n_edge, n_node)
    inputs = jax.random.normal(k_inputs, (B, N, n_in), jnp.float32)

    recv_idx = [i for i in range(N) for j in range(N) if i != j]
    send_idx = [j for i in range(N) for j in range(N) if i != j]
    rel_rec = jax.nn.one_hot(jnp.array(recv_idx), N, dtype=jnp.float32)   # (E, N)
    rel_send = jax.nn.one_hot(jnp.array(send_idx), N, dtype=jnp.float32)  # (E, N)

    fwd = jax.jit(temp_mp_forward)
    out = jax.block_until_ready(fwd(params, inputs, rel_rec, rel_send))
    assert out.shape == (B, E, n_edge), out.shape

    ref = _ref_forward(params, inputs, rel_rec, rel_send)
    max_err = float(jnp.max(jnp.abs(out - ref)))
    assert jnp.allclose(out, ref, rtol=1e-4, atol=1e-4), max_err

    print("KERNEL_OK")
</pallas_src>

<mosaic_0001>
module attributes {stable_mosaic.version = 11 : i64} {
  func.func @_mlp_kernel(%arg0: i32, %arg1: memref<10x8xf32, #tpu.memory_space<vmem>>, %arg2: memref<8x16xf32, #tpu.memory_space<vmem>>, %arg3: memref<1x16xf32, #tpu.memory_space<vmem>>, %arg4: memref<16x16xf32, #tpu.memory_space<vmem>>, %arg5: memref<1x16xf32, #tpu.memory_space<vmem>>, %arg6: memref<1x16xf32, #tpu.memory_space<vmem>>, %arg7: memref<1x16xf32, #tpu.memory_space<vmem>>, %arg8: memref<10x16xf32, #tpu.memory_space<vmem>>) attributes {dimension_semantics = [#tpu.dimension_semantics<parallel>], iteration_bounds = array<i64: 1>, scalar_prefetch = 0 : i64, scratch_operands = 0 : i64, tpu.core_type = #tpu.core_type<tc>, window_params = [{transform_indices = @transform_0, window_bounds = array<i64: 10, 8>}, {pipeline_mode = #tpu.pipeline_mode<synchronous>, transform_indices = @transform_1, window_bounds = array<i64: 8, 16>}, {pipeline_mode = #tpu.pipeline_mode<synchronous>, transform_indices = @transform_2, window_bounds = array<i64: 1, 16>}, {pipeline_mode = #tpu.pipeline_mode<synchronous>, transform_indices = @transform_3, window_bounds = array<i64: 16, 16>}, {pipeline_mode = #tpu.pipeline_mode<synchronous>, transform_indices = @transform_4, window_bounds = array<i64: 1, 16>}, {pipeline_mode = #tpu.pipeline_mode<synchronous>, transform_indices = @transform_5, window_bounds = array<i64: 1, 16>}, {pipeline_mode = #tpu.pipeline_mode<synchronous>, transform_indices = @transform_6, window_bounds = array<i64: 1, 16>}, {transform_indices = @transform_7, window_bounds = array<i64: 10, 16>}]} {
    %c0 = arith.constant 0 : index
    %c0_0 = arith.constant 0 : index
    %0 = vector.load %arg1[%c0, %c0_0] : memref<10x8xf32, #tpu.memory_space<vmem>>, vector<10x8xf32>
    %c0_1 = arith.constant 0 : index
    %c0_2 = arith.constant 0 : index
    %1 = vector.load %arg2[%c0_1, %c0_2] : memref<8x16xf32, #tpu.memory_space<vmem>>, vector<8x16xf32>
    %cst = arith.constant dense<0.000000e+00> : vector<10x16xf32>
    %2 = tpu.matmul %0, %1, %cst {dimension_numbers = #tpu.dot_dimension_numbers<[1], [0], [0], [1], [0, 0, 1, 1], [], []>} : vector<10x8xf32>, vector<8x16xf32>, vector<10x16xf32> -> vector<10x16xf32>
    %c0_3 = arith.constant 0 : index
    %c0_4 = arith.constant 0 : index
    %3 = vector.load %arg3[%c0_3, %c0_4] : memref<1x16xf32, #tpu.memory_space<vmem>>, vector<1x16xf32>
    %4 = vector.broadcast %3 : vector<1x16xf32> to vector<10x16xf32>
    %5 = arith.addf %2, %4 : vector<10x16xf32>
    %cst_5 = arith.constant 0.000000e+00 : f32
    %6 = vector.broadcast %cst_5 : f32 to vector<10x16xf32>
    %7 = arith.cmpf ogt, %5, %6 : vector<10x16xf32>
    %cst_6 = arith.constant 0.000000e+00 : f32
    %8 = vector.broadcast %cst_6 : f32 to vector<10x16xf32>
    %9 = arith.minimumf %5, %8 : vector<10x16xf32>
    %10 = math.exp %9 : vector<10x16xf32>
    %cst_7 = arith.constant 1.000000e+00 : f32
    %11 = vector.broadcast %cst_7 : f32 to vector<10x16xf32>
    %12 = arith.subf %10, %11 : vector<10x16xf32>
    %13 = arith.select %7, %5, %12 : vector<10x16xi1>, vector<10x16xf32>
    %c0_8 = arith.constant 0 : index
    %c0_9 = arith.constant 0 : index
    %14 = vector.load %arg4[%c0_8, %c0_9] : memref<16x16xf32, #tpu.memory_space<vmem>>, vector<16x16xf32>
    %cst_10 = arith.constant dense<0.000000e+00> : vector<10x16xf32>
    %15 = tpu.matmul %13, %14, %cst_10 {dimension_numbers = #tpu.dot_dimension_numbers<[1], [0], [0], [1], [0, 0, 1, 1], [], []>} : vector<10x16xf32>, vector<16x16xf32>, vector<10x16xf32> -> vector<10x16xf32>
    %c0_11 = arith.constant 0 : index
    %c0_12 = arith.constant 0 : index
    %16 = vector.load %arg5[%c0_11, %c0_12] : memref<1x16xf32, #tpu.memory_space<vmem>>, vector<1x16xf32>
    %17 = vector.broadcast %16 : vector<1x16xf32> to vector<10x16xf32>
    %18 = arith.addf %15, %17 : vector<10x16xf32>
    %cst_13 = arith.constant 0.000000e+00 : f32
    %19 = vector.broadcast %cst_13 : f32 to vector<10x16xf32>
    %20 = arith.cmpf ogt, %18, %19 : vector<10x16xf32>
    %cst_14 = arith.constant 0.000000e+00 : f32
    %21 = vector.broadcast %cst_14 : f32 to vector<10x16xf32>
    %22 = arith.minimumf %18, %21 : vector<10x16xf32>
    %23 = math.exp %22 : vector<10x16xf32>
    %cst_15 = arith.constant 1.000000e+00 : f32
    %24 = vector.broadcast %cst_15 : f32 to vector<10x16xf32>
    %25 = arith.subf %23, %24 : vector<10x16xf32>
    %26 = arith.select %20, %18, %25 : vector<10x16xi1>, vector<10x16xf32>
    %c0_16 = arith.constant 0 : index
    %c0_17 = arith.constant 0 : index
    %27 = vector.load %arg6[%c0_16, %c0_17] : memref<1x16xf32, #tpu.memory_space<vmem>>, vector<1x16xf32>
    %28 = vector.broadcast %27 : vector<1x16xf32> to vector<10x16xf32>
    %29 = arith.mulf %26, %28 : vector<10x16xf32>
    %c0_18 = arith.constant 0 : index
    %c0_19 = arith.constant 0 : index
    %30 = vector.load %arg7[%c0_18, %c0_19] : memref<1x16xf32, #tpu.memory_space<vmem>>, vector<1x16xf32>
    %31 = vector.broadcast %30 : vector<1x16xf32> to vector<10x16xf32>
    %32 = arith.addf %29, %31 : vector<10x16xf32>
    %c0_20 = arith.constant 0 : index
    %c0_21 = arith.constant 0 : index
    %33 = vector.load %arg8[%c0_20, %c0_21] : memref<10x16xf32, #tpu.memory_space<vmem>>, vector<10x16xf32>
    tpu.vector_store %arg8[%c0_20, %c0_21], %32 {strides = array<i32>} : memref<10x16xf32, #tpu.memory_space<vmem>>, vector<10x16xf32>,
    return
  }
  func.func @transform_0(%arg0: i32) -> (i32, i32) {
    %c0_i32 = arith.constant 0 : i32
    %c0_i32_0 = arith.constant 0 : i32
    return %arg0, %c0_i32 : i32, i32
  }
  func.func @transform_1(%arg0: i32) -> (i32, i32) {
    %c0_i32 = arith.constant 0 : i32
    %c0_i32_0 = arith.constant 0 : i32
    %c0_i32_1 = arith.constant 0 : i32
    return %c0_i32, %c0_i32_0 : i32, i32
  }
  func.func @transform_2(%arg0: i32) -> (i32, i32) {
    %c0_i32 = arith.constant 0 : i32
    %c0_i32_0 = arith.constant 0 : i32
    %c0_i32_1 = arith.constant 0 : i32
    return %c0_i32, %c0_i32_0 : i32, i32
  }
  func.func @transform_3(%arg0: i32) -> (i32, i32) {
    %c0_i32 = arith.constant 0 : i32
    %c0_i32_0 = arith.constant 0 : i32
    %c0_i32_1 = arith.constant 0 : i32
    return %c0_i32, %c0_i32_0 : i32, i32
  }
  func.func @transform_4(%arg0: i32) -> (i32, i32) {
    %c0_i32 = arith.constant 0 : i32
    %c0_i32_0 = arith.constant 0 : i32
    %c0_i32_1 = arith.constant 0 : i32
    return %c0_i32, %c0_i32_0 : i32, i32
  }
  func.func @transform_5(%arg0: i32) -> (i32, i32) {
    %c0_i32 = arith.constant 0 : i32
    %c0_i32_0 = arith.constant 0 : i32
    %c0_i32_1 = arith.constant 0 : i32
    return %c0_i32, %c0_i32_0 : i32, i32
  }
  func.func @transform_6(%arg0: i32) -> (i32, i32) {
    %c0_i32 = arith.constant 0 : i32
    %c0_i32_0 = arith.constant 0 : i32
    %c0_i32_1 = arith.constant 0 : i32
    return %c0_i32, %c0_i32_0 : i32, i32
  }
  func.func @transform_7(%arg0: i32) -> (i32, i32) {
    %c0_i32 = arith.constant 0 : i32
    %c0_i32_0 = arith.constant 0 : i32
    return %arg0, %c0_i32 : i32, i32
  }
}

module attributes {stable_mosaic.version = 11 : i64} {
  func.func @_edge2node_mlp_kernel(%arg0: i32, %arg1: i32, %arg2: memref<5x20xf32, #tpu.memory_space<vmem>>, %arg3: memref<1x20x32xf32, #tpu.memory_space<vmem>>, %arg4: memref<32x32xf32, #tpu.memory_space<vmem>>, %arg5: memref<1x32xf32, #tpu.memory_space<vmem>>, %arg6: memref<32x32xf32, #tpu.memory_space<vmem>>, %arg7: memref<1x32xf32, #tpu.memory_space<vmem>>, %arg8: memref<1x32xf32, #tpu.memory_space<vmem>>, %arg9: memref<1x32xf32, #tpu.memory_space<vmem>>, %arg10: memref<1x5x32xf32, #tpu.memory_space<vmem>>) attributes {dimension_semantics = [#tpu.dimension_semantics<parallel>, #tpu.dimension_semantics<parallel>], iteration_bounds = array<i64: 2, 1>, scalar_prefetch = 0 : i64, scratch_operands = 0 : i64, tpu.core_type = #tpu.core_type<tc>, window_params = [{transform_indices = @transform_0, window_bounds = array<i64: 5, 20>}, {transform_indices = @transform_1, window_bounds = array<i64: 1, 20, 32>}, {pipeline_mode = #tpu.pipeline_mode<synchronous>, transform_indices = @transform_2, window_bounds = array<i64: 32, 32>}, {pipeline_mode = #tpu.pipeline_mode<synchronous>, transform_indices = @transform_3, window_bounds = array<i64: 1, 32>}, {pipeline_mode = #tpu.pipeline_mode<synchronous>, transform_indices = @transform_4, window_bounds = array<i64: 32, 32>}, {pipeline_mode = #tpu.pipeline_mode<synchronous>, transform_indices = @transform_5, window_bounds = array<i64: 1, 32>}, {pipeline_mode = #tpu.pipeline_mode<synchronous>, transform_indices = @transform_6, window_bounds = array<i64: 1, 32>}, {pipeline_mode = #tpu.pipeline_mode<synchronous>, transform_indices = @transform_7, window_bounds = array<i64: 1, 32>}, {transform_indices = @transform_8, window_bounds = array<i64: 1, 5, 32>}]} {
    %c0 = arith.constant 0 : index
    %c0_0 = arith.constant 0 : index
    %0 = vector.load %arg2[%c0, %c0_0] : memref<5x20xf32, #tpu.memory_space<vmem>>, vector<5x20xf32>
    %c0_1 = arith.constant 0 : index
    %c0_2 = arith.constant 0 : index
    %c0_3 = arith.constant 0 : index
    %1 = vector.load %arg3[%c0_1, %c0_2, %c0_3] : memref<1x20x32xf32, #tpu.memory_space<vmem>>, vector<1x20x32xf32>
    %2 = vector.shape_cast %1 : vector<1x20x32xf32> to vector<20x32xf32>
    %cst = arith.constant dense<0.000000e+00> : vector<5x32xf32>
    %3 = tpu.matmul %0, %2, %cst {dimension_numbers = #tpu.dot_dimension_numbers<[1], [0], [0], [1], [0, 0, 1, 1], [], []>} : vector<5x20xf32>, vector<20x32xf32>, vector<5x32xf32> -> vector<5x32xf32>
    %c0_4 = arith.constant 0 : index
    %c0_5 = arith.constant 0 : index
    %4 = vector.load %arg4[%c0_4, %c0_5] : memref<32x32xf32, #tpu.memory_space<vmem>>, vector<32x32xf32>
    %cst_6 = arith.constant dense<0.000000e+00> : vector<5x32xf32>
    %5 = tpu.matmul %3, %4, %cst_6 {dimension_numbers = #tpu.dot_dimension_numbers<[1], [0], [0], [1], [0, 0, 1, 1], [], []>} : vector<5x32xf32>, vector<32x32xf32>, vector<5x32xf32> -> vector<5x32xf32>
    %c0_7 = arith.constant 0 : index
    %c0_8 = arith.constant 0 : index
    %6 = vector.load %arg5[%c0_7, %c0_8] : memref<1x32xf32, #tpu.memory_space<vmem>>, vector<1x32xf32>
    %7 = vector.broadcast %6 : vector<1x32xf32> to vector<5x32xf32>
    %8 = arith.addf %5, %7 : vector<5x32xf32>
    %cst_9 = arith.constant 0.000000e+00 : f32
    %9 = vector.broadcast %cst_9 : f32 to vector<5x32xf32>
    %10 = arith.cmpf ogt, %8, %9 : vector<5x32xf32>
    %cst_10 = arith.constant 0.000000e+00 : f32
    %11 = vector.broadcast %cst_10 : f32 to vector<5x32xf32>
    %12 = arith.minimumf %8, %11 : vector<5x32xf32>
    %13 = math.exp %12 : vector<5x32xf32>
    %cst_11 = arith.constant 1.000000e+00 : f32
    %14 = vector.broadcast %cst_11 : f32 to vector<5x32xf32>
    %15 = arith.subf %13, %14 : vector<5x32xf32>
    %16 = arith.select %10, %8, %15 : vector<5x32xi1>, vector<5x32xf32>
    %c0_12 = arith.constant 0 : index
    %c0_13 = arith.constant 0 : index
    %17 = vector.load %arg6[%c0_12, %c0_13] : memref<32x32xf32, #tpu.memory_space<vmem>>, vector<32x32xf32>
    %cst_14 = arith.constant dense<0.000000e+00> : vector<5x32xf32>
    %18 = tpu.matmul %16, %17, %cst_14 {dimension_numbers = #tpu.dot_dimension_numbers<[1], [0], [0], [1], [0, 0, 1, 1], [], []>} : vector<5x32xf32>, vector<32x32xf32>, vector<5x32xf32> -> vector<5x32xf32>
    %c0_15 = arith.constant 0 : index
    %c0_16 = arith.constant 0 : index
    %19 = vector.load %arg7[%c0_15, %c0_16] : memref<1x32xf32, #tpu.memory_space<vmem>>, vector<1x32xf32>
    %20 = vector.broadcast %19 : vector<1x32xf32> to vector<5x32xf32>
    %21 = arith.addf %18, %20 : vector<5x32xf32>
    %cst_17 = arith.constant 0.000000e+00 : f32
    %22 = vector.broadcast %cst_17 : f32 to vector<5x32xf32>
    %23 = arith.cmpf ogt, %21, %22 : vector<5x32xf32>
    %cst_18 = arith.constant 0.000000e+00 : f32
    %24 = vector.broadcast %cst_18 : f32 to vector<5x32xf32>
    %25 = arith.minimumf %21, %24 : vector<5x32xf32>
    %26 = math.exp %25 : vector<5x32xf32>
    %cst_19 = arith.constant 1.000000e+00 : f32
    %27 = vector.broadcast %cst_19 : f32 to vector<5x32xf32>
    %28 = arith.subf %26, %27 : vector<5x32xf32>
    %29 = arith.select %23, %21, %28 : vector<5x32xi1>, vector<5x32xf32>
    %c0_20 = arith.constant 0 : index
    %c0_21 = arith.constant 0 : index
    %30 = vector.load %arg8[%c0_20, %c0_21] : memref<1x32xf32, #tpu.memory_space<vmem>>, vector<1x32xf32>
    %31 = vector.broadcast %30 : vector<1x32xf32> to vector<5x32xf32>
    %32 = arith.mulf %29, %31 : vector<5x32xf32>
    %c0_22 = arith.constant 0 : index
    %c0_23 = arith.constant 0 : index
    %33 = vector.load %arg9[%c0_22, %c0_23] : memref<1x32xf32, #tpu.memory_space<vmem>>, vector<1x32xf32>
    %34 = vector.broadcast %33 : vector<1x32xf32> to vector<5x32xf32>
    %35 = arith.addf %32, %34 : vector<5x32xf32>
    %c0_24 = arith.constant 0 : index
    %c0_25 = arith.constant 0 : index
    %c0_26 = arith.constant 0 : index
    %36 = vector.load %arg10[%c0_24, %c0_25, %c0_26] : memref<1x5x32xf32, #tpu.memory_space<vmem>>, vector<1x5x32xf32>
    %37 = vector.shape_cast %36 : vector<1x5x32xf32> to vector<5x32xf32>
    %38 = vector.shape_cast %35 : vector<5x32xf32> to vector<1x5x32xf32>
    tpu.vector_store %arg10[%c0_24, %c0_25, %c0_26], %38 {strides = array<i32>} : memref<1x5x32xf32, #tpu.memory_space<vmem>>, vector<1x5x32xf32>,
    return
  }
  func.func @transform_0(%arg0: i32, %arg1: i32) -> (i32, i32) {
    %c0_i32 = arith.constant 0 : i32
    %c0_i32_0 = arith.constant 0 : i32
    return %arg1, %c0_i32 : i32, i32
  }
  func.func @transform_1(%arg0: i32, %arg1: i32) -> (i32, i32, i32) {
    %c0_i32 = arith.constant 0 : i32
    %c0_i32_0 = arith.constant 0 : i32
    %c0_i32_1 = arith.constant 0 : i32
    return %arg0, %c0_i32, %c0_i32_0 : i32, i32, i32
  }
  func.func @transform_2(%arg0: i32, %arg1: i32) -> (i32, i32) {
    %c0_i32 = arith.constant 0 : i32
    %c0_i32_0 = arith.constant 0 : i32
    %c0_i32_1 = arith.constant 0 : i32
    return %c0_i32, %c0_i32_0 : i32, i32
  }
  func.func @transform_3(%arg0: i32, %arg1: i32) -> (i32, i32) {
    %c0_i32 = arith.constant 0 : i32
    %c0_i32_0 = arith.constant 0 : i32
    %c0_i32_1 = arith.constant 0 : i32
    return %c0_i32, %c0_i32_0 : i32, i32
  }
  func.func @transform_4(%arg0: i32, %arg1: i32) -> (i32, i32) {
    %c0_i32 = arith.constant 0 : i32
    %c0_i32_0 = arith.constant 0 : i32
    %c0_i32_1 = arith.constant 0 : i32
    return %c0_i32, %c0_i32_0 : i32, i32
  }
  func.func @transform_5(%arg0: i32, %arg1: i32) -> (i32, i32) {
    %c0_i32 = arith.constant 0 : i32
    %c0_i32_0 = arith.constant 0 : i32
    %c0_i32_1 = arith.constant 0 : i32
    return %c0_i32, %c0_i32_0 : i32, i32
  }
  func.func @transform_6(%arg0: i32, %arg1: i32) -> (i32, i32) {
    %c0_i32 = arith.constant 0 : i32
    %c0_i32_0 = arith.constant 0 : i32
    %c0_i32_1 = arith.constant 0 : i32
    return %c0_i32, %c0_i32_0 : i32, i32
  }
  func.func @transform_7(%arg0: i32, %arg1: i32) -> (i32, i32) {
    %c0_i32 = arith.constant 0 : i32
    %c0_i32_0 = arith.constant 0 : i32
    %c0_i32_1 = arith.constant 0 : i32
    return %c0_i32, %c0_i32_0 : i32, i32
  }
  func.func @transform_8(%arg0: i32, %arg1: i32) -> (i32, i32, i32) {
    %c0_i32 = arith.constant 0 : i32
    %c0_i32_0 = arith.constant 0 : i32
    return %arg0, %arg1, %c0_i32 : i32, i32, i32
  }
}

module attributes {stable_mosaic.version = 11 : i64} {
  func.func @_node2edge_mlp_kernel(%arg0: i32, %arg1: i32, %arg2: memref<20x5xf32, #tpu.memory_space<vmem>>, %arg3: memref<20x5xf32, #tpu.memory_space<vmem>>, %arg4: memref<1x5x16xf32, #tpu.memory_space<vmem>>, %arg5: memref<16x32xf32, #tpu.memory_space<vmem>>, %arg6: memref<16x32xf32, #tpu.memory_space<vmem>>, %arg7: memref<1x32xf32, #tpu.memory_space<vmem>>, %arg8: memref<32x32xf32, #tpu.memory_space<vmem>>, %arg9: memref<1x32xf32, #tpu.memory_space<vmem>>, %arg10: memref<1x32xf32, #tpu.memory_space<vmem>>, %arg11: memref<1x32xf32, #tpu.memory_space<vmem>>, %arg12: memref<1x20x32xf32, #tpu.memory_space<vmem>>) attributes {dimension_semantics = [#tpu.dimension_semantics<parallel>, #tpu.dimension_semantics<parallel>], iteration_bounds = array<i64: 2, 1>, scalar_prefetch = 0 : i64, scratch_operands = 0 : i64, tpu.core_type = #tpu.core_type<tc>, window_params = [{transform_indices = @transform_0, window_bounds = array<i64: 20, 5>}, {transform_indices = @transform_1, window_bounds = array<i64: 20, 5>}, {transform_indices = @transform_2, window_bounds = array<i64: 1, 5, 16>}, {pipeline_mode = #tpu.pipeline_mode<synchronous>, transform_indices = @transform_3, window_bounds = array<i64: 16, 32>}, {pipeline_mode = #tpu.pipeline_mode<synchronous>, transform_indices = @transform_4, window_bounds = array<i64: 16, 32>}, {pipeline_mode = #tpu.pipeline_mode<synchronous>, transform_indices = @transform_5, window_bounds = array<i64: 1, 32>}, {pipeline_mode = #tpu.pipeline_mode<synchronous>, transform_indices = @transform_6, window_bounds = array<i64: 32, 32>}, {pipeline_mode = #tpu.pipeline_mode<synchronous>, transform_indices = @transform_7, window_bounds = array<i64: 1, 32>}, {pipeline_mode = #tpu.pipeline_mode<synchronous>, transform_indices = @transform_8, window_bounds = array<i64: 1, 32>}, {pipeline_mode = #tpu.pipeline_mode<synchronous>, transform_indices = @transform_9, window_bounds = array<i64: 1, 32>}, {transform_indices = @transform_10, window_bounds = array<i64: 1, 20, 32>}]} {
    %c0 = arith.constant 0 : index
    %c0_0 = arith.constant 0 : index
    %c0_1 = arith.constant 0 : index
    %0 = vector.load %arg4[%c0, %c0_0, %c0_1] : memref<1x5x16xf32, #tpu.memory_space<vmem>>, vector<1x5x16xf32>
    %1 = vector.shape_cast %0 : vector<1x5x16xf32> to vector<5x16xf32>
    %c0_2 = arith.constant 0 : index
    %c0_3 = arith.constant 0 : index
    %2 = vector.load %arg2[%c0_2, %c0_3] : memref<20x5xf32, #tpu.memory_space<vmem>>, vector<20x5xf32>
    %cst = arith.constant dense<0.000000e+00> : vector<20x16xf32>
    %3 = tpu.matmul %2, %1, %cst {dimension_numbers = #tpu.dot_dimension_numbers<[1], [0], [0], [1], [0, 0, 1, 1], [], []>} : vector<20x5xf32>, vector<5x16xf32>, vector<20x16xf32> -> vector<20x16xf32>
    %c0_4 = arith.constant 0 : index
    %c0_5 = arith.constant 0 : index
    %4 = vector.load %arg3[%c0_4, %c0_5] : memref<20x5xf32, #tpu.memory_space<vmem>>, vector<20x5xf32>
    %cst_6 = arith.constant dense<0.000000e+00> : vector<20x16xf32>
    %5 = tpu.matmul %4, %1, %cst_6 {dimension_numbers = #tpu.dot_dimension_numbers<[1], [0], [0], [1], [0, 0, 1, 1], [], []>} : vector<20x5xf32>, vector<5x16xf32>, vector<20x16xf32> -> vector<20x16xf32>
    %c0_7 = arith.constant 0 : index
    %c0_8 = arith.constant 0 : index
    %6 = vector.load %arg5[%c0_7, %c0_8] : memref<16x32xf32, #tpu.memory_space<vmem>>, vector<16x32xf32>
    %cst_9 = arith.constant dense<0.000000e+00> : vector<20x32xf32>
    %7 = tpu.matmul %3, %6, %cst_9 {dimension_numbers = #tpu.dot_dimension_numbers<[1], [0], [0], [1], [0, 0, 1, 1], [], []>} : vector<20x16xf32>, vector<16x32xf32>, vector<20x32xf32> -> vector<20x32xf32>
    %c0_10 = arith.constant 0 : index
    %c0_11 = arith.constant 0 : index
    %8 = vector.load %arg6[%c0_10, %c0_11] : memref<16x32xf32, #tpu.memory_space<vmem>>, vector<16x32xf32>
    %cst_12 = arith.constant dense<0.000000e+00> : vector<20x32xf32>
    %9 = tpu.matmul %5, %8, %cst_12 {dimension_numbers = #tpu.dot_dimension_numbers<[1], [0], [0], [1], [0, 0, 1, 1], [], []>} : vector<20x16xf32>, vector<16x32xf32>, vector<20x32xf32> -> vector<20x32xf32>
    %10 = arith.addf %7, %9 : vector<20x32xf32>
    %c0_13 = arith.constant 0 : index
    %c0_14 = arith.constant 0 : index
    %11 = vector.load %arg7[%c0_13, %c0_14] : memref<1x32xf32, #tpu.memory_space<vmem>>, vector<1x32xf32>
    %12 = vector.broadcast %11 : vector<1x32xf32> to vector<20x32xf32>
    %13 = arith.addf %10, %12 : vector<20x32xf32>
    %cst_15 = arith.constant 0.000000e+00 : f32
    %14 = vector.broadcast %cst_15 : f32 to vector<20x32xf32>
    %15 = arith.cmpf ogt, %13, %14 : vector<20x32xf32>
    %cst_16 = arith.constant 0.000000e+00 : f32
    %16 = vector.broadcast %cst_16 : f32 to vector<20x32xf32>
    %17 = arith.minimumf %13, %16 : vector<20x32xf32>
    %18 = math.exp %17 : vector<20x32xf32>
    %cst_17 = arith.constant 1.000000e+00 : f32
    %19 = vector.broadcast %cst_17 : f32 to vector<20x32xf32>
    %20 = arith.subf %18, %19 : vector<20x32xf32>
    %21 = arith.select %15, %13, %20 : vector<20x32xi1>, vector<20x32xf32>
    %c0_18 = arith.constant 0 : index
    %c0_19 = arith.constant 0 : index
    %22 = vector.load %arg8[%c0_18, %c0_19] : memref<32x32xf32, #tpu.memory_space<vmem>>, vector<32x32xf32>
    %cst_20 = arith.constant dense<0.000000e+00> : vector<20x32xf32>
    %23 = tpu.matmul %21, %22, %cst_20 {dimension_numbers = #tpu.dot_dimension_numbers<[1], [0], [0], [1], [0, 0, 1, 1], [], []>} : vector<20x32xf32>, vector<32x32xf32>, vector<20x32xf32> -> vector<20x32xf32>
    %c0_21 = arith.constant 0 : index
    %c0_22 = arith.constant 0 : index
    %24 = vector.load %arg9[%c0_21, %c0_22] : memref<1x32xf32, #tpu.memory_space<vmem>>, vector<1x32xf32>
    %25 = vector.broadcast %24 : vector<1x32xf32> to vector<20x32xf32>
    %26 = arith.addf %23, %25 : vector<20x32xf32>
    %cst_23 = arith.constant 0.000000e+00 : f32
    %27 = vector.broadcast %cst_23 : f32 to vector<20x32xf32>
    %28 = arith.cmpf ogt, %26, %27 : vector<20x32xf32>
    %cst_24 = arith.constant 0.000000e+00 : f32
    %29 = vector.broadcast %cst_24 : f32 to vector<20x32xf32>
    %30 = arith.minimumf %26, %29 : vector<20x32xf32>
    %31 = math.exp %30 : vector<20x32xf32>
    %cst_25 = arith.constant 1.000000e+00 : f32
    %32 = vector.broadcast %cst_25 : f32 to vector<20x32xf32>
    %33 = arith.subf %31, %32 : vector<20x32xf32>
    %34 = arith.select %28, %26, %33 : vector<20x32xi1>, vector<20x32xf32>
    %c0_26 = arith.constant 0 : index
    %c0_27 = arith.constant 0 : index
    %35 = vector.load %arg10[%c0_26, %c0_27] : memref<1x32xf32, #tpu.memory_space<vmem>>, vector<1x32xf32>
    %36 = vector.broadcast %35 : vector<1x32xf32> to vector<20x32xf32>
    %37 = arith.mulf %34, %36 : vector<20x32xf32>
    %c0_28 = arith.constant 0 : index
    %c0_29 = arith.constant 0 : index
    %38 = vector.load %arg11[%c0_28, %c0_29] : memref<1x32xf32, #tpu.memory_space<vmem>>, vector<1x32xf32>
    %39 = vector.broadcast %38 : vector<1x32xf32> to vector<20x32xf32>
    %40 = arith.addf %37, %39 : vector<20x32xf32>
    %c0_30 = arith.constant 0 : index
    %c0_31 = arith.constant 0 : index
    %c0_32 = arith.constant 0 : index
    %41 = vector.load %arg12[%c0_30, %c0_31, %c0_32] : memref<1x20x32xf32, #tpu.memory_space<vmem>>, vector<1x20x32xf32>
    %42 = vector.shape_cast %41 : vector<1x20x32xf32> to vector<20x32xf32>
    %43 = vector.shape_cast %40 : vector<20x32xf32> to vector<1x20x32xf32>
    tpu.vector_store %arg12[%c0_30, %c0_31, %c0_32], %43 {strides = array<i32>} : memref<1x20x32xf32, #tpu.memory_space<vmem>>, vector<1x20x32xf32>,
    return
  }
  func.func @transform_0(%arg0: i32, %arg1: i32) -> (i32, i32) {
    %c0_i32 = arith.constant 0 : i32
    %c0_i32_0 = arith.constant 0 : i32
    return %arg1, %c0_i32 : i32, i32
  }
  func.func @transform_1(%arg0: i32, %arg1: i32) -> (i32, i32) {
    %c0_i32 = arith.constant 0 : i32
    %c0_i32_0 = arith.constant 0 : i32
    return %arg1, %c0_i32 : i32, i32
  }
  func.func @transform_2(%arg0: i32, %arg1: i32) -> (i32, i32, i32) {
    %c0_i32 = arith.constant 0 : i32
    %c0_i32_0 = arith.constant 0 : i32
    %c0_i32_1 = arith.constant 0 : i32
    return %arg0, %c0_i32, %c0_i32_0 : i32, i32, i32
  }
  func.func @transform_3(%arg0: i32, %arg1: i32) -> (i32, i32) {
    %c0_i32 = arith.constant 0 : i32
    %c0_i32_0 = arith.constant 0 : i32
    %c0_i32_1 = arith.constant 0 : i32
    return %c0_i32, %c0_i32_0 : i32, i32
  }
  func.func @transform_4(%arg0: i32, %arg1: i32) -> (i32, i32) {
    %c0_i32 = arith.constant 0 : i32
    %c0_i32_0 = arith.constant 0 : i32
    %c0_i32_1 = arith.constant 0 : i32
    return %c0_i32, %c0_i32_0 : i32, i32
  }
  func.func @transform_5(%arg0: i32, %arg1: i32) -> (i32, i32) {
    %c0_i32 = arith.constant 0 : i32
    %c0_i32_0 = arith.constant 0 : i32
    %c0_i32_1 = arith.constant 0 : i32
    return %c0_i32, %c0_i32_0 : i32, i32
  }
  func.func @transform_6(%arg0: i32, %arg1: i32) -> (i32, i32) {
    %c0_i32 = arith.constant 0 : i32
    %c0_i32_0 = arith.constant 0 : i32
    %c0_i32_1 = arith.constant 0 : i32
    return %c0_i32, %c0_i32_0 : i32, i32
  }
  func.func @transform_7(%arg0: i32, %arg1: i32) -> (i32, i32) {
    %c0_i32 = arith.constant 0 : i32
    %c0_i32_0 = arith.constant 0 : i32
    %c0_i32_1 = arith.constant 0 : i32
    return %c0_i32, %c0_i32_0 : i32, i32
  }
  func.func @transform_8(%arg0: i32, %arg1: i32) -> (i32, i32) {
    %c0_i32 = arith.constant 0 : i32
    %c0_i32_0 = arith.constant 0 : i32
    %c0_i32_1 = arith.constant 0 : i32
    return %c0_i32, %c0_i32_0 : i32, i32
  }
  func.func @transform_9(%arg0: i32, %arg1: i32) -> (i32, i32) {
    %c0_i32 = arith.constant 0 : i32
    %c0_i32_0 = arith.constant 0 : i32
    %c0_i32_1 = arith.constant 0 : i32
    return %c0_i32, %c0_i32_0 : i32, i32
  }
  func.func @transform_10(%arg0: i32, %arg1: i32) -> (i32, i32, i32) {
    %c0_i32 = arith.constant 0 : i32
    %c0_i32_0 = arith.constant 0 : i32
    return %arg0, %arg1, %c0_i32 : i32, i32, i32
  }
}

module attributes {stable_mosaic.version = 11 : i64} {
  func.func @_node2edge_skip_mlp_kernel(%arg0: i32, %arg1: i32, %arg2: memref<20x5xf32, #tpu.memory_space<vmem>>, %arg3: memref<20x5xf32, #tpu.memory_space<vmem>>, %arg4: memref<1x5x32xf32, #tpu.memory_space<vmem>>, %arg5: memref<1x20x32xf32, #tpu.memory_space<vmem>>, %arg6: memref<32x32xf32, #tpu.memory_space<vmem>>, %arg7: memref<32x32xf32, #tpu.memory_space<vmem>>, %arg8: memref<32x32xf32, #tpu.memory_space<vmem>>, %arg9: memref<1x32xf32, #tpu.memory_space<vmem>>, %arg10: memref<32x32xf32, #tpu.memory_space<vmem>>, %arg11: memref<1x32xf32, #tpu.memory_space<vmem>>, %arg12: memref<1x32xf32, #tpu.memory_space<vmem>>, %arg13: memref<1x32xf32, #tpu.memory_space<vmem>>, %arg14: memref<1x20x32xf32, #tpu.memory_space<vmem>>) attributes {dimension_semantics = [#tpu.dimension_semantics<parallel>, #tpu.dimension_semantics<parallel>], iteration_bounds = array<i64: 2, 1>, scalar_prefetch = 0 : i64, scratch_operands = 0 : i64, tpu.core_type = #tpu.core_type<tc>, window_params = [{transform_indices = @transform_0, window_bounds = array<i64: 20, 5>}, {transform_indices = @transform_1, window_bounds = array<i64: 20, 5>}, {transform_indices = @transform_2, window_bounds = array<i64: 1, 5, 32>}, {transform_indices = @transform_3, window_bounds = array<i64: 1, 20, 32>}, {pipeline_mode = #tpu.pipeline_mode<synchronous>, transform_indices = @transform_4, window_bounds = array<i64: 32, 32>}, {pipeline_mode = #tpu.pipeline_mode<synchronous>, transform_indices = @transform_5, window_bounds = array<i64: 32, 32>}, {pipeline_mode = #tpu.pipeline_mode<synchronous>, transform_indices = @transform_6, window_bounds = array<i64: 32, 32>}, {pipeline_mode = #tpu.pipeline_mode<synchronous>, transform_indices = @transform_7, window_bounds = array<i64: 1, 32>}, {pipeline_mode = #tpu.pipeline_mode<synchronous>, transform_indices = @transform_8, window_bounds = array<i64: 32, 32>}, {pipeline_mode = #tpu.pipeline_mode<synchronous>, transform_indices = @transform_9, window_bounds = array<i64: 1, 32>}, {pipeline_mode = #tpu.pipeline_mode<synchronous>, transform_indices = @transform_10, window_bounds = array<i64: 1, 32>}, {pipeline_mode = #tpu.pipeline_mode<synchronous>, transform_indices = @transform_11, window_bounds = array<i64: 1, 32>}, {transform_indices = @transform_12, window_bounds = array<i64: 1, 20, 32>}]} {
    %c0 = arith.constant 0 : index
    %c0_0 = arith.constant 0 : index
    %c0_1 = arith.constant 0 : index
    %0 = vector.load %arg4[%c0, %c0_0, %c0_1] : memref<1x5x32xf32, #tpu.memory_space<vmem>>, vector<1x5x32xf32>
    %1 = vector.shape_cast %0 : vector<1x5x32xf32> to vector<5x32xf32>
    %c0_2 = arith.constant 0 : index
    %c0_3 = arith.constant 0 : index
    %2 = vector.load %arg2[%c0_2, %c0_3] : memref<20x5xf32, #tpu.memory_space<vmem>>, vector<20x5xf32>
    %cst = arith.constant dense<0.000000e+00> : vector<20x32xf32>
    %3 = tpu.matmul %2, %1, %cst {dimension_numbers = #tpu.dot_dimension_numbers<[1], [0], [0], [1], [0, 0, 1, 1], [], []>} : vector<20x5xf32>, vector<5x32xf32>, vector<20x32xf32> -> vector<20x32xf32>
    %c0_4 = arith.constant 0 : index
    %c0_5 = arith.constant 0 : index
    %4 = vector.load %arg3[%c0_4, %c0_5] : memref<20x5xf32, #tpu.memory_space<vmem>>, vector<20x5xf32>
    %cst_6 = arith.constant dense<0.000000e+00> : vector<20x32xf32>
    %5 = tpu.matmul %4, %1, %cst_6 {dimension_numbers = #tpu.dot_dimension_numbers<[1], [0], [0], [1], [0, 0, 1, 1], [], []>} : vector<20x5xf32>, vector<5x32xf32>, vector<20x32xf32> -> vector<20x32xf32>
    %c0_7 = arith.constant 0 : index
    %c0_8 = arith.constant 0 : index
    %6 = vector.load %arg6[%c0_7, %c0_8] : memref<32x32xf32, #tpu.memory_space<vmem>>, vector<32x32xf32>
    %cst_9 = arith.constant dense<0.000000e+00> : vector<20x32xf32>
    %7 = tpu.matmul %3, %6, %cst_9 {dimension_numbers = #tpu.dot_dimension_numbers<[1], [0], [0], [1], [0, 0, 1, 1], [], []>} : vector<20x32xf32>, vector<32x32xf32>, vector<20x32xf32> -> vector<20x32xf32>
    %c0_10 = arith.constant 0 : index
    %c0_11 = arith.constant 0 : index
    %8 = vector.load %arg7[%c0_10, %c0_11] : memref<32x32xf32, #tpu.memory_space<vmem>>, vector<32x32xf32>
    %cst_12 = arith.constant dense<0.000000e+00> : vector<20x32xf32>
    %9 = tpu.matmul %5, %8, %cst_12 {dimension_numbers = #tpu.dot_dimension_numbers<[1], [0], [0], [1], [0, 0, 1, 1], [], []>} : vector<20x32xf32>, vector<32x32xf32>, vector<20x32xf32> -> vector<20x32xf32>
    %10 = arith.addf %7, %9 : vector<20x32xf32>
    %c0_13 = arith.constant 0 : index
    %c0_14 = arith.constant 0 : index
    %c0_15 = arith.constant 0 : index
    %11 = vector.load %arg5[%c0_13, %c0_14, %c0_15] : memref<1x20x32xf32, #tpu.memory_space<vmem>>, vector<1x20x32xf32>
    %12 = vector.shape_cast %11 : vector<1x20x32xf32> to vector<20x32xf32>
    %c0_16 = arith.constant 0 : index
    %c0_17 = arith.constant 0 : index
    %13 = vector.load %arg8[%c0_16, %c0_17] : memref<32x32xf32, #tpu.memory_space<vmem>>, vector<32x32xf32>
    %cst_18 = arith.constant dense<0.000000e+00> : vector<20x32xf32>
    %14 = tpu.matmul %12, %13, %cst_18 {dimension_numbers = #tpu.dot_dimension_numbers<[1], [0], [0], [1], [0, 0, 1, 1], [], []>} : vector<20x32xf32>, vector<32x32xf32>, vector<20x32xf32> -> vector<20x32xf32>
    %15 = arith.addf %10, %14 : vector<20x32xf32>
    %c0_19 = arith.constant 0 : index
    %c0_20 = arith.constant 0 : index
    %16 = vector.load %arg9[%c0_19, %c0_20] : memref<1x32xf32, #tpu.memory_space<vmem>>, vector<1x32xf32>
    %17 = vector.broadcast %16 : vector<1x32xf32> to vector<20x32xf32>
    %18 = arith.addf %15, %17 : vector<20x32xf32>
    %cst_21 = arith.constant 0.000000e+00 : f32
    %19 = vector.broadcast %cst_21 : f32 to vector<20x32xf32>
    %20 = arith.cmpf ogt, %18, %19 : vector<20x32xf32>
    %cst_22 = arith.constant 0.000000e+00 : f32
    %21 = vector.broadcast %cst_22 : f32 to vector<20x32xf32>
    %22 = arith.minimumf %18, %21 : vector<20x32xf32>
    %23 = math.exp %22 : vector<20x32xf32>
    %cst_23 = arith.constant 1.000000e+00 : f32
    %24 = vector.broadcast %cst_23 : f32 to vector<20x32xf32>
    %25 = arith.subf %23, %24 : vector<20x32xf32>
    %26 = arith.select %20, %18, %25 : vector<20x32xi1>, vector<20x32xf32>
    %c0_24 = arith.constant 0 : index
    %c0_25 = arith.constant 0 : index
    %27 = vector.load %arg10[%c0_24, %c0_25] : memref<32x32xf32, #tpu.memory_space<vmem>>, vector<32x32xf32>
    %cst_26 = arith.constant dense<0.000000e+00> : vector<20x32xf32>
    %28 = tpu.matmul %26, %27, %cst_26 {dimension_numbers = #tpu.dot_dimension_numbers<[1], [0], [0], [1], [0, 0, 1, 1], [], []>} : vector<20x32xf32>, vector<32x32xf32>, vector<20x32xf32> -> vector<20x32xf32>
    %c0_27 = arith.constant 0 : index
    %c0_28 = arith.constant 0 : index
    %29 = vector.load %arg11[%c0_27, %c0_28] : memref<1x32xf32, #tpu.memory_space<vmem>>, vector<1x32xf32>
    %30 = vector.broadcast %29 : vector<1x32xf32> to vector<20x32xf32>
    %31 = arith.addf %28, %30 : vector<20x32xf32>
    %cst_29 = arith.constant 0.000000e+00 : f32
    %32 = vector.broadcast %cst_29 : f32 to vector<20x32xf32>
    %33 = arith.cmpf ogt, %31, %32 : vector<20x32xf32>
    %cst_30 = arith.constant 0.000000e+00 : f32
    %34 = vector.broadcast %cst_30 : f32 to vector<20x32xf32>
    %35 = arith.minimumf %31, %34 : vector<20x32xf32>
    %36 = math.exp %35 : vector<20x32xf32>
    %cst_31 = arith.constant 1.000000e+00 : f32
    %37 = vector.broadcast %cst_31 : f32 to vector<20x32xf32>
    %38 = arith.subf %36, %37 : vector<20x32xf32>
    %39 = arith.select %33, %31, %38 : vector<20x32xi1>, vector<20x32xf32>
    %c0_32 = arith.constant 0 : index
    %c0_33 = arith.constant 0 : index
    %40 = vector.load %arg12[%c0_32, %c0_33] : memref<1x32xf32, #tpu.memory_space<vmem>>, vector<1x32xf32>
    %41 = vector.broadcast %40 : vector<1x32xf32> to vector<20x32xf32>
    %42 = arith.mulf %39, %41 : vector<20x32xf32>
    %c0_34 = arith.constant 0 : index
    %c0_35 = arith.constant 0 : index
    %43 = vector.load %arg13[%c0_34, %c0_35] : memref<1x32xf32, #tpu.memory_space<vmem>>, vector<1x32xf32>
    %44 = vector.broadcast %43 : vector<1x32xf32> to vector<20x32xf32>
    %45 = arith.addf %42, %44 : vector<20x32xf32>
    %c0_36 = arith.constant 0 : index
    %c0_37 = arith.constant 0 : index
    %c0_38 = arith.constant 0 : index
    %46 = vector.load %arg14[%c0_36, %c0_37, %c0_38] : memref<1x20x32xf32, #tpu.memory_space<vmem>>, vector<1x20x32xf32>
    %47 = vector.shape_cast %46 : vector<1x20x32xf32> to vector<20x32xf32>
    %48 = vector.shape_cast %45 : vector<20x32xf32> to vector<1x20x32xf32>
    tpu.vector_store %arg14[%c0_36, %c0_37, %c0_38], %48 {strides = array<i32>} : memref<1x20x32xf32, #tpu.memory_space<vmem>>, vector<1x20x32xf32>,
    return
  }
  func.func @transform_0(%arg0: i32, %arg1: i32) -> (i32, i32) {
    %c0_i32 = arith.constant 0 : i32
    %c0_i32_0 = arith.constant 0 : i32
    return %arg1, %c0_i32 : i32, i32
  }
  func.func @transform_1(%arg0: i32, %arg1: i32) -> (i32, i32) {
    %c0_i32 = arith.constant 0 : i32
    %c0_i32_0 = arith.constant 0 : i32
    return %arg1, %c0_i32 : i32, i32
  }
  func.func @transform_2(%arg0: i32, %arg1: i32) -> (i32, i32, i32) {
    %c0_i32 = arith.constant 0 : i32
    %c0_i32_0 = arith.constant 0 : i32
    %c0_i32_1 = arith.constant 0 : i32
    return %arg0, %c0_i32, %c0_i32_0 : i32, i32, i32
  }
  func.func @transform_3(%arg0: i32, %arg1: i32) -> (i32, i32, i32) {
    %c0_i32 = arith.constant 0 : i32
    %c0_i32_0 = arith.constant 0 : i32
    return %arg0, %arg1, %c0_i32 : i32, i32, i32
  }
  func.func @transform_4(%arg0: i32, %arg1: i32) -> (i32, i32) {
    %c0_i32 = arith.constant 0 : i32
    %c0_i32_0 = arith.constant 0 : i32
    %c0_i32_1 = arith.constant 0 : i32
    return %c0_i32, %c0_i32_0 : i32, i32
  }
  func.func @transform_5(%arg0: i32, %arg1: i32) -> (i32, i32) {
    %c0_i32 = arith.constant 0 : i32
    %c0_i32_0 = arith.constant 0 : i32
    %c0_i32_1 = arith.constant 0 : i32
    return %c0_i32, %c0_i32_0 : i32, i32
  }
  func.func @transform_6(%arg0: i32, %arg1: i32) -> (i32, i32) {
    %c0_i32 = arith.constant 0 : i32
    %c0_i32_0 = arith.constant 0 : i32
    %c0_i32_1 = arith.constant 0 : i32
    return %c0_i32, %c0_i32_0 : i32, i32
  }
  func.func @transform_7(%arg0: i32, %arg1: i32) -> (i32, i32) {
    %c0_i32 = arith.constant 0 : i32
    %c0_i32_0 = arith.constant 0 : i32
    %c0_i32_1 = arith.constant 0 : i32
    return %c0_i32, %c0_i32_0 : i32, i32
  }
  func.func @transform_8(%arg0: i32, %arg1: i32) -> (i32, i32) {
    %c0_i32 = arith.constant 0 : i32
    %c0_i32_0 = arith.constant 0 : i32
    %c0_i32_1 = arith.constant 0 : i32
    return %c0_i32, %c0_i32_0 : i32, i32
  }
  func.func @transform_9(%arg0: i32, %arg1: i32) -> (i32, i32) {
    %c0_i32 = arith.constant 0 : i32
    %c0_i32_0 = arith.constant 0 : i32
    %c0_i32_1 = arith.constant 0 : i32
    return %c0_i32, %c0_i32_0 : i32, i32
  }
  func.func @transform_10(%arg0: i32, %arg1: i32) -> (i32, i32) {
    %c0_i32 = arith.constant 0 : i32
    %c0_i32_0 = arith.constant 0 : i32
    %c0_i32_1 = arith.constant 0 : i32
    return %c0_i32, %c0_i32_0 : i32, i32
  }
  func.func @transform_11(%arg0: i32, %arg1: i32) -> (i32, i32) {
    %c0_i32 = arith.constant 0 : i32
    %c0_i32_0 = arith.constant 0 : i32
    %c0_i32_1 = arith.constant 0 : i32
    return %c0_i32, %c0_i32_0 : i32, i32
  }
  func.func @transform_12(%arg0: i32, %arg1: i32) -> (i32, i32, i32) {
    %c0_i32 = arith.constant 0 : i32
    %c0_i32_0 = arith.constant 0 : i32
    return %arg0, %arg1, %c0_i32 : i32, i32, i32
  }
}

</mosaic_0001>

<llo_original>
// kernel: temp_mp_forward.4
$region0: #{temp_mp_forward.4}
  #allocation0 [shape = 'u32[]', space=smem, size = 0x4, offset = 0x4, fixed_abs, tag = 'smem constant byte address 0x4 - core index']
  #allocation1 [shape = 'u32[144,128]{1,0:T(1,128)}', space=vmem, size = 0x12000, scoped, tag = 'internal scratch']
  %s0 = inlined_call_operand.vmem [shape: f32[10,8], index: 0, kind: input, shape index: {}]
  %s1 = inlined_call_operand.vmem [shape: f32[8,16], index: 1, kind: input, shape index: {}]
  %s2 = inlined_call_operand.vmem [shape: f32[1,16], index: 2, kind: input, shape index: {}]
  %s3 = inlined_call_operand.vmem [shape: f32[16,16], index: 3, kind: input, shape index: {}]
  %s4 = inlined_call_operand.vmem [shape: f32[1,16], index: 4, kind: input, shape index: {}]
  %s5 = inlined_call_operand.vmem [shape: f32[1,16], index: 5, kind: input, shape index: {}]
  %s6 = inlined_call_operand.vmem [shape: f32[1,16], index: 6, kind: input, shape index: {}]
  %s7 = inlined_call_operand.vmem [shape: f32[10,16], index: 7, kind: output, shape index: {}]
  %s8 = sld [smem:[#allocation0]]
  $region38: #{temp_mp_forward.4} parent=0
    _
  %s10 = ssub.s32 1, %s8
  %s11 = scalar_select 0, %s10, %s8
  // Predicated region
  $region2: #{temp_mp_forward.4} parent=0 // pred_check
    _
  $region3: #{temp_mp_forward.4} parent=0 // pred_check_branch
    %13 = sbr.rel (0) target = $region5
  $region4: #{temp_mp_forward.4} parent=0 // pred_region
    _
  $region5: #{temp_mp_forward.4} parent=0 // pred_fallthru
    _
  // Predicated region
  $region6: #{temp_mp_forward.4} parent=0 // pred_check
    _
  $region7: #{temp_mp_forward.4} parent=0 // pred_check_branch
    %15 = sbr.rel (0) target = $region9
  $region8: #{temp_mp_forward.4} parent=0 // pred_region
    _
  $region9: #{temp_mp_forward.4} parent=0 // pred_fallthru
    _
  // Predicated region
  $region10: #{temp_mp_forward.4} parent=0 // pred_check
    _
  $region11: #{temp_mp_forward.4} parent=0 // pred_check_branch
    %17 = sbr.rel (0) target = $region13
  $region12: #{temp_mp_forward.4} parent=0 // pred_region
    _
  $region13: #{temp_mp_forward.4} parent=0 // pred_fallthru
    _
  // Predicated region
  $region14: #{temp_mp_forward.4} parent=0 // pred_check
    _
  $region15: #{temp_mp_forward.4} parent=0 // pred_check_branch
    %19 = sbr.rel (0) target = $region17
  $region16: #{temp_mp_forward.4} parent=0 // pred_region
    _
  $region17: #{temp_mp_forward.4} parent=0 // pred_fallthru
    _
  // Predicated region
  $region18: #{temp_mp_forward.4} parent=0 // pred_check
    _
  $region19: #{temp_mp_forward.4} parent=0 // pred_check_branch
    %21 = sbr.rel (0) target = $region21
  $region20: #{temp_mp_forward.4} parent=0 // pred_region
    _
  $region21: #{temp_mp_forward.4} parent=0 // pred_fallthru
    _
  // Predicated region
  $region22: #{temp_mp_forward.4} parent=0 // pred_check
    _
  $region23: #{temp_mp_forward.4} parent=0 // pred_check_branch
    %23 = sbr.rel (0) target = $region25
  $region24: #{temp_mp_forward.4} parent=0 // pred_region
    _
  $region25: #{temp_mp_forward.4} parent=0 // pred_fallthru
    _
  // Predicated region
  $region26: #{temp_mp_forward.4} parent=0 // pred_check
    _
  $region27: #{temp_mp_forward.4} parent=0 // pred_check_branch
    %25 = sbr.rel (0) target = $region29
  $region28: #{temp_mp_forward.4} parent=0 // pred_region
    _
  $region29: #{temp_mp_forward.4} parent=0 // pred_fallthru
    _
  %v26 = vld [vmem:[%s0] sm:$0xff]
  %v27 = vld [vmem:[%s0 + $0x8] sm:$0x3]
  %v28 = vld [vmem:[%s1] sm:$0xff]
  %v29 = vld [vmem:[%s2] sm:$0x1]
  %v31 = vlaneseq
  %v32 = vshrl.u32 %v31, 7
  %v33 = vsub.s32 0, %v32
  %v34 = vrot.slane %v29, %v33
  %vm36 = vcmask 64512
  %v38 = vsel %vm36, %v26, 0
  %v41 = vsel %vm36, %v27, 0
  %43 = vmatprep.subr.mxu0 0.0
  %44 = vmatpush1.msra.mxu0 0.0
  %45 = vmatprep.subr.mxu0 0.0
  %46 = vmatpush1.msra.mxu0 0.0
  %47 = vmatprep.subr.mxu0 0.0
  %48 = vmatpush1.msra.mxu0 0.0
  %49 = vmatprep.subr.mxu0 0.0
  %50 = vmatpush1.msra.mxu0 0.0
  %51 = vmatprep.subr.mxu0 0.0
  %52 = vmatpush1.msra.mxu0 0.0
  %53 = vmatprep.subr.mxu0 0.0
  %54 = vmatpush1.msra.mxu0 0.0
  %55 = vmatprep.subr.mxu0 0.0
  %56 = vmatpush1.msra.mxu0 0.0
  %57 = vmatprep.subr.mxu0 0.0
  %58 = vmatpush1.msra.mxu0 0.0
  %59 = vmatprep.subr.mxu0 0.0
  %60 = vmatpush1.msra.mxu0 0.0
  %61 = vmatprep.subr.mxu0 0.0
  %62 = vmatpush1.msra.mxu0 0.0
  %63 = vmatprep.subr.mxu0 0.0
  %64 = vmatpush1.msra.mxu0 0.0
  %65 = vmatprep.subr.mxu0 0.0
  %66 = vmatpush1.msra.mxu0 0.0
  %67 = vmatprep.subr.mxu0 0.0
  %68 = vmatpush1.msra.mxu0 0.0
  %69 = vmatprep.subr.mxu0 0.0
  %70 = vmatpush1.msra.mxu0 0.0
  %71 = vmatprep.subr.mxu0 0.0
  %72 = vmatpush1.msra.mxu0 0.0
  %73 = vmatprep.subr.mxu0 0.0
  %74 = vmatpush1.msra.mxu0 %v28
  %75 = vmatprep.subr.mxu0 0.0
  %76 = vmatpush2.msra.mxu0 0.0
  %77 = vmatprep.subr.mxu0 0.0
  %78 = vmatpush2.msra.mxu0 0.0
  %79 = vmatprep.subr.mxu0 0.0
  %80 = vmatpush2.msra.mxu0 0.0
  %81 = vmatprep.subr.mxu0 0.0
  %82 = vmatpush2.msra.mxu0 0.0
  %83 = vmatprep.subr.mxu0 0.0
  %84 = vmatpush2.msra.mxu0 0.0
  %85 = vmatprep.subr.mxu0 0.0
  %86 = vmatpush2.msra.mxu0 0.0
  %87 = vmatprep.subr.mxu0 0.0
  %88 = vmatpush2.msra.mxu0 0.0
  %89 = vmatprep.subr.mxu0 0.0
  %90 = vmatpush2.msra.mxu0 0.0
  %91 = vmatprep.subr.mxu0 0.0
  %92 = vmatpush2.msra.mxu0 0.0
  %93 = vmatprep.subr.mxu0 0.0
  %94 = vmatpush2.msra.mxu0 0.0
  %95 = vmatprep.subr.mxu0 0.0
  %96 = vmatpush2.msra.mxu0 0.0
  %97 = vmatprep.subr.mxu0 0.0
  %98 = vmatpush2.msra.mxu0 0.0
  %99 = vmatprep.subr.mxu0 0.0
  %100 = vmatpush2.msra.mxu0 0.0
  %101 = vmatprep.subr.mxu0 0.0
  %102 = vmatpush2.msra.mxu0 0.0
  %103 = vmatprep.subr.mxu0 0.0
  %104 = vmatpush2.msra.mxu0 0.0
  %105 = vmatprep.subr.mxu0 0.0
  %106 = vmatpush2.msra.mxu0 0.0
  %107 = vmatprep.mubr.f32.mxu0 0.0
  %108 = vmatmul.mubr.f32.gmra.mxu0 %v38
  %v109 = vpop.f32.mrf.mxu0
  %v110 = vadd.f32 %v34, %v109
  %v111 = vpop.f32.mrf.mxu0
  %112 = vmatprep.mubr.f32.mxu0 0.0
  %113 = vmatmul.mubr.f32.gmra.mxu0 %v41
  %v114 = vpop.f32.mrf.mxu0
  %v115 = vadd.f32 %v34, %v114
  %v116 = vpop.f32.mrf.mxu0
  %117 = vdwg.mxu0
  %vm118 = vcmp.gt.f32.partialorder %v110, 0.0
  %vm119 = vcmp.gt.f32.partialorder %v115, 0.0
  %v120 = vmin.f32 %v110, 0.0
  %v121 = vmin.f32 %v115, 0.0
  %v122 = vmul.f32 %v120, 1.442695
  %v123 = vpow.pop %v122
  %v124 = vmul.f32 %v121, 1.442695
  %v125 = vpow.pop %v124
  %v126 = vsub.f32 %v123, 1.0
  %v127 = vsub.f32 %v125, 1.0
  %v128 = vsel %vm118, %v110, %v126
  %v129 = vsel %vm119, %v115, %v127
  %v130 = vld [vmem:[%s3] sm:$0xff]
  %v131 = vld [vmem:[%s3 + $0x8] sm:$0xff]
  %v132 = vld [vmem:[%s4] sm:$0x1]
  %v134 = vlaneseq
  %v135 = vshrl.u32 %v134, 7
  %v136 = vsub.s32 0, %v135
  %v137 = vrot.slane %v132, %v136
  %vm139 = vcmask 130048
  %v141 = vsel %vm139, %v128, 0
  %v144 = vsel %vm139, %v129, 0
  %146 = vmatprep.subr.mxu0 0.0
  %147 = vmatpush1.msra.mxu0 0.0
  %148 = vmatprep.subr.mxu0 0.0
  %149 = vmatpush1.msra.mxu0 0.0
  %150 = vmatprep.subr.mxu0 0.0
  %151 = vmatpush1.msra.mxu0 0.0
  %152 = vmatprep.subr.mxu0 0.0
  %153 = vmatpush1.msra.mxu0 0.0
  %154 = vmatprep.subr.mxu0 0.0
  %155 = vmatpush1.msra.mxu0 0.0
  %156 = vmatprep.subr.mxu0 0.0
  %157 = vmatpush1.msra.mxu0 0.0
  %158 = vmatprep.subr.mxu0 0.0
  %159 = vmatpush1.msra.mxu0 0.0
  %160 = vmatprep.subr.mxu0 0.0
  %161 = vmatpush1.msra.mxu0 0.0
  %162 = vmatprep.subr.mxu0 0.0
  %163 = vmatpush1.msra.mxu0 0.0
  %164 = vmatprep.subr.mxu0 0.0
  %165 = vmatpush1.msra.mxu0 0.0
  %166 = vmatprep.subr.mxu0 0.0
  %167 = vmatpush1.msra.mxu0 0.0
  %168 = vmatprep.subr.mxu0 0.0
  %169 = vmatpush1.msra.mxu0 0.0
  %170 = vmatprep.subr.mxu0 0.0
  %171 = vmatpush1.msra.mxu0 0.0
  %172 = vmatprep.subr.mxu0 0.0
  %173 = vmatpush1.msra.mxu0 0.0
  %174 = vmatprep.subr.mxu0 0.0
  %175 = vmatpush1.msra.mxu0 %v131
  %176 = vmatprep.subr.mxu0 0.0
  %177 = vmatpush1.msra.mxu0 %v130
  %178 = vmatprep.subr.mxu0 0.0
  %179 = vmatpush2.msra.mxu0 0.0
  %180 = vmatprep.subr.mxu0 0.0
  %181 = vmatpush2.msra.mxu0 0.0
  %182 = vmatprep.subr.mxu0 0.0
  %183 = vmatpush2.msra.mxu0 0.0
  %184 = vmatprep.subr.mxu0 0.0
  %185 = vmatpush2.msra.mxu0 0.0
  %186 = vmatprep.subr.mxu0 0.0
  %187 = vmatpush2.msra.mxu0 0.0
  %188 = vmatprep.subr.mxu0 0.0
  %189 = vmatpush2.msra.mxu0 0.0
  %190 = vmatprep.subr.mxu0 0.0
  %191 = vmatpush2.msra.mxu0 0.0
  %192 = vmatprep.subr.mxu0 0.0
  %193 = vmatpush2.msra.mxu0 0.0
  %194 = vmatprep.subr.mxu0 0.0
  %195 = vmatpush2.msra.mxu0 0.0
  %196 = vmatprep.subr.mxu0 0.0
  %197 = vmatpush2.msra.mxu0 0.0
  %198 = vmatprep.subr.mxu0 0.0
  %199 = vmatpush2.msra.mxu0 0.0
  %200 = vmatprep.subr.mxu0 0.0
  %201 = vmatpush2.msra.mxu0 0.0
  %202 = vmatprep.subr.mxu0 0.0
  %203 = vmatpush2.msra.mxu0 0.0
  %204 = vmatprep.subr.mxu0 0.0
  %205 = vmatpush2.msra.mxu0 0.0
  %206 = vmatprep.subr.mxu0 0.0
  %207 = vmatpush2.msra.mxu0 0.0
  %208 = vmatprep.subr.mxu0 0.0
  %209 = vmatpush2.msra.mxu0 0.0
  %210 = vmatprep.mubr.f32.mxu0 0.0
  %211 = vmatmul.mubr.f32.gmra.mxu0 %v141
  %v212 = vpop.f32.mrf.mxu0
  %v213 = vadd.f32 %v137, %v212
  %v214 = vpop.f32.mrf.mxu0
  %215 = vmatprep.mubr.f32.mxu0 0.0
  %216 = vmatmul.mubr.f32.gmra.mxu0 %v144
  %v217 = vpop.f32.mrf.mxu0
  %v218 = vadd.f32 %v137, %v217
  %v219 = vpop.f32.mrf.mxu0
  %220 = vdwg.mxu0
  %vm221 = vcmp.gt.f32.partialorder %v213, 0.0
  %vm222 = vcmp.gt.f32.partialorder %v218, 0.0
  %v223 = vmin.f32 %v213, 0.0
  %v224 = vmin.f32 %v218, 0.0
  %v225 = vmul.f32 %v223, 1.442695
  %v226 = vpow.pop %v225
  %v227 = vmul.f32 %v224, 1.442695
  %v228 = vpow.pop %v227
  %v229 = vsub.f32 %v226, 1.0
  %v230 = vsub.f32 %v228, 1.0
  %v231 = vsel %vm221, %v213, %v229
  %v232 = vsel %vm222, %v218, %v230
  %v233 = vld [vmem:[%s5] sm:$0x1]
  %v235 = vlaneseq
  %v236 = vshrl.u32 %v235, 7
  %v237 = vsub.s32 0, %v236
  %v238 = vrot.slane %v233, %v237
  %v240 = vmul.f32 %v231, %v238
  %v241 = vmul.f32 %v232, %v238
  %v242 = vld [vmem:[%s6] sm:$0x1]
  %v244 = vlaneseq
  %v245 = vshrl.u32 %v244, 7
  %v246 = vsub.s32 0, %v245
  %v247 = vrot.slane %v242, %v246
  %v249 = vadd.f32 %v240, %v247
  %v250 = vadd.f32 %v241, %v247
  %251 = vst.msk [vmem:[%s7] sm:$0xff] %vm139, %v249
  %vm252 = vcmask 123904
  %253 = vst.msk [vmem:[%s7 + $0x8] sm:$0x3] %vm252, %v250
  // Predicated region
  $region30: #{temp_mp_forward.4} parent=0 // pred_check
    _
  $region31: #{temp_mp_forward.4} parent=0 // pred_check_branch
    %255 = sbr.rel (0) target = $region33
  $region32: #{temp_mp_forward.4} parent=0 // pred_region
    _
  $region33: #{temp_mp_forward.4} parent=0 // pred_fallthru
    _
  // Predicated region
  $region34: #{temp_mp_forward.4} parent=0 // pred_check
    _
  $region35: #{temp_mp_forward.4} parent=0 // pred_check_branch
    %257 = sbr.rel (0) target = $region37
  $region36: #{temp_mp_forward.4} parent=0 // pred_region
    _
  $region37: #{temp_mp_forward.4} parent=0 // pred_fallthru
    _

// kernel: temp_mp_forward.6
$region0: #{temp_mp_forward.6}
  #allocation0 [shape = 'u32[]', space=smem, size = 0x4, offset = 0x4, fixed_abs, tag = 'smem constant byte address 0x4 - core index']
  #allocation1 [shape = 'u32[144,128]{1,0:T(1,128)}', space=vmem, size = 0x12000, scoped, tag = 'internal scratch']
  %s0 = inlined_call_operand.vmem [shape: f32[5,20], index: 0, kind: input, shape index: {}]
  %s1 = inlined_call_operand.vmem [shape: f32[2,20,32], index: 1, kind: input, shape index: {}]
  %s2 = inlined_call_operand.vmem [shape: f32[32,32], index: 2, kind: input, shape index: {}]
  %s3 = inlined_call_operand.vmem [shape: f32[1,32], index: 3, kind: input, shape index: {}]
  %s4 = inlined_call_operand.vmem [shape: f32[32,32], index: 4, kind: input, shape index: {}]
  %s5 = inlined_call_operand.vmem [shape: f32[1,32], index: 5, kind: input, shape index: {}]
  %s6 = inlined_call_operand.vmem [shape: f32[1,32], index: 6, kind: input, shape index: {}]
  %s7 = inlined_call_operand.vmem [shape: f32[1,32], index: 7, kind: input, shape index: {}]
  %s8 = inlined_call_operand.vmem [shape: f32[2,5,32], index: 8, kind: output, shape index: {}]
  %s9 = sld [smem:[#allocation0]]
  $region65: #{temp_mp_forward.6} parent=0
    _
  %s11 = ssub.s32 1, %s9
  %s12 = scalar_select 0, %s11, %s9
  loop: start=0, step=1, limit=4
  $region2: #{temp_mp_forward.6} parent=0 // loop_pre_header
    _
  $region3: #{temp_mp_forward.6} parent=0 // loop_header
    %s14 = sphi 0, %s18
    %p15 = scmp.ge.s32.totalorder %s14, 4
    %s21 = sphi 0, %s33
    %s22 = sphi 0, %s29
    %s23 = sphi 0, %s21
    %s24 = sphi 0, %s22
    %s25 = sphi 0, %s23
    %s26 = sphi 0, %s24
    %s36 = sphi 0, %s38
    %s39 = sphi 0, %s36
    %s40 = sphi 0, %s39
    %s56 = sphi 0, %s40
    %s62 = sphi 0, %s64
    %s65 = sphi 0, %s62
    %s66 = sphi 0, %s65
    %s82 = sphi 0, %s66
    %s86 = sphi 0, %s86
    %s88 = sphi 0, %s86
    %s89 = sphi 0, %s88
    %s103 = sphi 0, %s89
    %s107 = sphi 0, %s107
    %s109 = sphi 0, %s107
    %s110 = sphi 0, %s109
    %s124 = sphi 0, %s110
    %s128 = sphi 0, %s128
    %s130 = sphi 0, %s128
    %s131 = sphi 0, %s130
    %s145 = sphi 0, %s131
    %s149 = sphi 0, %s149
    %s151 = sphi 0, %s149
    %s152 = sphi 0, %s151
    %s166 = sphi 0, %s152
    %s170 = sphi 0, %s170
    %s172 = sphi 0, %s170
    %s173 = sphi 0, %s172
    %s187 = sphi 0, %s173
    %s191 = sphi 0, %s191
    %s193 = sphi 0, %s191
    %s194 = sphi 0, %s193
    %s208 = sphi 0, %s194
    %s216 = sphi 0, %s218
    %s219 = sphi 0, %s216
    %s220 = sphi 0, %s219
    %s236 = sphi 0, %s220
  $region4: #{temp_mp_forward.6} parent=0 // loop_header_branch
    %17 = sbr.rel (%p15) target = $region8
  $region5: #{temp_mp_forward.6} parent=0 // loop_body
    %s19 = ssub.s32 %s14, 1
    %s20 = ssub.s32 %s14, 2
    %s27 = sadd.s32 1, %s22
    %p28 = scmp.ge.s32.totalorder %s27, 1
    %s29 = scalar_select %p28, 0, %s27
    %s30 = sadd.s32 1, %s21
    %s31 = scalar_select %p28, %s30, %s21
    %p32 = scmp.ge.s32.totalorder %s31, 2
    %s33 = scalar_select %p32, 0, %s31
    %s34 = ssub.s32 %s22, %s29
    %p35 = scmp.eq.s32.totalorder %s34, 0
    %s37 = sadd.s32 %s36, 1
    %s38 = scalar_select %p35, %s36, %s37
    %p41 = pneg %p35
    %p42 = scmp.eq.s32.totalorder %s14, 1
    %p43 = por %p41, %p42
    %p44 = scmp.ne.s32.totalorder %s36, %s39
    %p45 = scmp.eq.s32.totalorder %s14, 0
    %p46 = por %p44, %p45
    %p47 = scmp.ne.s32.totalorder %s36, %s39
    %p48 = scmp.eq.s32.totalorder %s19, 1
    %p49 = por %p47, %p48
    %p50 = scmp.ne.s32.totalorder %s39, %s40
    %p51 = scmp.eq.s32.totalorder %s19, 0
    %p52 = por %p50, %p51
    %p53 = scmp.ne.s32.totalorder %s39, %s40
    %p54 = scmp.eq.s32.totalorder %s20, 1
    %p55 = por %p53, %p54
    %p57 = scmp.ne.s32.totalorder %s40, %s56
    %p58 = scmp.eq.s32.totalorder %s20, 0
    %p59 = por %p57, %p58
    %s60 = ssub.s32 %s21, %s33
    %p61 = scmp.eq.s32.totalorder %s60, 0
    %s63 = sadd.s32 %s62, 1
    %s64 = scalar_select %p61, %s62, %s63
    %p67 = pneg %p61
    %p68 = scmp.eq.s32.totalorder %s14, 1
    %p69 = por %p67, %p68
    %p70 = scmp.ne.s32.totalorder %s62, %s65
    %p71 = scmp.eq.s32.totalorder %s14, 0
    %p72 = por %p70, %p71
    %p73 = scmp.ne.s32.totalorder %s62, %s65
    %p74 = scmp.eq.s32.totalorder %s19, 1
    %p75 = por %p73, %p74
    %p76 = scmp.ne.s32.totalorder %s65, %s66
    %p77 = scmp.eq.s32.totalorder %s19, 0
    %p78 = por %p76, %p77
    %p79 = scmp.ne.s32.totalorder %s65, %s66
    %p80 = scmp.eq.s32.totalorder %s20, 1
    %p81 = por %p79, %p80
    %p83 = scmp.ne.s32.totalorder %s66, %s82
    %p84 = scmp.eq.s32.totalorder %s20, 0
    %p85 = por %p83, %p84
    %s87 = sadd.s32 %s86, 1
    %p90 = scmp.eq.s32.totalorder %s14, 1
    %p91 = scmp.ne.s32.totalorder %s86, %s88
    %p92 = scmp.eq.s32.totalorder %s14, 0
    %p93 = por %p91, %p92
    %p94 = scmp.ne.s32.totalorder %s86, %s88
    %p95 = scmp.eq.s32.totalorder %s19, 1
    %p96 = por %p94, %p95
    %p97 = scmp.ne.s32.totalorder %s88, %s89
    %p98 = scmp.eq.s32.totalorder %s19, 0
    %p99 = por %p97, %p98
    %p100 = scmp.ne.s32.totalorder %s88, %s89
    %p101 = scmp.eq.s32.totalorder %s20, 1
    %p102 = por %p100, %p101
    %p104 = scmp.ne.s32.totalorder %s89, %s103
    %p105 = scmp.eq.s32.totalorder %s20, 0
    %p106 = por %p104, %p105
    %s108 = sadd.s32 %s107, 1
    %p111 = scmp.eq.s32.totalorder %s14, 1
    %p112 = scmp.ne.s32.totalorder %s107, %s109
    %p113 = scmp.eq.s32.totalorder %s14, 0
    %p114 = por %p112, %p113
    %p115 = scmp.ne.s32.totalorder %s107, %s109
    %p116 = scmp.eq.s32.totalorder %s19, 1
    %p117 = por %p115, %p116
    %p118 = scmp.ne.s32.totalorder %s109, %s110
    %p119 = scmp.eq.s32.totalorder %s19, 0
    %p120 = por %p118, %p119
    %p121 = scmp.ne.s32.totalorder %s109, %s110
    %p122 = scmp.eq.s32.totalorder %s20, 1
    %p123 = por %p121, %p122
    %p125 = scmp.ne.s32.totalorder %s110, %s124
    %p126 = scmp.eq.s32.totalorder %s20, 0
    %p127 = por %p125, %p126
    %s129 = sadd.s32 %s128, 1
    %p132 = scmp.eq.s32.totalorder %s14, 1
    %p133 = scmp.ne.s32.totalorder %s128, %s130
    %p134 = scmp.eq.s32.totalorder %s14, 0
    %p135 = por %p133, %p134
    %p136 = scmp.ne.s32.totalorder %s128, %s130
    %p137 = scmp.eq.s32.totalorder %s19, 1
    %p138 = por %p136, %p137
    %p139 = scmp.ne.s32.totalorder %s130, %s131
    %p140 = scmp.eq.s32.totalorder %s19, 0
    %p141 = por %p139, %p140
    %p142 = scmp.ne.s32.totalorder %s130, %s131
    %p143 = scmp.eq.s32.totalorder %s20, 1
    %p144 = por %p142, %p143
    %p146 = scmp.ne.s32.totalorder %s131, %s145
    %p147 = scmp.eq.s32.totalorder %s20, 0
    %p148 = por %p146, %p147
    %s150 = sadd.s32 %s149, 1
    %p153 = scmp.eq.s32.totalorder %s14, 1
    %p154 = scmp.ne.s32.totalorder %s149, %s151
    %p155 = scmp.eq.s32.totalorder %s14, 0
    %p156 = por %p154, %p155
    %p157 = scmp.ne.s32.totalorder %s149, %s151
    %p158 = scmp.eq.s32.totalorder %s19, 1
    %p159 = por %p157, %p158
    %p160 = scmp.ne.s32.totalorder %s151, %s152
    %p161 = scmp.eq.s32.totalorder %s19, 0
    %p162 = por %p160, %p161
    %p163 = scmp.ne.s32.totalorder %s151, %s152
    %p164 = scmp.eq.s32.totalorder %s20, 1
    %p165 = por %p163, %p164
    %p167 = scmp.ne.s32.totalorder %s152, %s166
    %p168 = scmp.eq.s32.totalorder %s20, 0
    %p169 = por %p167, %p168
    %s171 = sadd.s32 %s170, 1
    %p174 = scmp.eq.s32.totalorder %s14, 1
    %p175 = scmp.ne.s32.totalorder %s170, %s172
    %p176 = scmp.eq.s32.totalorder %s14, 0
    %p177 = por %p175, %p176
    %p178 = scmp.ne.s32.totalorder %s170, %s172
    %p179 = scmp.eq.s32.totalorder %s19, 1
    %p180 = por %p178, %p179
    %p181 = scmp.ne.s32.totalorder %s172, %s173
    %p182 = scmp.eq.s32.totalorder %s19, 0
    %p183 = por %p181, %p182
    %p184 = scmp.ne.s32.totalorder %s172, %s173
    %p185 = scmp.eq.s32.totalorder %s20, 1
    %p186 = por %p184, %p185
    %p188 = scmp.ne.s32.totalorder %s173, %s187
    %p189 = scmp.eq.s32.totalorder %s20, 0
    %p190 = por %p188, %p189
    %s192 = sadd.s32 %s191, 1
    %p195 = scmp.eq.s32.totalorder %s14, 1
    %p196 = scmp.ne.s32.totalorder %s191, %s193
    %p197 = scmp.eq.s32.totalorder %s14, 0
    %p198 = por %p196, %p197
    %p199 = scmp.ne.s32.totalorder %s191, %s193
    %p200 = scmp.eq.s32.totalorder %s19, 1
    %p201 = por %p199, %p200
    %p202 = scmp.ne.s32.totalorder %s193, %s194
    %p203 = scmp.eq.s32.totalorder %s19, 0
    %p204 = por %p202, %p203
    %p205 = scmp.ne.s32.totalorder %s193, %s194
    %p206 = scmp.eq.s32.totalorder %s20, 1
    %p207 = por %p205, %p206
    %p209 = scmp.ne.s32.totalorder %s194, %s208
    %p210 = scmp.eq.s32.totalorder %s20, 0
    %p211 = por %p209, %p210
    %s212 = ssub.s32 %s21, %s33
    %s213 = ssub.s32 %s22, %s29
    %s214 = sor.u32 %s212, %s213
    %p215 = scmp.eq.s32.totalorder %s214, 0
    %s217 = sadd.s32 %s216, 1
    %s218 = scalar_select %p215, %s216, %s217
    %p221 = pneg %p215
    %p222 = scmp.eq.s32.totalorder %s14, 1
    %p223 = por %p221, %p222
    %p224 = scmp.ne.s32.totalorder %s216, %s219
    %p225 = scmp.eq.s32.totalorder %s14, 0
    %p226 = por %p224, %p225
    %p227 = scmp.ne.s32.totalorder %s216, %s219
    %p228 = scmp.eq.s32.totalorder %s19, 1
    %p229 = por %p227, %p228
    %p230 = scmp.ne.s32.totalorder %s219, %s220
    %p231 = scmp.eq.s32.totalorder %s19, 0
    %p232 = por %p230, %p231
    %p233 = scmp.ne.s32.totalorder %s219, %s220
    %p234 = scmp.eq.s32.totalorder %s20, 1
    %p235 = por %p233, %p234
    %p237 = scmp.ne.s32.totalorder %s220, %s236
    %p238 = scmp.eq.s32.totalorder %s20, 0
    %p239 = por %p237, %p238
    %p240 = scmp.le.s32.totalorder 1, %s14
    %p241 = scmp.lt.s32.totalorder %s14, 3
    %p242 = pnand %p240, %p241
    %p243 = pneg %p242
    // Predicated region
    $region9: #{temp_mp_forward.6} parent=5 // pred_check
      _
    $region10: #{temp_mp_forward.6} parent=5 // pred_check_branch
      %245 = sbr.rel (%p242) target = $region12
    $region11: #{temp_mp_forward.6} parent=5 // pred_region
      %s246 = ssub.s32 %s14, 1
      // Predicated region
      $region13: #{temp_mp_forward.6} parent=11 // pred_check
        %p247 = pneg %p52
      $region14: #{temp_mp_forward.6} parent=11 // pred_check_branch
        %249 = sbr.rel (%p247) target = $region16
      $region15: #{temp_mp_forward.6} parent=11 // pred_region
        %p250 = scmp.lt.s32.totalorder %s24, 0
        %s251 = scalar_select %p250, %s24, 0
        %s252 = smul.addr %s251, 8
        %s253 = scalar_lea.vmem %s0, %s252
      $region16: #{temp_mp_forward.6} parent=11 // pred_fallthru
        _
      // Predicated region
      $region17: #{temp_mp_forward.6} parent=11 // pred_check
        %p254 = pneg %p99
      $region18: #{temp_mp_forward.6} parent=11 // pred_check_branch
        %256 = sbr.rel (%p254) target = $region20
      $region19: #{temp_mp_forward.6} parent=11 // pred_region
        _
      $region20: #{temp_mp_forward.6} parent=11 // pred_fallthru
        _
      // Predicated region
      $region21: #{temp_mp_forward.6} parent=11 // pred_check
        %p257 = pneg %p120
      $region22: #{temp_mp_forward.6} parent=11 // pred_check_branch
        %259 = sbr.rel (%p257) target = $region24
      $region23: #{temp_mp_forward.6} parent=11 // pred_region
        _
      $region24: #{temp_mp_forward.6} parent=11 // pred_fallthru
        _
      // Predicated region
      $region25: #{temp_mp_forward.6} parent=11 // pred_check
        %p260 = pneg %p141
      $region26: #{temp_mp_forward.6} parent=11 // pred_check_branch
        %262 = sbr.rel (%p260) target = $region28
      $region27: #{temp_mp_forward.6} parent=11 // pred_region
        _
      $region28: #{temp_mp_forward.6} parent=11 // pred_fallthru
        _
      // Predicated region
      $region29: #{temp_mp_forward.6} parent=11 // pred_check
        %p263 = pneg %p162
      $region30: #{temp_mp_forward.6} parent=11 // pred_check_branch
        %265 = sbr.rel (%p263) target = $region32
      $region31: #{temp_mp_forward.6} parent=11 // pred_region
        _
      $region32: #{temp_mp_forward.6} parent=11 // pred_fallthru
        _
      // Predicated region
      $region33: #{temp_mp_forward.6} parent=11 // pred_check
        %p266 = pneg %p183
      $region34: #{temp_mp_forward.6} parent=11 // pred_check_branch
        %268 = sbr.rel (%p266) target = $region36
      $region35: #{temp_mp_forward.6} parent=11 // pred_region
        _
      $region36: #{temp_mp_forward.6} parent=11 // pred_fallthru
        _
      // Predicated region
      $region37: #{temp_mp_forward.6} parent=11 // pred_check
        %p269 = pneg %p204
      $region38: #{temp_mp_forward.6} parent=11 // pred_check_branch
        %271 = sbr.rel (%p269) target = $region40
      $region39: #{temp_mp_forward.6} parent=11 // pred_region
        _
      $region40: #{temp_mp_forward.6} parent=11 // pred_fallthru
        _
    $region12: #{temp_mp_forward.6} parent=5 // pred_fallthru
      _
    %p272 = scmp.lt.s32.totalorder %s14, 2
    // Predicated region
    $region41: #{temp_mp_forward.6} parent=5 // pred_check
      %p273 = pneg %p272
    $region42: #{temp_mp_forward.6} parent=5 // pred_check_branch
      %275 = sbr.rel (%p273) target = $region44
    $region43: #{temp_mp_forward.6} parent=5 // pred_region
      // Predicated region
      $region45: #{temp_mp_forward.6} parent=43 // pred_check
        %p276 = pneg %p72
      $region46: #{temp_mp_forward.6} parent=43 // pred_check_branch
        %278 = sbr.rel (%p276) target = $region48
      $region47: #{temp_mp_forward.6} parent=43 // pred_region
        %p279 = scmp.lt.s32.totalorder %s21, 1
        %s280 = scalar_select %p279, %s21, 1
        %s281 = smul.addr %s280, 3
        %s282 = smul.addr %s281, 8
        %s283 = scalar_lea.vmem %s1, %s282
      $region48: #{temp_mp_forward.6} parent=43 // pred_fallthru
        _
    $region44: #{temp_mp_forward.6} parent=5 // pred_fallthru
      _
    %p284 = scmp.le.s32.totalorder 1, %s14
    %p285 = scmp.lt.s32.totalorder %s14, 3
    %p286 = pnand %p284, %p285
    %p287 = pneg %p286
    // Predicated region
    $region49: #{temp_mp_forward.6} parent=5 // pred_check
      _
    $region50: #{temp_mp_forward.6} parent=5 // pred_check_branch
      %289 = sbr.rel (%p286) target = $region52
    $region51: #{temp_mp_forward.6} parent=5 // pred_region
      %s290 = ssub.s32 %s14, 1
      %p291 = scmp.lt.s32.totalorder %s24, 0
      %s292 = scalar_select %p291, %s24, 0
      %s293 = smul.addr %s292, 8
      %s294 = scalar_lea.vmem %s0, %s293
      %p295 = pneg %p52
      %p296 = pneg %p49
      %p297 = scmp.lt.s32.totalorder %s23, 1
      %s298 = scalar_select %p297, %s23, 1
      %s299 = smul.addr %s298, 3
      %s300 = smul.addr %s299, 8
      %s301 = scalar_lea.vmem %s1, %s300
      %p302 = pneg %p78
      %p303 = pneg %p75
      %p304 = pneg %p99
      %p305 = pneg %p96
      %p306 = pneg %p120
      %p307 = pneg %p117
      %p308 = pneg %p141
      %p309 = pneg %p138
      %p310 = pneg %p162
      %p311 = pneg %p159
      %p312 = pneg %p183
      %p313 = pneg %p180
      %p314 = pneg %p204
      %p315 = pneg %p201
      %p316 = pneg %p232
      %p317 = pneg %p229
      %p318 = scmp.lt.s32.totalorder %s23, 1
      %s319 = scalar_select %p318, %s23, 1
      %p320 = scmp.lt.s32.totalorder %s24, 0
      %s321 = scalar_select %p320, %s24, 0
      %s322 = sadd.s32 %s321, %s319
      %s323 = smul.addr %s322, 8
      %s324 = scalar_lea.vmem %s8, %s323
      %p325 = scmp.lt.s32.totalorder %s24, 0
      %s326 = scalar_select %p325, %s24, 0
      %s327 = smul.addr %s326, 8
      %s328 = scalar_lea.vmem %s0, %s327
      %p329 = scmp.lt.s32.totalorder %s23, 1
      %s330 = scalar_select %p329, %s23, 1
      %s331 = smul.addr %s330, 3
      %s332 = smul.addr %s331, 8
      %s333 = scalar_lea.vmem %s1, %s332
      %p334 = scmp.lt.s32.totalorder %s23, 1
      %s335 = scalar_select %p334, %s23, 1
      %p336 = scmp.lt.s32.totalorder %s24, 0
      %s337 = scalar_select %p336, %s24, 0
      %s338 = sadd.s32 %s337, %s335
      %s339 = smul.addr %s338, 8
      %s340 = scalar_lea.vmem %s8, %s339
      %v341 = vld [vmem:[%s328] sm:$0x1f]
      %v342 = vld [vmem:[%s333] sm:$0xff]
      %v343 = vld [vmem:[%s333 + $0x8] sm:$0xff]
      %v344 = vld [vmem:[%s333 + $0x10] sm:$0xf]
      %vm345 = vcmask 162816
      %v347 = vsel %vm345, %v341, 0
      %vm349 = vcmask 1043456
      %v351 = vsel %vm349, %v344, 0
      %353 = vmatprep.subr.mxu0 0.0
      %354 = vmatpush1.msra.mxu0 0.0
      %355 = vmatprep.subr.mxu0 0.0
      %356 = vmatpush1.msra.mxu0 0.0
      %357 = vmatprep.subr.mxu0 0.0
      %358 = vmatpush1.msra.mxu0 0.0
      %359 = vmatprep.subr.mxu0 0.0
      %360 = vmatpush1.msra.mxu0 0.0
      %361 = vmatprep.subr.mxu0 0.0
      %362 = vmatpush1.msra.mxu0 0.0
      %363 = vmatprep.subr.mxu0 0.0
      %364 = vmatpush1.msra.mxu0 0.0
      %365 = vmatprep.subr.mxu0 0.0
      %366 = vmatpush1.msra.mxu0 0.0
      %367 = vmatprep.subr.mxu0 0.0
      %368 = vmatpush1.msra.mxu0 0.0
      %369 = vmatprep.subr.mxu0 0.0
      %370 = vmatpush1.msra.mxu0 0.0
      %371 = vmatprep.subr.mxu0 0.0
      %372 = vmatpush1.msra.mxu0 0.0
      %373 = vmatprep.subr.mxu0 0.0
      %374 = vmatpush1.msra.mxu0 0.0
      %375 = vmatprep.subr.mxu0 0.0
      %376 = vmatpush1.msra.mxu0 0.0
      %377 = vmatprep.subr.mxu0 0.0
      %378 = vmatpush1.msra.mxu0 0.0
      %379 = vmatprep.subr.mxu0 0.0
      %380 = vmatpush1.msra.mxu0 %v351
      %381 = vmatprep.subr.mxu0 0.0
      %382 = vmatpush1.msra.mxu0 %v343
      %383 = vmatprep.subr.mxu0 0.0
      %384 = vmatpush1.msra.mxu0 %v342
      %385 = vmatprep.subr.mxu0 0.0
      %386 = vmatpush2.msra.mxu0 0.0
      %387 = vmatprep.subr.mxu0 0.0
      %388 = vmatpush2.msra.mxu0 0.0
      %389 = vmatprep.subr.mxu0 0.0
      %390 = vmatpush2.msra.mxu0 0.0
      %391 = vmatprep.subr.mxu0 0.0
      %392 = vmatpush2.msra.mxu0 0.0
      %393 = vmatprep.subr.mxu0 0.0
      %394 = vmatpush2.msra.mxu0 0.0
      %395 = vmatprep.subr.mxu0 0.0
      %396 = vmatpush2.msra.mxu0 0.0
      %397 = vmatprep.subr.mxu0 0.0
      %398 = vmatpush2.msra.mxu0 0.0
      %399 = vmatprep.subr.mxu0 0.0
      %400 = vmatpush2.msra.mxu0 0.0
      %401 = vmatprep.subr.mxu0 0.0
      %402 = vmatpush2.msra.mxu0 0.0
      %403 = vmatprep.subr.mxu0 0.0
      %404 = vmatpush2.msra.mxu0 0.0
      %405 = vmatprep.subr.mxu0 0.0
      %406 = vmatpush2.msra.mxu0 0.0
      %407 = vmatprep.subr.mxu0 0.0
      %408 = vmatpush2.msra.mxu0 0.0
      %409 = vmatprep.subr.mxu0 0.0
      %410 = vmatpush2.msra.mxu0 0.0
      %411 = vmatprep.subr.mxu0 0.0
      %412 = vmatpush2.msra.mxu0 0.0
      %413 = vmatprep.subr.mxu0 0.0
      %414 = vmatpush2.msra.mxu0 0.0
      %415 = vmatprep.subr.mxu0 0.0
      %416 = vmatpush2.msra.mxu0 0.0
      %417 = vmatprep.mubr.f32.mxu0 0.0
      %418 = vmatmul.mubr.f32.gmra.mxu0 %v347
      %v419 = vpop.f32.mrf.mxu0
      %v420 = vadd.f32 0.0, %v419
      %v421 = vpop.f32.mrf.mxu0
      %422 = vdwg.mxu0
      %v423 = vld [vmem:[%s2] sm:$0xff]
      %v424 = vld [vmem:[%s2 + $0x8] sm:$0xff]
      %v425 = vld [vmem:[%s2 + $0x10] sm:$0xff]
      %v426 = vld [vmem:[%s2 + $0x18] sm:$0xff]
      %v427 = vld [vmem:[%s3] sm:$0x1]
      %v429 = vlaneseq
      %v430 = vshrl.u32 %v429, 7
      %v431 = vsub.s32 0, %v430
      %v432 = vrot.slane %v427, %v431
      %vm434 = vcmask 261120
      %v436 = vsel %vm434, %v420, 0
      %438 = vmatprep.subr.mxu0 0.0
      %439 = vmatpush1.msra.mxu0 0.0
      %440 = vmatprep.subr.mxu0 0.0
      %441 = vmatpush1.msra.mxu0 0.0
      %442 = vmatprep.subr.mxu0 0.0
      %443 = vmatpush1.msra.mxu0 0.0
      %444 = vmatprep.subr.mxu0 0.0
      %445 = vmatpush1.msra.mxu0 0.0
      %446 = vmatprep.subr.mxu0 0.0
      %447 = vmatpush1.msra.mxu0 0.0
      %448 = vmatprep.subr.mxu0 0.0
      %449 = vmatpush1.msra.mxu0 0.0
      %450 = vmatprep.subr.mxu0 0.0
      %451 = vmatpush1.msra.mxu0 0.0
      %452 = vmatprep.subr.mxu0 0.0
      %453 = vmatpush1.msra.mxu0 0.0
      %454 = vmatprep.subr.mxu0 0.0
      %455 = vmatpush1.msra.mxu0 0.0
      %456 = vmatprep.subr.mxu0 0.0
      %457 = vmatpush1.msra.mxu0 0.0
      %458 = vmatprep.subr.mxu0 0.0
      %459 = vmatpush1.msra.mxu0 0.0
      %460 = vmatprep.subr.mxu0 0.0
      %461 = vmatpush1.msra.mxu0 0.0
      %462 = vmatprep.subr.mxu0 0.0
      %463 = vmatpush1.msra.mxu0 %v426
      %464 = vmatprep.subr.mxu0 0.0
      %465 = vmatpush1.msra.mxu0 %v425
      %466 = vmatprep.subr.mxu0 0.0
      %467 = vmatpush1.msra.mxu0 %v424
      %468 = vmatprep.subr.mxu0 0.0
      %469 = vmatpush1.msra.mxu0 %v423
      %470 = vmatprep.subr.mxu0 0.0
      %471 = vmatpush2.msra.mxu0 0.0
      %472 = vmatprep.subr.mxu0 0.0
      %473 = vmatpush2.msra.mxu0 0.0
      %474 = vmatprep.subr.mxu0 0.0
      %475 = vmatpush2.msra.mxu0 0.0
      %476 = vmatprep.subr.mxu0 0.0
      %477 = vmatpush2.msra.mxu0 0.0
      %478 = vmatprep.subr.mxu0 0.0
      %479 = vmatpush2.msra.mxu0 0.0
      %480 = vmatprep.subr.mxu0 0.0
      %481 = vmatpush2.msra.mxu0 0.0
      %482 = vmatprep.subr.mxu0 0.0
      %483 = vmatpush2.msra.mxu0 0.0
      %484 = vmatprep.subr.mxu0 0.0
      %485 = vmatpush2.msra.mxu0 0.0
      %486 = vmatprep.subr.mxu0 0.0
      %487 = vmatpush2.msra.mxu0 0.0
      %488 = vmatprep.subr.mxu0 0.0
      %489 = vmatpush2.msra.mxu0 0.0
      %490 = vmatprep.subr.mxu0 0.0
      %491 = vmatpush2.msra.mxu0 0.0
      %492 = vmatprep.subr.mxu0 0.0
      %493 = vmatpush2.msra.mxu0 0.0
      %494 = vmatprep.subr.mxu0 0.0
      %495 = vmatpush2.msra.mxu0 0.0
      %496 = vmatprep.subr.mxu0 0.0
      %497 = vmatpush2.msra.mxu0 0.0
      %498 = vmatprep.subr.mxu0 0.0
      %499 = vmatpush2.msra.mxu0 0.0
      %500 = vmatprep.subr.mxu0 0.0
      %501 = vmatpush2.msra.mxu0 0.0
      %502 = vmatprep.mubr.f32.mxu0 0.0
      %503 = vmatmul.mubr.f32.gmra.mxu0 %v436
      %v504 = vpop.f32.mrf.mxu0
      %v505 = vadd.f32 %v432, %v504
      %v506 = vpop.f32.mrf.mxu0
      %507 = vdwg.mxu0
      %vm508 = vcmp.gt.f32.partialorder %v505, 0.0
      %v509 = vmin.f32 %v505, 0.0
      %v510 = vmul.f32 %v509, 1.442695
      %v511 = vpow.pop %v510
      %v512 = vsub.f32 %v511, 1.0
      %v513 = vsel %vm508, %v505, %v512
      %v514 = vld [vmem:[%s4] sm:$0xff]
      %v515 = vld [vmem:[%s4 + $0x8] sm:$0xff]
      %v516 = vld [vmem:[%s4 + $0x10] sm:$0xff]
      %v517 = vld [vmem:[%s4 + $0x18] sm:$0xff]
      %v518 = vld [vmem:[%s5] sm:$0x1]
      %v520 = vlaneseq
      %v521 = vshrl.u32 %v520, 7
      %v522 = vsub.s32 0, %v521
      %v523 = vrot.slane %v518, %v522
      %v526 = vsel %vm434, %v513, 0
      %528 = vmatprep.subr.mxu0 0.0
      %529 = vmatpush1.msra.mxu0 0.0
      %530 = vmatprep.subr.mxu0 0.0
      %531 = vmatpush1.msra.mxu0 0.0
      %532 = vmatprep.subr.mxu0 0.0
      %533 = vmatpush1.msra.mxu0 0.0
      %534 = vmatprep.subr.mxu0 0.0
      %535 = vmatpush1.msra.mxu0 0.0
      %536 = vmatprep.subr.mxu0 0.0
      %537 = vmatpush1.msra.mxu0 0.0
      %538 = vmatprep.subr.mxu0 0.0
      %539 = vmatpush1.msra.mxu0 0.0
      %540 = vmatprep.subr.mxu0 0.0
      %541 = vmatpush1.msra.mxu0 0.0
      %542 = vmatprep.subr.mxu0 0.0
      %543 = vmatpush1.msra.mxu0 0.0
      %544 = vmatprep.subr.mxu0 0.0
      %545 = vmatpush1.msra.mxu0 0.0
      %546 = vmatprep.subr.mxu0 0.0
      %547 = vmatpush1.msra.mxu0 0.0
      %548 = vmatprep.subr.mxu0 0.0
      %549 = vmatpush1.msra.mxu0 0.0
      %550 = vmatprep.subr.mxu0 0.0
      %551 = vmatpush1.msra.mxu0 0.0
      %552 = vmatprep.subr.mxu0 0.0
      %553 = vmatpush1.msra.mxu0 %v517
      %554 = vmatprep.subr.mxu0 0.0
      %555 = vmatpush1.msra.mxu0 %v516
      %556 = vmatprep.subr.mxu0 0.0
      %557 = vmatpush1.msra.mxu0 %v515
      %558 = vmatprep.subr.mxu0 0.0
      %559 = vmatpush1.msra.mxu0 %v514
      %560 = vmatprep.subr.mxu0 0.0
      %561 = vmatpush2.msra.mxu0 0.0
      %562 = vmatprep.subr.mxu0 0.0
      %563 = vmatpush2.msra.mxu0 0.0
      %564 = vmatprep.subr.mxu0 0.0
      %565 = vmatpush2.msra.mxu0 0.0
      %566 = vmatprep.subr.mxu0 0.0
      %567 = vmatpush2.msra.mxu0 0.0
      %568 = vmatprep.subr.mxu0 0.0
      %569 = vmatpush2.msra.mxu0 0.0
      %570 = vmatprep.subr.mxu0 0.0
      %571 = vmatpush2.msra.mxu0 0.0
      %572 = vmatprep.subr.mxu0 0.0
      %573 = vmatpush2.msra.mxu0 0.0
      %574 = vmatprep.subr.mxu0 0.0
      %575 = vmatpush2.msra.mxu0 0.0
      %576 = vmatprep.subr.mxu0 0.0
      %577 = vmatpush2.msra.mxu0 0.0
      %578 = vmatprep.subr.mxu0 0.0
      %579 = vmatpush2.msra.mxu0 0.0
      %580 = vmatprep.subr.mxu0 0.0
      %581 = vmatpush2.msra.mxu0 0.0
      %582 = vmatprep.subr.mxu0 0.0
      %583 = vmatpush2.msra.mxu0 0.0
      %584 = vmatprep.subr.mxu0 0.0
      %585 = vmatpush2.msra.mxu0 0.0
      %586 = vmatprep.subr.mxu0 0.0
      %587 = vmatpush2.msra.mxu0 0.0
      %588 = vmatprep.subr.mxu0 0.0
      %589 = vmatpush2.msra.mxu0 0.0
      %590 = vmatprep.subr.mxu0 0.0
      %591 = vmatpush2.msra.mxu0 0.0
      %592 = vmatprep.mubr.f32.mxu0 0.0
      %593 = vmatmul.mubr.f32.gmra.mxu0 %v526
      %v594 = vpop.f32.mrf.mxu0
      %v595 = vadd.f32 %v523, %v594
      %v596 = vpop.f32.mrf.mxu0
      %597 = vdwg.mxu0
      %vm598 = vcmp.gt.f32.partialorder %v595, 0.0
      %v599 = vmin.f32 %v595, 0.0
      %v600 = vmul.f32 %v599, 1.442695
      %v601 = vpow.pop %v600
      %v602 = vsub.f32 %v601, 1.0
      %v603 = vsel %vm598, %v595, %v602
      %v604 = vld [vmem:[%s6] sm:$0x1]
      %v606 = vlaneseq
      %v607 = vshrl.u32 %v606, 7
      %v608 = vsub.s32 0, %v607
      %v609 = vrot.slane %v604, %v608
      %v611 = vmul.f32 %v603, %v609
      %v612 = vld [vmem:[%s7] sm:$0x1]
      %v614 = vlaneseq
      %v615 = vshrl.u32 %v614, 7
      %v616 = vsub.s32 0, %v615
      %v617 = vrot.slane %v612, %v616
      %v619 = vadd.f32 %v611, %v617
      %vm620 = vcmask 258048
      %621 = vst.msk [vmem:[%s340] sm:$0x1f] %vm620, %v619
      %p622 = scmp.lt.s32.totalorder %s23, 1
      %s623 = scalar_select %p622, %s23, 1
      %p624 = scmp.lt.s32.totalorder %s24, 0
      %s625 = scalar_select %p624, %s24, 0
      %s626 = sadd.s32 %s625, %s623
      %s627 = smul.addr %s626, 8
      %s628 = scalar_lea.vmem %s8, %s627
      // Predicated region
      $region53: #{temp_mp_forward.6} parent=51 // pred_check
        %p629 = pneg %p229
      $region54: #{temp_mp_forward.6} parent=51 // pred_check_branch
        %631 = sbr.rel (%p629) target = $region56
      $region55: #{temp_mp_forward.6} parent=51 // pred_region
        _
      $region56: #{temp_mp_forward.6} parent=51 // pred_fallthru
        _
    $region52: #{temp_mp_forward.6} parent=5 // pred_fallthru
      _
    %p632 = scmp.le.s32.totalorder 2, %s14
    // Predicated region
    $region57: #{temp_mp_forward.6} parent=5 // pred_check
      %p633 = pneg %p632
    $region58: #{temp_mp_forward.6} parent=5 // pred_check_branch
      %635 = sbr.rel (%p633) target = $region60
    $region59: #{temp_mp_forward.6} parent=5 // pred_region
      %s636 = ssub.s32 %s14, 2
      // Predicated region
      $region61: #{temp_mp_forward.6} parent=59 // pred_check
        %p637 = pneg %p235
      $region62: #{temp_mp_forward.6} parent=59 // pred_check_branch
        %639 = sbr.rel (%p637) target = $region64
      $region63: #{temp_mp_forward.6} parent=59 // pred_region
        %p640 = scmp.lt.s32.totalorder %s25, 1
        %s641 = scalar_select %p640, %s25, 1
        %p642 = scmp.lt.s32.totalorder %s26, 0
        %s643 = scalar_select %p642, %s26, 0
        %s644 = sadd.s32 %s643, %s641
        %s645 = smul.addr %s644, 8
        %s646 = scalar_lea.vmem %s8, %s645
      $region64: #{temp_mp_forward.6} parent=59 // pred_fallthru
        _
    $region60: #{temp_mp_forward.6} parent=5 // pred_fallthru
      _
  $region6: #{temp_mp_forward.6} parent=0 // loop_footer
    %s18 = sadd.s32 1, %s14
  $region7: #{temp_mp_forward.6} parent=0 // loop_footer_branch
    %13 = sbr.rel target = $region3
  $region8: #{temp_mp_forward.6} parent=0 // loop_exit
    _

// kernel: temp_mp_forward.5
$region0: #{temp_mp_forward.5}
  #allocation0 [shape = 'u32[]', space=smem, size = 0x4, offset = 0x4, fixed_abs, tag = 'smem constant byte address 0x4 - core index']
  #allocation1 [shape = 'u32[144,128]{1,0:T(1,128)}', space=vmem, size = 0x12000, scoped, tag = 'internal scratch']
  %s0 = inlined_call_operand.vmem [shape: f32[20,5], index: 0, kind: input, shape index: {}]
  %s1 = inlined_call_operand.vmem [shape: f32[20,5], index: 1, kind: input, shape index: {}]
  %s2 = inlined_call_operand.vmem [shape: f32[2,5,16], index: 2, kind: input, shape index: {}]
  %s3 = inlined_call_operand.vmem [shape: f32[16,32], index: 3, kind: input, shape index: {}]
  %s4 = inlined_call_operand.vmem [shape: f32[16,32], index: 4, kind: input, shape index: {}]
  %s5 = inlined_call_operand.vmem [shape: f32[1,32], index: 5, kind: input, shape index: {}]
  %s6 = inlined_call_operand.vmem [shape: f32[32,32], index: 6, kind: input, shape index: {}]
  %s7 = inlined_call_operand.vmem [shape: f32[1,32], index: 7, kind: input, shape index: {}]
  %s8 = inlined_call_operand.vmem [shape: f32[1,32], index: 8, kind: input, shape index: {}]
  %s9 = inlined_call_operand.vmem [shape: f32[1,32], index: 9, kind: input, shape index: {}]
  %s10 = inlined_call_operand.vmem [shape: f32[2,20,32], index: 10, kind: output, shape index: {}]
  %s11 = sld [smem:[#allocation0]]
  $region73: #{temp_mp_forward.5} parent=0
    _
  %s13 = ssub.s32 1, %s11
  %s14 = scalar_select 0, %s13, %s11
  loop: start=0, step=1, limit=4
  $region2: #{temp_mp_forward.5} parent=0 // loop_pre_header
    _
  $region3: #{temp_mp_forward.5} parent=0 // loop_header
    %s16 = sphi 0, %s20
    %p17 = scmp.ge.s32.totalorder %s16, 4
    %s23 = sphi 0, %s35
    %s24 = sphi 0, %s31
    %s25 = sphi 0, %s23
    %s26 = sphi 0, %s24
    %s27 = sphi 0, %s25
    %s28 = sphi 0, %s26
    %s38 = sphi 0, %s40
    %s41 = sphi 0, %s38
    %s42 = sphi 0, %s41
    %s58 = sphi 0, %s42
    %s64 = sphi 0, %s66
    %s67 = sphi 0, %s64
    %s68 = sphi 0, %s67
    %s84 = sphi 0, %s68
    %s90 = sphi 0, %s92
    %s93 = sphi 0, %s90
    %s94 = sphi 0, %s93
    %s110 = sphi 0, %s94
    %s114 = sphi 0, %s114
    %s116 = sphi 0, %s114
    %s117 = sphi 0, %s116
    %s131 = sphi 0, %s117
    %s135 = sphi 0, %s135
    %s137 = sphi 0, %s135
    %s138 = sphi 0, %s137
    %s152 = sphi 0, %s138
    %s156 = sphi 0, %s156
    %s158 = sphi 0, %s156
    %s159 = sphi 0, %s158
    %s173 = sphi 0, %s159
    %s177 = sphi 0, %s177
    %s179 = sphi 0, %s177
    %s180 = sphi 0, %s179
    %s194 = sphi 0, %s180
    %s198 = sphi 0, %s198
    %s200 = sphi 0, %s198
    %s201 = sphi 0, %s200
    %s215 = sphi 0, %s201
    %s219 = sphi 0, %s219
    %s221 = sphi 0, %s219
    %s222 = sphi 0, %s221
    %s236 = sphi 0, %s222
    %s240 = sphi 0, %s240
    %s242 = sphi 0, %s240
    %s243 = sphi 0, %s242
    %s257 = sphi 0, %s243
    %s265 = sphi 0, %s267
    %s268 = sphi 0, %s265
    %s269 = sphi 0, %s268
    %s285 = sphi 0, %s269
  $region4: #{temp_mp_forward.5} parent=0 // loop_header_branch
    %19 = sbr.rel (%p17) target = $region8
  $region5: #{temp_mp_forward.5} parent=0 // loop_body
    %s21 = ssub.s32 %s16, 1
    %s22 = ssub.s32 %s16, 2
    %s29 = sadd.s32 1, %s24
    %p30 = scmp.ge.s32.totalorder %s29, 1
    %s31 = scalar_select %p30, 0, %s29
    %s32 = sadd.s32 1, %s23
    %s33 = scalar_select %p30, %s32, %s23
    %p34 = scmp.ge.s32.totalorder %s33, 2
    %s35 = scalar_select %p34, 0, %s33
    %s36 = ssub.s32 %s24, %s31
    %p37 = scmp.eq.s32.totalorder %s36, 0
    %s39 = sadd.s32 %s38, 1
    %s40 = scalar_select %p37, %s38, %s39
    %p43 = pneg %p37
    %p44 = scmp.eq.s32.totalorder %s16, 1
    %p45 = por %p43, %p44
    %p46 = scmp.ne.s32.totalorder %s38, %s41
    %p47 = scmp.eq.s32.totalorder %s16, 0
    %p48 = por %p46, %p47
    %p49 = scmp.ne.s32.totalorder %s38, %s41
    %p50 = scmp.eq.s32.totalorder %s21, 1
    %p51 = por %p49, %p50
    %p52 = scmp.ne.s32.totalorder %s41, %s42
    %p53 = scmp.eq.s32.totalorder %s21, 0
    %p54 = por %p52, %p53
    %p55 = scmp.ne.s32.totalorder %s41, %s42
    %p56 = scmp.eq.s32.totalorder %s22, 1
    %p57 = por %p55, %p56
    %p59 = scmp.ne.s32.totalorder %s42, %s58
    %p60 = scmp.eq.s32.totalorder %s22, 0
    %p61 = por %p59, %p60
    %s62 = ssub.s32 %s24, %s31
    %p63 = scmp.eq.s32.totalorder %s62, 0
    %s65 = sadd.s32 %s64, 1
    %s66 = scalar_select %p63, %s64, %s65
    %p69 = pneg %p63
    %p70 = scmp.eq.s32.totalorder %s16, 1
    %p71 = por %p69, %p70
    %p72 = scmp.ne.s32.totalorder %s64, %s67
    %p73 = scmp.eq.s32.totalorder %s16, 0
    %p74 = por %p72, %p73
    %p75 = scmp.ne.s32.totalorder %s64, %s67
    %p76 = scmp.eq.s32.totalorder %s21, 1
    %p77 = por %p75, %p76
    %p78 = scmp.ne.s32.totalorder %s67, %s68
    %p79 = scmp.eq.s32.totalorder %s21, 0
    %p80 = por %p78, %p79
    %p81 = scmp.ne.s32.totalorder %s67, %s68
    %p82 = scmp.eq.s32.totalorder %s22, 1
    %p83 = por %p81, %p82
    %p85 = scmp.ne.s32.totalorder %s68, %s84
    %p86 = scmp.eq.s32.totalorder %s22, 0
    %p87 = por %p85, %p86
    %s88 = ssub.s32 %s23, %s35
    %p89 = scmp.eq.s32.totalorder %s88, 0
    %s91 = sadd.s32 %s90, 1
    %s92 = scalar_select %p89, %s90, %s91
    %p95 = pneg %p89
    %p96 = scmp.eq.s32.totalorder %s16, 1
    %p97 = por %p95, %p96
    %p98 = scmp.ne.s32.totalorder %s90, %s93
    %p99 = scmp.eq.s32.totalorder %s16, 0
    %p100 = por %p98, %p99
    %p101 = scmp.ne.s32.totalorder %s90, %s93
    %p102 = scmp.eq.s32.totalorder %s21, 1
    %p103 = por %p101, %p102
    %p104 = scmp.ne.s32.totalorder %s93, %s94
    %p105 = scmp.eq.s32.totalorder %s21, 0
    %p106 = por %p104, %p105
    %p107 = scmp.ne.s32.totalorder %s93, %s94
    %p108 = scmp.eq.s32.totalorder %s22, 1
    %p109 = por %p107, %p108
    %p111 = scmp.ne.s32.totalorder %s94, %s110
    %p112 = scmp.eq.s32.totalorder %s22, 0
    %p113 = por %p111, %p112
    %s115 = sadd.s32 %s114, 1
    %p118 = scmp.eq.s32.totalorder %s16, 1
    %p119 = scmp.ne.s32.totalorder %s114, %s116
    %p120 = scmp.eq.s32.totalorder %s16, 0
    %p121 = por %p119, %p120
    %p122 = scmp.ne.s32.totalorder %s114, %s116
    %p123 = scmp.eq.s32.totalorder %s21, 1
    %p124 = por %p122, %p123
    %p125 = scmp.ne.s32.totalorder %s116, %s117
    %p126 = scmp.eq.s32.totalorder %s21, 0
    %p127 = por %p125, %p126
    %p128 = scmp.ne.s32.totalorder %s116, %s117
    %p129 = scmp.eq.s32.totalorder %s22, 1
    %p130 = por %p128, %p129
    %p132 = scmp.ne.s32.totalorder %s117, %s131
    %p133 = scmp.eq.s32.totalorder %s22, 0
    %p134 = por %p132, %p133
    %s136 = sadd.s32 %s135, 1
    %p139 = scmp.eq.s32.totalorder %s16, 1
    %p140 = scmp.ne.s32.totalorder %s135, %s137
    %p141 = scmp.eq.s32.totalorder %s16, 0
    %p142 = por %p140, %p141
    %p143 = scmp.ne.s32.totalorder %s135, %s137
    %p144 = scmp.eq.s32.totalorder %s21, 1
    %p145 = por %p143, %p144
    %p146 = scmp.ne.s32.totalorder %s137, %s138
    %p147 = scmp.eq.s32.totalorder %s21, 0
    %p148 = por %p146, %p147
    %p149 = scmp.ne.s32.totalorder %s137, %s138
    %p150 = scmp.eq.s32.totalorder %s22, 1
    %p151 = por %p149, %p150
    %p153 = scmp.ne.s32.totalorder %s138, %s152
    %p154 = scmp.eq.s32.totalorder %s22, 0
    %p155 = por %p153, %p154
    %s157 = sadd.s32 %s156, 1
    %p160 = scmp.eq.s32.totalorder %s16, 1
    %p161 = scmp.ne.s32.totalorder %s156, %s158
    %p162 = scmp.eq.s32.totalorder %s16, 0
    %p163 = por %p161, %p162
    %p164 = scmp.ne.s32.totalorder %s156, %s158
    %p165 = scmp.eq.s32.totalorder %s21, 1
    %p166 = por %p164, %p165
    %p167 = scmp.ne.s32.totalorder %s158, %s159
    %p168 = scmp.eq.s32.totalorder %s21, 0
    %p169 = por %p167, %p168
    %p170 = scmp.ne.s32.totalorder %s158, %s159
    %p171 = scmp.eq.s32.totalorder %s22, 1
    %p172 = por %p170, %p171
    %p174 = scmp.ne.s32.totalorder %s159, %s173
    %p175 = scmp.eq.s32.totalorder %s22, 0
    %p176 = por %p174, %p175
    %s178 = sadd.s32 %s177, 1
    %p181 = scmp.eq.s32.totalorder %s16, 1
    %p182 = scmp.ne.s32.totalorder %s177, %s179
    %p183 = scmp.eq.s32.totalorder %s16, 0
    %p184 = por %p182, %p183
    %p185 = scmp.ne.s32.totalorder %s177, %s179
    %p186 = scmp.eq.s32.totalorder %s21, 1
    %p187 = por %p185, %p186
    %p188 = scmp.ne.s32.totalorder %s179, %s180
    %p189 = scmp.eq.s32.totalorder %s21, 0
    %p190 = por %p188, %p189
    %p191 = scmp.ne.s32.totalorder %s179, %s180
    %p192 = scmp.eq.s32.totalorder %s22, 1
    %p193 = por %p191, %p192
    %p195 = scmp.ne.s32.totalorder %s180, %s194
    %p196 = scmp.eq.s32.totalorder %s22, 0
    %p197 = por %p195, %p196
    %s199 = sadd.s32 %s198, 1
    %p202 = scmp.eq.s32.totalorder %s16, 1
    %p203 = scmp.ne.s32.totalorder %s198, %s200
    %p204 = scmp.eq.s32.totalorder %s16, 0
    %p205 = por %p203, %p204
    %p206 = scmp.ne.s32.totalorder %s198, %s200
    %p207 = scmp.eq.s32.totalorder %s21, 1
    %p208 = por %p206, %p207
    %p209 = scmp.ne.s32.totalorder %s200, %s201
    %p210 = scmp.eq.s32.totalorder %s21, 0
    %p211 = por %p209, %p210
    %p212 = scmp.ne.s32.totalorder %s200, %s201
    %p213 = scmp.eq.s32.totalorder %s22, 1
    %p214 = por %p212, %p213
    %p216 = scmp.ne.s32.totalorder %s201, %s215
    %p217 = scmp.eq.s32.totalorder %s22, 0
    %p218 = por %p216, %p217
    %s220 = sadd.s32 %s219, 1
    %p223 = scmp.eq.s32.totalorder %s16, 1
    %p224 = scmp.ne.s32.totalorder %s219, %s221
    %p225 = scmp.eq.s32.totalorder %s16, 0
    %p226 = por %p224, %p225
    %p227 = scmp.ne.s32.totalorder %s219, %s221
    %p228 = scmp.eq.s32.totalorder %s21, 1
    %p229 = por %p227, %p228
    %p230 = scmp.ne.s32.totalorder %s221, %s222
    %p231 = scmp.eq.s32.totalorder %s21, 0
    %p232 = por %p230, %p231
    %p233 = scmp.ne.s32.totalorder %s221, %s222
    %p234 = scmp.eq.s32.totalorder %s22, 1
    %p235 = por %p233, %p234
    %p237 = scmp.ne.s32.totalorder %s222, %s236
    %p238 = scmp.eq.s32.totalorder %s22, 0
    %p239 = por %p237, %p238
    %s241 = sadd.s32 %s240, 1
    %p244 = scmp.eq.s32.totalorder %s16, 1
    %p245 = scmp.ne.s32.totalorder %s240, %s242
    %p246 = scmp.eq.s32.totalorder %s16, 0
    %p247 = por %p245, %p246
    %p248 = scmp.ne.s32.totalorder %s240, %s242
    %p249 = scmp.eq.s32.totalorder %s21, 1
    %p250 = por %p248, %p249
    %p251 = scmp.ne.s32.totalorder %s242, %s243
    %p252 = scmp.eq.s32.totalorder %s21, 0
    %p253 = por %p251, %p252
    %p254 = scmp.ne.s32.totalorder %s242, %s243
    %p255 = scmp.eq.s32.totalorder %s22, 1
    %p256 = por %p254, %p255
    %p258 = scmp.ne.s32.totalorder %s243, %s257
    %p259 = scmp.eq.s32.totalorder %s22, 0
    %p260 = por %p258, %p259
    %s261 = ssub.s32 %s23, %s35
    %s262 = ssub.s32 %s24, %s31
    %s263 = sor.u32 %s261, %s262
    %p264 = scmp.eq.s32.totalorder %s263, 0
    %s266 = sadd.s32 %s265, 1
    %s267 = scalar_select %p264, %s265, %s266
    %p270 = pneg %p264
    %p271 = scmp.eq.s32.totalorder %s16, 1
    %p272 = por %p270, %p271
    %p273 = scmp.ne.s32.totalorder %s265, %s268
    %p274 = scmp.eq.s32.totalorder %s16, 0
    %p275 = por %p273, %p274
    %p276 = scmp.ne.s32.totalorder %s265, %s268
    %p277 = scmp.eq.s32.totalorder %s21, 1
    %p278 = por %p276, %p277
    %p279 = scmp.ne.s32.totalorder %s268, %s269
    %p280 = scmp.eq.s32.totalorder %s21, 0
    %p281 = por %p279, %p280
    %p282 = scmp.ne.s32.totalorder %s268, %s269
    %p283 = scmp.eq.s32.totalorder %s22, 1
    %p284 = por %p282, %p283
    %p286 = scmp.ne.s32.totalorder %s269, %s285
    %p287 = scmp.eq.s32.totalorder %s22, 0
    %p288 = por %p286, %p287
    %p289 = scmp.le.s32.totalorder 1, %s16
    %p290 = scmp.lt.s32.totalorder %s16, 3
    %p291 = pnand %p289, %p290
    %p292 = pneg %p291
    // Predicated region
    $region9: #{temp_mp_forward.5} parent=5 // pred_check
      _
    $region10: #{temp_mp_forward.5} parent=5 // pred_check_branch
      %294 = sbr.rel (%p291) target = $region12
    $region11: #{temp_mp_forward.5} parent=5 // pred_region
      %s295 = ssub.s32 %s16, 1
      // Predicated region
      $region13: #{temp_mp_forward.5} parent=11 // pred_check
        %p296 = pneg %p54
      $region14: #{temp_mp_forward.5} parent=11 // pred_check_branch
        %298 = sbr.rel (%p296) target = $region16
      $region15: #{temp_mp_forward.5} parent=11 // pred_region
        %s299 = smul.u32 3, %s26
        %p300 = scmp.lt.s32.totalorder %s299, 2
        %s301 = scalar_select %p300, %s299, 2
        %s302 = smul.addr %s301, 8
        %s303 = scalar_lea.vmem %s0, %s302
        %s304 = smul.u32 3, %s26
      $region16: #{temp_mp_forward.5} parent=11 // pred_fallthru
        _
      // Predicated region
      $region17: #{temp_mp_forward.5} parent=11 // pred_check
        %p305 = pneg %p80
      $region18: #{temp_mp_forward.5} parent=11 // pred_check_branch
        %307 = sbr.rel (%p305) target = $region20
      $region19: #{temp_mp_forward.5} parent=11 // pred_region
        %s308 = smul.u32 3, %s26
        %p309 = scmp.lt.s32.totalorder %s308, 2
        %s310 = scalar_select %p309, %s308, 2
        %s311 = smul.addr %s310, 8
        %s312 = scalar_lea.vmem %s1, %s311
        %s313 = smul.u32 3, %s26
      $region20: #{temp_mp_forward.5} parent=11 // pred_fallthru
        _
      // Predicated region
      $region21: #{temp_mp_forward.5} parent=11 // pred_check
        %p314 = pneg %p127
      $region22: #{temp_mp_forward.5} parent=11 // pred_check_branch
        %316 = sbr.rel (%p314) target = $region24
      $region23: #{temp_mp_forward.5} parent=11 // pred_region
        _
      $region24: #{temp_mp_forward.5} parent=11 // pred_fallthru
        _
      // Predicated region
      $region25: #{temp_mp_forward.5} parent=11 // pred_check
        %p317 = pneg %p148
      $region26: #{temp_mp_forward.5} parent=11 // pred_check_branch
        %319 = sbr.rel (%p317) target = $region28
      $region27: #{temp_mp_forward.5} parent=11 // pred_region
        _
      $region28: #{temp_mp_forward.5} parent=11 // pred_fallthru
        _
      // Predicated region
      $region29: #{temp_mp_forward.5} parent=11 // pred_check
        %p320 = pneg %p169
      $region30: #{temp_mp_forward.5} parent=11 // pred_check_branch
        %322 = sbr.rel (%p320) target = $region32
      $region31: #{temp_mp_forward.5} parent=11 // pred_region
        _
      $region32: #{temp_mp_forward.5} parent=11 // pred_fallthru
        _
      // Predicated region
      $region33: #{temp_mp_forward.5} parent=11 // pred_check
        %p323 = pneg %p190
      $region34: #{temp_mp_forward.5} parent=11 // pred_check_branch
        %325 = sbr.rel (%p323) target = $region36
      $region35: #{temp_mp_forward.5} parent=11 // pred_region
        _
      $region36: #{temp_mp_forward.5} parent=11 // pred_fallthru
        _
      // Predicated region
      $region37: #{temp_mp_forward.5} parent=11 // pred_check
        %p326 = pneg %p211
      $region38: #{temp_mp_forward.5} parent=11 // pred_check_branch
        %328 = sbr.rel (%p326) target = $region40
      $region39: #{temp_mp_forward.5} parent=11 // pred_region
        _
      $region40: #{temp_mp_forward.5} parent=11 // pred_fallthru
        _
      // Predicated region
      $region41: #{temp_mp_forward.5} parent=11 // pred_check
        %p329 = pneg %p232
      $region42: #{temp_mp_forward.5} parent=11 // pred_check_branch
        %331 = sbr.rel (%p329) target = $region44
      $region43: #{temp_mp_forward.5} parent=11 // pred_region
        _
      $region44: #{temp_mp_forward.5} parent=11 // pred_fallthru
        _
      // Predicated region
      $region45: #{temp_mp_forward.5} parent=11 // pred_check
        %p332 = pneg %p253
      $region46: #{temp_mp_forward.5} parent=11 // pred_check_branch
        %334 = sbr.rel (%p332) target = $region48
      $region47: #{temp_mp_forward.5} parent=11 // pred_region
        _
      $region48: #{temp_mp_forward.5} parent=11 // pred_fallthru
        _
    $region12: #{temp_mp_forward.5} parent=5 // pred_fallthru
      _
    %p335 = scmp.lt.s32.totalorder %s16, 2
    // Predicated region
    $region49: #{temp_mp_forward.5} parent=5 // pred_check
      %p336 = pneg %p335
    $region50: #{temp_mp_forward.5} parent=5 // pred_check_branch
      %338 = sbr.rel (%p336) target = $region52
    $region51: #{temp_mp_forward.5} parent=5 // pred_region
      // Predicated region
      $region53: #{temp_mp_forward.5} parent=51 // pred_check
        %p339 = pneg %p100
      $region54: #{temp_mp_forward.5} parent=51 // pred_check_branch
        %341 = sbr.rel (%p339) target = $region56
      $region55: #{temp_mp_forward.5} parent=51 // pred_region
        %p342 = scmp.lt.s32.totalorder %s23, 1
        %s343 = scalar_select %p342, %s23, 1
        %s344 = smul.addr %s343, 8
        %s345 = scalar_lea.vmem %s2, %s344
      $region56: #{temp_mp_forward.5} parent=51 // pred_fallthru
        _
    $region52: #{temp_mp_forward.5} parent=5 // pred_fallthru
      _
    %p346 = scmp.le.s32.totalorder 1, %s16
    %p347 = scmp.lt.s32.totalorder %s16, 3
    %p348 = pnand %p346, %p347
    %p349 = pneg %p348
    // Predicated region
    $region57: #{temp_mp_forward.5} parent=5 // pred_check
      _
    $region58: #{temp_mp_forward.5} parent=5 // pred_check_branch
      %351 = sbr.rel (%p348) target = $region60
    $region59: #{temp_mp_forward.5} parent=5 // pred_region
      %s352 = ssub.s32 %s16, 1
      %s353 = smul.u32 3, %s26
      %p354 = scmp.lt.s32.totalorder %s353, 2
      %s355 = scalar_select %p354, %s353, 2
      %s356 = smul.addr %s355, 8
      %s357 = scalar_lea.vmem %s0, %s356
      %p358 = pneg %p54
      %p359 = pneg %p51
      %s360 = smul.u32 3, %s26
      %p361 = scmp.lt.s32.totalorder %s360, 2
      %s362 = scalar_select %p361, %s360, 2
      %s363 = smul.addr %s362, 8
      %s364 = scalar_lea.vmem %s1, %s363
      %p365 = pneg %p80
      %p366 = pneg %p77
      %p367 = scmp.lt.s32.totalorder %s25, 1
      %s368 = scalar_select %p367, %s25, 1
      %s369 = smul.addr %s368, 8
      %s370 = scalar_lea.vmem %s2, %s369
      %p371 = pneg %p106
      %p372 = pneg %p103
      %p373 = pneg %p127
      %p374 = pneg %p124
      %p375 = pneg %p148
      %p376 = pneg %p145
      %p377 = pneg %p169
      %p378 = pneg %p166
      %p379 = pneg %p190
      %p380 = pneg %p187
      %p381 = pneg %p211
      %p382 = pneg %p208
      %p383 = pneg %p232
      %p384 = pneg %p229
      %p385 = pneg %p253
      %p386 = pneg %p250
      %p387 = pneg %p281
      %p388 = pneg %p278
      %s389 = smul.u32 3, %s26
      %p390 = scmp.lt.s32.totalorder %s25, 1
      %s391 = scalar_select %p390, %s25, 1
      %p392 = scmp.lt.s32.totalorder %s389, 2
      %s393 = scalar_select %p392, %s389, 2
      %s394 = smul.addr %s391, 3
      %s395 = sadd.s32 %s393, %s394
      %s396 = smul.addr %s395, 8
      %s397 = scalar_lea.vmem %s10, %s396
      %s398 = smul.u32 3, %s26
      %p399 = scmp.lt.s32.totalorder %s398, 2
      %s400 = scalar_select %p399, %s398, 2
      %s401 = smul.addr %s400, 8
      %s402 = scalar_lea.vmem %s0, %s401
      %s403 = smul.u32 3, %s26
      %s404 = smul.u32 3, %s26
      %p405 = scmp.lt.s32.totalorder %s404, 2
      %s406 = scalar_select %p405, %s404, 2
      %s407 = smul.addr %s406, 8
      %s408 = scalar_lea.vmem %s1, %s407
      %s409 = smul.u32 3, %s26
      %p410 = scmp.lt.s32.totalorder %s25, 1
      %s411 = scalar_select %p410, %s25, 1
      %s412 = smul.addr %s411, 8
      %s413 = scalar_lea.vmem %s2, %s412
      %s414 = smul.u32 3, %s26
      %p415 = scmp.lt.s32.totalorder %s25, 1
      %s416 = scalar_select %p415, %s25, 1
      %p417 = scmp.lt.s32.totalorder %s414, 2
      %s418 = scalar_select %p417, %s414, 2
      %s419 = smul.addr %s416, 3
      %s420 = sadd.s32 %s418, %s419
      %s421 = smul.addr %s420, 8
      %s422 = scalar_lea.vmem %s10, %s421
      %s423 = smul.u32 3, %s26
      %v424 = vld [vmem:[%s413] sm:$0x1f]
      %v425 = vld [vmem:[%s402] sm:$0xff]
      %v426 = vld [vmem:[%s402 + $0x8] sm:$0xff]
      %v427 = vld [vmem:[%s402 + $0x10] sm:$0xf]
      %vm428 = vcmask 39936
      %v430 = vsel %vm428, %v425, 0
      %v433 = vsel %vm428, %v426, 0
      %v436 = vsel %vm428, %v427, 0
      %vm438 = vcmask 1044480
      %v440 = vsel %vm438, %v424, 0
      %442 = vmatprep.subr.mxu0 0.0
      %443 = vmatpush1.msra.mxu0 0.0
      %444 = vmatprep.subr.mxu0 0.0
      %445 = vmatpush1.msra.mxu0 0.0
      %446 = vmatprep.subr.mxu0 0.0
      %447 = vmatpush1.msra.mxu0 0.0
      %448 = vmatprep.subr.mxu0 0.0
      %449 = vmatpush1.msra.mxu0 0.0
      %450 = vmatprep.subr.mxu0 0.0
      %451 = vmatpush1.msra.mxu0 0.0
      %452 = vmatprep.subr.mxu0 0.0
      %453 = vmatpush1.msra.mxu0 0.0
      %454 = vmatprep.subr.mxu0 0.0
      %455 = vmatpush1.msra.mxu0 0.0
      %456 = vmatprep.subr.mxu0 0.0
      %457 = vmatpush1.msra.mxu0 0.0
      %458 = vmatprep.subr.mxu0 0.0
      %459 = vmatpush1.msra.mxu0 0.0
      %460 = vmatprep.subr.mxu0 0.0
      %461 = vmatpush1.msra.mxu0 0.0
      %462 = vmatprep.subr.mxu0 0.0
      %463 = vmatpush1.msra.mxu0 0.0
      %464 = vmatprep.subr.mxu0 0.0
      %465 = vmatpush1.msra.mxu0 0.0
      %466 = vmatprep.subr.mxu0 0.0
      %467 = vmatpush1.msra.mxu0 0.0
      %468 = vmatprep.subr.mxu0 0.0
      %469 = vmatpush1.msra.mxu0 0.0
      %470 = vmatprep.subr.mxu0 0.0
      %471 = vmatpush1.msra.mxu0 0.0
      %472 = vmatprep.subr.mxu0 0.0
      %473 = vmatpush1.msra.mxu0 %v440
      %474 = vmatprep.subr.mxu0 0.0
      %475 = vmatpush2.msra.mxu0 0.0
      %476 = vmatprep.subr.mxu0 0.0
      %477 = vmatpush2.msra.mxu0 0.0
      %478 = vmatprep.subr.mxu0 0.0
      %479 = vmatpush2.msra.mxu0 0.0
      %480 = vmatprep.subr.mxu0 0.0
      %481 = vmatpush2.msra.mxu0 0.0
      %482 = vmatprep.subr.mxu0 0.0
      %483 = vmatpush2.msra.mxu0 0.0
      %484 = vmatprep.subr.mxu0 0.0
      %485 = vmatpush2.msra.mxu0 0.0
      %486 = vmatprep.subr.mxu0 0.0
      %487 = vmatpush2.msra.mxu0 0.0
      %488 = vmatprep.subr.mxu0 0.0
      %489 = vmatpush2.msra.mxu0 0.0
      %490 = vmatprep.subr.mxu0 0.0
      %491 = vmatpush2.msra.mxu0 0.0
      %492 = vmatprep.subr.mxu0 0.0
      %493 = vmatpush2.msra.mxu0 0.0
      %494 = vmatprep.subr.mxu0 0.0
      %495 = vmatpush2.msra.mxu0 0.0
      %496 = vmatprep.subr.mxu0 0.0
      %497 = vmatpush2.msra.mxu0 0.0
      %498 = vmatprep.subr.mxu0 0.0
      %499 = vmatpush2.msra.mxu0 0.0
      %500 = vmatprep.subr.mxu0 0.0
      %501 = vmatpush2.msra.mxu0 0.0
      %502 = vmatprep.subr.mxu0 0.0
      %503 = vmatpush2.msra.mxu0 0.0
      %504 = vmatprep.subr.mxu0 0.0
      %505 = vmatpush2.msra.mxu0 0.0
      %506 = vmatprep.mubr.f32.mxu0 0.0
      %507 = vmatmul.mubr.f32.gmra.mxu0 %v430
      %v508 = vpop.f32.mrf.mxu0
      %v509 = vadd.f32 0.0, %v508
      %v510 = vpop.f32.mrf.mxu0
      %511 = vmatprep.mubr.f32.mxu0 0.0
      %512 = vmatmul.mubr.f32.gmra.mxu0 %v433
      %v513 = vpop.f32.mrf.mxu0
      %v514 = vadd.f32 0.0, %v513
      %v515 = vpop.f32.mrf.mxu0
      %516 = vmatprep.mubr.f32.mxu0 0.0
      %517 = vmatmul.mubr.f32.gmra.mxu0 %v436
      %v518 = vpop.f32.mrf.mxu0
      %v519 = vadd.f32 0.0, %v518
      %v520 = vpop.f32.mrf.mxu0
      %521 = vdwg.mxu0
      %v522 = vld [vmem:[%s408] sm:$0xff]
      %v523 = vld [vmem:[%s408 + $0x8] sm:$0xff]
      %v524 = vld [vmem:[%s408 + $0x10] sm:$0xf]
      %v526 = vsel %vm428, %v522, 0
      %v529 = vsel %vm428, %v523, 0
      %v532 = vsel %vm428, %v524, 0
      %534 = vmatprep.subr.mxu0 0.0
      %535 = vmatpush1.msra.mxu0 0.0
      %536 = vmatprep.subr.mxu0 0.0
      %537 = vmatpush1.msra.mxu0 0.0
      %538 = vmatprep.subr.mxu0 0.0
      %539 = vmatpush1.msra.mxu0 0.0
      %540 = vmatprep.subr.mxu0 0.0
      %541 = vmatpush1.msra.mxu0 0.0
      %542 = vmatprep.subr.mxu0 0.0
      %543 = vmatpush1.msra.mxu0 0.0
      %544 = vmatprep.subr.mxu0 0.0
      %545 = vmatpush1.msra.mxu0 0.0
      %546 = vmatprep.subr.mxu0 0.0
      %547 = vmatpush1.msra.mxu0 0.0
      %548 = vmatprep.subr.mxu0 0.0
      %549 = vmatpush1.msra.mxu0 0.0
      %550 = vmatprep.subr.mxu0 0.0
      %551 = vmatpush1.msra.mxu0 0.0
      %552 = vmatprep.subr.mxu0 0.0
      %553 = vmatpush1.msra.mxu0 0.0
      %554 = vmatprep.subr.mxu0 0.0
      %555 = vmatpush1.msra.mxu0 0.0
      %556 = vmatprep.subr.mxu0 0.0
      %557 = vmatpush1.msra.mxu0 0.0
      %558 = vmatprep.subr.mxu0 0.0
      %559 = vmatpush1.msra.mxu0 0.0
      %560 = vmatprep.subr.mxu0 0.0
      %561 = vmatpush1.msra.mxu0 0.0
      %562 = vmatprep.subr.mxu0 0.0
      %563 = vmatpush1.msra.mxu0 0.0
      %564 = vmatprep.subr.mxu0 0.0
      %565 = vmatpush1.msra.mxu0 %v440
      %566 = vmatprep.subr.mxu0 0.0
      %567 = vmatpush2.msra.mxu0 0.0
      %568 = vmatprep.subr.mxu0 0.0
      %569 = vmatpush2.msra.mxu0 0.0
      %570 = vmatprep.subr.mxu0 0.0
      %571 = vmatpush2.msra.mxu0 0.0
      %572 = vmatprep.subr.mxu0 0.0
      %573 = vmatpush2.msra.mxu0 0.0
      %574 = vmatprep.subr.mxu0 0.0
      %575 = vmatpush2.msra.mxu0 0.0
      %576 = vmatprep.subr.mxu0 0.0
      %577 = vmatpush2.msra.mxu0 0.0
      %578 = vmatprep.subr.mxu0 0.0
      %579 = vmatpush2.msra.mxu0 0.0
      %580 = vmatprep.subr.mxu0 0.0
      %581 = vmatpush2.msra.mxu0 0.0
      %582 = vmatprep.subr.mxu0 0.0
      %583 = vmatpush2.msra.mxu0 0.0
      %584 = vmatprep.subr.mxu0 0.0
      %585 = vmatpush2.msra.mxu0 0.0
      %586 = vmatprep.subr.mxu0 0.0
      %587 = vmatpush2.msra.mxu0 0.0
      %588 = vmatprep.subr.mxu0 0.0
      %589 = vmatpush2.msra.mxu0 0.0
      %590 = vmatprep.subr.mxu0 0.0
      %591 = vmatpush2.msra.mxu0 0.0
      %592 = vmatprep.subr.mxu0 0.0
      %593 = vmatpush2.msra.mxu0 0.0
      %594 = vmatprep.subr.mxu0 0.0
      %595 = vmatpush2.msra.mxu0 0.0
      %596 = vmatprep.subr.mxu0 0.0
      %597 = vmatpush2.msra.mxu0 0.0
      %598 = vmatprep.mubr.f32.mxu0 0.0
      %599 = vmatmul.mubr.f32.gmra.mxu0 %v526
      %v600 = vpop.f32.mrf.mxu0
      %v601 = vadd.f32 0.0, %v600
      %v602 = vpop.f32.mrf.mxu0
      %603 = vmatprep.mubr.f32.mxu0 0.0
      %604 = vmatmul.mubr.f32.gmra.mxu0 %v529
      %v605 = vpop.f32.mrf.mxu0
      %v606 = vadd.f32 0.0, %v605
      %v607 = vpop.f32.mrf.mxu0
      %608 = vmatprep.mubr.f32.mxu0 0.0
      %609 = vmatmul.mubr.f32.gmra.mxu0 %v532
      %v610 = vpop.f32.mrf.mxu0
      %v611 = vadd.f32 0.0, %v610
      %v612 = vpop.f32.mrf.mxu0
      %613 = vdwg.mxu0
      %v614 = vld [vmem:[%s3] sm:$0xff]
      %v615 = vld [vmem:[%s3 + $0x8] sm:$0xff]
      %v616 = vld [vmem:[%s4] sm:$0xff]
      %v617 = vld [vmem:[%s4 + $0x8] sm:$0xff]
      %vm618 = vcmask 130048
      %v620 = vsel %vm618, %v601, 0
      %v623 = vsel %vm618, %v606, 0
      %v626 = vsel %vm618, %v611, 0
      %628 = vmatprep.subr.mxu0 0.0
      %629 = vmatpush1.msra.mxu0 0.0
      %630 = vmatprep.subr.mxu0 0.0
      %631 = vmatpush1.msra.mxu0 0.0
      %632 = vmatprep.subr.mxu0 0.0
      %633 = vmatpush1.msra.mxu0 0.0
      %634 = vmatprep.subr.mxu0 0.0
      %635 = vmatpush1.msra.mxu0 0.0
      %636 = vmatprep.subr.mxu0 0.0
      %637 = vmatpush1.msra.mxu0 0.0
      %638 = vmatprep.subr.mxu0 0.0
      %639 = vmatpush1.msra.mxu0 0.0
      %640 = vmatprep.subr.mxu0 0.0
      %641 = vmatpush1.msra.mxu0 0.0
      %642 = vmatprep.subr.mxu0 0.0
      %643 = vmatpush1.msra.mxu0 0.0
      %644 = vmatprep.subr.mxu0 0.0
      %645 = vmatpush1.msra.mxu0 0.0
      %646 = vmatprep.subr.mxu0 0.0
      %647 = vmatpush1.msra.mxu0 0.0
      %648 = vmatprep.subr.mxu0 0.0
      %649 = vmatpush1.msra.mxu0 0.0
      %650 = vmatprep.subr.mxu0 0.0
      %651 = vmatpush1.msra.mxu0 0.0
      %652 = vmatprep.subr.mxu0 0.0
      %653 = vmatpush1.msra.mxu0 0.0
      %654 = vmatprep.subr.mxu0 0.0
      %655 = vmatpush1.msra.mxu0 0.0
      %656 = vmatprep.subr.mxu0 0.0
      %657 = vmatpush1.msra.mxu0 %v617
      %658 = vmatprep.subr.mxu0 0.0
      %659 = vmatpush1.msra.mxu0 %v616
      %660 = vmatprep.subr.mxu0 0.0
      %661 = vmatpush2.msra.mxu0 0.0
      %662 = vmatprep.subr.mxu0 0.0
      %663 = vmatpush2.msra.mxu0 0.0
      %664 = vmatprep.subr.mxu0 0.0
      %665 = vmatpush2.msra.mxu0 0.0
      %666 = vmatprep.subr.mxu0 0.0
      %667 = vmatpush2.msra.mxu0 0.0
      %668 = vmatprep.subr.mxu0 0.0
      %669 = vmatpush2.msra.mxu0 0.0
      %670 = vmatprep.subr.mxu0 0.0
      %671 = vmatpush2.msra.mxu0 0.0
      %672 = vmatprep.subr.mxu0 0.0
      %673 = vmatpush2.msra.mxu0 0.0
      %674 = vmatprep.subr.mxu0 0.0
      %675 = vmatpush2.msra.mxu0 0.0
      %676 = vmatprep.subr.mxu0 0.0
      %677 = vmatpush2.msra.mxu0 0.0
      %678 = vmatprep.subr.mxu0 0.0
      %679 = vmatpush2.msra.mxu0 0.0
      %680 = vmatprep.subr.mxu0 0.0
      %681 = vmatpush2.msra.mxu0 0.0
      %682 = vmatprep.subr.mxu0 0.0
      %683 = vmatpush2.msra.mxu0 0.0
      %684 = vmatprep.subr.mxu0 0.0
      %685 = vmatpush2.msra.mxu0 0.0
      %686 = vmatprep.subr.mxu0 0.0
      %687 = vmatpush2.msra.mxu0 0.0
      %688 = vmatprep.subr.mxu0 0.0
      %689 = vmatpush2.msra.mxu0 0.0
      %690 = vmatprep.subr.mxu0 0.0
      %691 = vmatpush2.msra.mxu0 0.0
      %692 = vmatprep.mubr.f32.mxu0 0.0
      %693 = vmatmul.mubr.f32.gmra.mxu0 %v620
      %v694 = vpop.f32.mrf.mxu0
      %v695 = vadd.f32 0.0, %v694
      %v696 = vpop.f32.mrf.mxu0
      %697 = vmatprep.mubr.f32.mxu0 0.0
      %698 = vmatmul.mubr.f32.gmra.mxu0 %v623
      %v699 = vpop.f32.mrf.mxu0
      %v700 = vadd.f32 0.0, %v699
      %v701 = vpop.f32.mrf.mxu0
      %702 = vmatprep.mubr.f32.mxu0 0.0
      %703 = vmatmul.mubr.f32.gmra.mxu0 %v626
      %v704 = vpop.f32.mrf.mxu0
      %v705 = vadd.f32 0.0, %v704
      %v706 = vpop.f32.mrf.mxu0
      %707 = vdwg.mxu0
      %v709 = vsel %vm618, %v509, 0
      %v712 = vsel %vm618, %v514, 0
      %v715 = vsel %vm618, %v519, 0
      %717 = vmatprep.subr.mxu0 0.0
      %718 = vmatpush1.msra.mxu0 0.0
      %719 = vmatprep.subr.mxu0 0.0
      %720 = vmatpush1.msra.mxu0 0.0
      %721 = vmatprep.subr.mxu0 0.0
      %722 = vmatpush1.msra.mxu0 0.0
      %723 = vmatprep.subr.mxu0 0.0
      %724 = vmatpush1.msra.mxu0 0.0
      %725 = vmatprep.subr.mxu0 0.0
      %726 = vmatpush1.msra.mxu0 0.0
      %727 = vmatprep.subr.mxu0 0.0
      %728 = vmatpush1.msra.mxu0 0.0
      %729 = vmatprep.subr.mxu0 0.0
      %730 = vmatpush1.msra.mxu0 0.0
      %731 = vmatprep.subr.mxu0 0.0
      %732 = vmatpush1.msra.mxu0 0.0
      %733 = vmatprep.subr.mxu0 0.0
      %734 = vmatpush1.msra.mxu0 0.0
      %735 = vmatprep.subr.mxu0 0.0
      %736 = vmatpush1.msra.mxu0 0.0
      %737 = vmatprep.subr.mxu0 0.0
      %738 = vmatpush1.msra.mxu0 0.0
      %739 = vmatprep.subr.mxu0 0.0
      %740 = vmatpush1.msra.mxu0 0.0
      %741 = vmatprep.subr.mxu0 0.0
      %742 = vmatpush1.msra.mxu0 0.0
      %743 = vmatprep.subr.mxu0 0.0
      %744 = vmatpush1.msra.mxu0 0.0
      %745 = vmatprep.subr.mxu0 0.0
      %746 = vmatpush1.msra.mxu0 %v615
      %747 = vmatprep.subr.mxu0 0.0
      %748 = vmatpush1.msra.mxu0 %v614
      %749 = vmatprep.subr.mxu0 0.0
      %750 = vmatpush2.msra.mxu0 0.0
      %751 = vmatprep.subr.mxu0 0.0
      %752 = vmatpush2.msra.mxu0 0.0
      %753 = vmatprep.subr.mxu0 0.0
      %754 = vmatpush2.msra.mxu0 0.0
      %755 = vmatprep.subr.mxu0 0.0
      %756 = vmatpush2.msra.mxu0 0.0
      %757 = vmatprep.subr.mxu0 0.0
      %758 = vmatpush2.msra.mxu0 0.0
      %759 = vmatprep.subr.mxu0 0.0
      %760 = vmatpush2.msra.mxu0 0.0
      %761 = vmatprep.subr.mxu0 0.0
      %762 = vmatpush2.msra.mxu0 0.0
      %763 = vmatprep.subr.mxu0 0.0
      %764 = vmatpush2.msra.mxu0 0.0
      %765 = vmatprep.subr.mxu0 0.0
      %766 = vmatpush2.msra.mxu0 0.0
      %767 = vmatprep.subr.mxu0 0.0
      %768 = vmatpush2.msra.mxu0 0.0
      %769 = vmatprep.subr.mxu0 0.0
      %770 = vmatpush2.msra.mxu0 0.0
      %771 = vmatprep.subr.mxu0 0.0
      %772 = vmatpush2.msra.mxu0 0.0
      %773 = vmatprep.subr.mxu0 0.0
      %774 = vmatpush2.msra.mxu0 0.0
      %775 = vmatprep.subr.mxu0 0.0
      %776 = vmatpush2.msra.mxu0 0.0
      %777 = vmatprep.subr.mxu0 0.0
      %778 = vmatpush2.msra.mxu0 0.0
      %779 = vmatprep.subr.mxu0 0.0
      %780 = vmatpush2.msra.mxu0 0.0
      %781 = vmatprep.mubr.f32.mxu0 0.0
      %782 = vmatmul.mubr.f32.gmra.mxu0 %v709
      %v783 = vpop.f32.mrf.mxu0
      %v784 = vadd.f32 %v695, %v783
      %v785 = vpop.f32.mrf.mxu0
      %786 = vmatprep.mubr.f32.mxu0 0.0
      %787 = vmatmul.mubr.f32.gmra.mxu0 %v712
      %v788 = vpop.f32.mrf.mxu0
      %v789 = vadd.f32 %v700, %v788
      %v790 = vpop.f32.mrf.mxu0
      %791 = vmatprep.mubr.f32.mxu0 0.0
      %792 = vmatmul.mubr.f32.gmra.mxu0 %v715
      %v793 = vpop.f32.mrf.mxu0
      %v794 = vadd.f32 %v705, %v793
      %v795 = vpop.f32.mrf.mxu0
      %796 = vdwg.mxu0
      %v797 = vld [vmem:[%s5] sm:$0x1]
      %v799 = vlaneseq
      %v800 = vshrl.u32 %v799, 7
      %v801 = vsub.s32 0, %v800
      %v802 = vrot.slane %v797, %v801
      %v804 = vadd.f32 %v784, %v802
      %v805 = vadd.f32 %v789, %v802
      %v806 = vadd.f32 %v794, %v802
      %vm807 = vcmp.gt.f32.partialorder %v804, 0.0
      %vm808 = vcmp.gt.f32.partialorder %v805, 0.0
      %vm809 = vcmp.gt.f32.partialorder %v806, 0.0
      %v810 = vmin.f32 %v804, 0.0
      %v811 = vmin.f32 %v805, 0.0
      %v812 = vmin.f32 %v806, 0.0
      %v813 = vmul.f32 %v810, 1.442695
      %v814 = vpow.pop %v813
      %v815 = vmul.f32 %v811, 1.442695
      %v816 = vpow.pop %v815
      %v817 = vmul.f32 %v812, 1.442695
      %v818 = vpow.pop %v817
      %v819 = vsub.f32 %v814, 1.0
      %v820 = vsub.f32 %v816, 1.0
      %v821 = vsub.f32 %v818, 1.0
      %v822 = vsel %vm807, %v804, %v819
      %v823 = vsel %vm808, %v805, %v820
      %v824 = vsel %vm809, %v806, %v821
      %v825 = vld [vmem:[%s6] sm:$0xff]
      %v826 = vld [vmem:[%s6 + $0x8] sm:$0xff]
      %v827 = vld [vmem:[%s6 + $0x10] sm:$0xff]
      %v828 = vld [vmem:[%s6 + $0x18] sm:$0xff]
      %v829 = vld [vmem:[%s7] sm:$0x1]
      %v831 = vlaneseq
      %v832 = vshrl.u32 %v831, 7
      %v833 = vsub.s32 0, %v832
      %v834 = vrot.slane %v829, %v833
      %vm836 = vcmask 261120
      %v838 = vsel %vm836, %v822, 0
      %v841 = vsel %vm836, %v823, 0
      %v844 = vsel %vm836, %v824, 0
      %846 = vmatprep.subr.mxu0 0.0
      %847 = vmatpush1.msra.mxu0 0.0
      %848 = vmatprep.subr.mxu0 0.0
      %849 = vmatpush1.msra.mxu0 0.0
      %850 = vmatprep.subr.mxu0 0.0
      %851 = vmatpush1.msra.mxu0 0.0
      %852 = vmatprep.subr.mxu0 0.0
      %853 = vmatpush1.msra.mxu0 0.0
      %854 = vmatprep.subr.mxu0 0.0
      %855 = vmatpush1.msra.mxu0 0.0
      %856 = vmatprep.subr.mxu0 0.0
      %857 = vmatpush1.msra.mxu0 0.0
      %858 = vmatprep.subr.mxu0 0.0
      %859 = vmatpush1.msra.mxu0 0.0
      %860 = vmatprep.subr.mxu0 0.0
      %861 = vmatpush1.msra.mxu0 0.0
      %862 = vmatprep.subr.mxu0 0.0
      %863 = vmatpush1.msra.mxu0 0.0
      %864 = vmatprep.subr.mxu0 0.0
      %865 = vmatpush1.msra.mxu0 0.0
      %866 = vmatprep.subr.mxu0 0.0
      %867 = vmatpush1.msra.mxu0 0.0
      %868 = vmatprep.subr.mxu0 0.0
      %869 = vmatpush1.msra.mxu0 0.0
      %870 = vmatprep.subr.mxu0 0.0
      %871 = vmatpush1.msra.mxu0 %v828
      %872 = vmatprep.subr.mxu0 0.0
      %873 = vmatpush1.msra.mxu0 %v827
      %874 = vmatprep.subr.mxu0 0.0
      %875 = vmatpush1.msra.mxu0 %v826
      %876 = vmatprep.subr.mxu0 0.0
      %877 = vmatpush1.msra.mxu0 %v825
      %878 = vmatprep.subr.mxu0 0.0
      %879 = vmatpush2.msra.mxu0 0.0
      %880 = vmatprep.subr.mxu0 0.0
      %881 = vmatpush2.msra.mxu0 0.0
      %882 = vmatprep.subr.mxu0 0.0
      %883 = vmatpush2.msra.mxu0 0.0
      %884 = vmatprep.subr.mxu0 0.0
      %885 = vmatpush2.msra.mxu0 0.0
      %886 = vmatprep.subr.mxu0 0.0
      %887 = vmatpush2.msra.mxu0 0.0
      %888 = vmatprep.subr.mxu0 0.0
      %889 = vmatpush2.msra.mxu0 0.0
      %890 = vmatprep.subr.mxu0 0.0
      %891 = vmatpush2.msra.mxu0 0.0
      %892 = vmatprep.subr.mxu0 0.0
      %893 = vmatpush2.msra.mxu0 0.0
      %894 = vmatprep.subr.mxu0 0.0
      %895 = vmatpush2.msra.mxu0 0.0
      %896 = vmatprep.subr.mxu0 0.0
      %897 = vmatpush2.msra.mxu0 0.0
      %898 = vmatprep.subr.mxu0 0.0
      %899 = vmatpush2.msra.mxu0 0.0
      %900 = vmatprep.subr.mxu0 0.0
      %901 = vmatpush2.msra.mxu0 0.0
      %902 = vmatprep.subr.mxu0 0.0
      %903 = vmatpush2.msra.mxu0 0.0
      %904 = vmatprep.subr.mxu0 0.0
      %905 = vmatpush2.msra.mxu0 0.0
      %906 = vmatprep.subr.mxu0 0.0
      %907 = vmatpush2.msra.mxu0 0.0
      %908 = vmatprep.subr.mxu0 0.0
      %909 = vmatpush2.msra.mxu0 0.0
      %910 = vmatprep.mubr.f32.mxu0 0.0
      %911 = vmatmul.mubr.f32.gmra.mxu0 %v838
      %v912 = vpop.f32.mrf.mxu0
      %v913 = vadd.f32 %v834, %v912
      %v914 = vpop.f32.mrf.mxu0
      %915 = vmatprep.mubr.f32.mxu0 0.0
      %916 = vmatmul.mubr.f32.gmra.mxu0 %v841
      %v917 = vpop.f32.mrf.mxu0
      %v918 = vadd.f32 %v834, %v917
      %v919 = vpop.f32.mrf.mxu0
      %920 = vmatprep.mubr.f32.mxu0 0.0
      %921 = vmatmul.mubr.f32.gmra.mxu0 %v844
      %v922 = vpop.f32.mrf.mxu0
      %v923 = vadd.f32 %v834, %v922
      %v924 = vpop.f32.mrf.mxu0
      %925 = vdwg.mxu0
      %vm926 = vcmp.gt.f32.partialorder %v913, 0.0
      %vm927 = vcmp.gt.f32.partialorder %v918, 0.0
      %vm928 = vcmp.gt.f32.partialorder %v923, 0.0
      %v929 = vmin.f32 %v913, 0.0
      %v930 = vmin.f32 %v918, 0.0
      %v931 = vmin.f32 %v923, 0.0
      %v932 = vmul.f32 %v929, 1.442695
      %v933 = vpow.pop %v932
      %v934 = vmul.f32 %v930, 1.442695
      %v935 = vpow.pop %v934
      %v936 = vmul.f32 %v931, 1.442695
      %v937 = vpow.pop %v936
      %v938 = vsub.f32 %v933, 1.0
      %v939 = vsub.f32 %v935, 1.0
      %v940 = vsub.f32 %v937, 1.0
      %v941 = vsel %vm926, %v913, %v938
      %v942 = vsel %vm927, %v918, %v939
      %v943 = vsel %vm928, %v923, %v940
      %v944 = vld [vmem:[%s8] sm:$0x1]
      %v946 = vlaneseq
      %v947 = vshrl.u32 %v946, 7
      %v948 = vsub.s32 0, %v947
      %v949 = vrot.slane %v944, %v948
      %v951 = vmul.f32 %v941, %v949
      %v952 = vmul.f32 %v942, %v949
      %v953 = vmul.f32 %v943, %v949
      %v954 = vld [vmem:[%s9] sm:$0x1]
      %v956 = vlaneseq
      %v957 = vshrl.u32 %v956, 7
      %v958 = vsub.s32 0, %v957
      %v959 = vrot.slane %v954, %v958
      %v961 = vadd.f32 %v951, %v959
      %v962 = vadd.f32 %v952, %v959
      %v963 = vadd.f32 %v953, %v959
      %964 = vst.msk [vmem:[%s422] sm:$0xff] %vm836, %v961
      %965 = vst.msk [vmem:[%s422 + $0x8] sm:$0xff] %vm836, %v962
      %vm966 = vcmask 257024
      %967 = vst.msk [vmem:[%s422 + $0x10] sm:$0xf] %vm966, %v963
      %s968 = smul.u32 3, %s26
      %p969 = scmp.lt.s32.totalorder %s25, 1
      %s970 = scalar_select %p969, %s25, 1
      %p971 = scmp.lt.s32.totalorder %s968, 2
      %s972 = scalar_select %p971, %s968, 2
      %s973 = smul.addr %s970, 3
      %s974 = sadd.s32 %s972, %s973
      %s975 = smul.addr %s974, 8
      %s976 = scalar_lea.vmem %s10, %s975
      // Predicated region
      $region61: #{temp_mp_forward.5} parent=59 // pred_check
        %p977 = pneg %p278
      $region62: #{temp_mp_forward.5} parent=59 // pred_check_branch
        %979 = sbr.rel (%p977) target = $region64
      $region63: #{temp_mp_forward.5} parent=59 // pred_region
        %s980 = smul.u32 3, %s26
      $region64: #{temp_mp_forward.5} parent=59 // pred_fallthru
        _
    $region60: #{temp_mp_forward.5} parent=5 // pred_fallthru
      _
    %p981 = scmp.le.s32.totalorder 2, %s16
    // Predicated region
    $region65: #{temp_mp_forward.5} parent=5 // pred_check
      %p982 = pneg %p981
    $region66: #{temp_mp_forward.5} parent=5 // pred_check_branch
      %984 = sbr.rel (%p982) target = $region68
    $region67: #{temp_mp_forward.5} parent=5 // pred_region
      %s985 = ssub.s32 %s16, 2
      // Predicated region
      $region69: #{temp_mp_forward.5} parent=67 // pred_check
        %p986 = pneg %p284
      $region70: #{temp_mp_forward.5} parent=67 // pred_check_branch
        %988 = sbr.rel (%p986) target = $region72
      $region71: #{temp_mp_forward.5} parent=67 // pred_region
        %s989 = smul.u32 3, %s28
        %p990 = scmp.lt.s32.totalorder %s27, 1
        %s991 = scalar_select %p990, %s27, 1
        %p992 = scmp.lt.s32.totalorder %s989, 2
        %s993 = scalar_select %p992, %s989, 2
        %s994 = smul.addr %s991, 3
        %s995 = sadd.s32 %s993, %s994
        %s996 = smul.addr %s995, 8
        %s997 = scalar_lea.vmem %s10, %s996
      $region72: #{temp_mp_forward.5} parent=67 // pred_fallthru
        _
    $region68: #{temp_mp_forward.5} parent=5 // pred_fallthru
      _
  $region6: #{temp_mp_forward.5} parent=0 // loop_footer
    %s20 = sadd.s32 1, %s16
  $region7: #{temp_mp_forward.5} parent=0 // loop_footer_branch
    %15 = sbr.rel target = $region3
  $region8: #{temp_mp_forward.5} parent=0 // loop_exit
    _

// kernel: temp_mp_forward.7
$region0: #{temp_mp_forward.7}
  #allocation0 [shape = 'u32[]', space=smem, size = 0x4, offset = 0x4, fixed_abs, tag = 'smem constant byte address 0x4 - core index']
  #allocation1 [shape = 'u32[144,128]{1,0:T(1,128)}', space=vmem, size = 0x12000, scoped, tag = 'internal scratch']
  %s0 = inlined_call_operand.vmem [shape: f32[20,5], index: 0, kind: input, shape index: {}]
  %s1 = inlined_call_operand.vmem [shape: f32[20,5], index: 1, kind: input, shape index: {}]
  %s2 = inlined_call_operand.vmem [shape: f32[2,5,32], index: 2, kind: input, shape index: {}]
  %s3 = inlined_call_operand.vmem [shape: f32[2,20,32], index: 3, kind: input, shape index: {}]
  %s4 = inlined_call_operand.vmem [shape: f32[32,32], index: 4, kind: input, shape index: {}]
  %s5 = inlined_call_operand.vmem [shape: f32[32,32], index: 5, kind: input, shape index: {}]
  %s6 = inlined_call_operand.vmem [shape: f32[32,32], index: 6, kind: input, shape index: {}]
  %s7 = inlined_call_operand.vmem [shape: f32[1,32], index: 7, kind: input, shape index: {}]
  %s8 = inlined_call_operand.vmem [shape: f32[32,32], index: 8, kind: input, shape index: {}]
  %s9 = inlined_call_operand.vmem [shape: f32[1,32], index: 9, kind: input, shape index: {}]
  %s10 = inlined_call_operand.vmem [shape: f32[1,32], index: 10, kind: input, shape index: {}]
  %s11 = inlined_call_operand.vmem [shape: f32[1,32], index: 11, kind: input, shape index: {}]
  %s12 = inlined_call_operand.vmem [shape: f32[2,20,32], index: 12, kind: output, shape index: {}]
  %s13 = sld [smem:[#allocation0]]
  $region81: #{temp_mp_forward.7} parent=0
    _
  %s15 = ssub.s32 1, %s13
  %s16 = scalar_select 0, %s15, %s13
  loop: start=0, step=1, limit=4
  $region2: #{temp_mp_forward.7} parent=0 // loop_pre_header
    _
  $region3: #{temp_mp_forward.7} parent=0 // loop_header
    %s18 = sphi 0, %s22
    %p19 = scmp.ge.s32.totalorder %s18, 4
    %s25 = sphi 0, %s37
    %s26 = sphi 0, %s33
    %s27 = sphi 0, %s25
    %s28 = sphi 0, %s26
    %s29 = sphi 0, %s27
    %s30 = sphi 0, %s28
    %s40 = sphi 0, %s42
    %s43 = sphi 0, %s40
    %s44 = sphi 0, %s43
    %s60 = sphi 0, %s44
    %s66 = sphi 0, %s68
    %s69 = sphi 0, %s66
    %s70 = sphi 0, %s69
    %s86 = sphi 0, %s70
    %s92 = sphi 0, %s94
    %s95 = sphi 0, %s92
    %s96 = sphi 0, %s95
    %s112 = sphi 0, %s96
    %s120 = sphi 0, %s122
    %s123 = sphi 0, %s120
    %s124 = sphi 0, %s123
    %s140 = sphi 0, %s124
    %s144 = sphi 0, %s144
    %s146 = sphi 0, %s144
    %s147 = sphi 0, %s146
    %s161 = sphi 0, %s147
    %s165 = sphi 0, %s165
    %s167 = sphi 0, %s165
    %s168 = sphi 0, %s167
    %s182 = sphi 0, %s168
    %s186 = sphi 0, %s186
    %s188 = sphi 0, %s186
    %s189 = sphi 0, %s188
    %s203 = sphi 0, %s189
    %s207 = sphi 0, %s207
    %s209 = sphi 0, %s207
    %s210 = sphi 0, %s209
    %s224 = sphi 0, %s210
    %s228 = sphi 0, %s228
    %s230 = sphi 0, %s228
    %s231 = sphi 0, %s230
    %s245 = sphi 0, %s231
    %s249 = sphi 0, %s249
    %s251 = sphi 0, %s249
    %s252 = sphi 0, %s251
    %s266 = sphi 0, %s252
    %s270 = sphi 0, %s270
    %s272 = sphi 0, %s270
    %s273 = sphi 0, %s272
    %s287 = sphi 0, %s273
    %s291 = sphi 0, %s291
    %s293 = sphi 0, %s291
    %s294 = sphi 0, %s293
    %s308 = sphi 0, %s294
    %s316 = sphi 0, %s318
    %s319 = sphi 0, %s316
    %s320 = sphi 0, %s319
    %s336 = sphi 0, %s320
  $region4: #{temp_mp_forward.7} parent=0 // loop_header_branch
    %21 = sbr.rel (%p19) target = $region8
  $region5: #{temp_mp_forward.7} parent=0 // loop_body
    %s23 = ssub.s32 %s18, 1
    %s24 = ssub.s32 %s18, 2
    %s31 = sadd.s32 1, %s26
    %p32 = scmp.ge.s32.totalorder %s31, 1
    %s33 = scalar_select %p32, 0, %s31
    %s34 = sadd.s32 1, %s25
    %s35 = scalar_select %p32, %s34, %s25
    %p36 = scmp.ge.s32.totalorder %s35, 2
    %s37 = scalar_select %p36, 0, %s35
    %s38 = ssub.s32 %s26, %s33
    %p39 = scmp.eq.s32.totalorder %s38, 0
    %s41 = sadd.s32 %s40, 1
    %s42 = scalar_select %p39, %s40, %s41
    %p45 = pneg %p39
    %p46 = scmp.eq.s32.totalorder %s18, 1
    %p47 = por %p45, %p46
    %p48 = scmp.ne.s32.totalorder %s40, %s43
    %p49 = scmp.eq.s32.totalorder %s18, 0
    %p50 = por %p48, %p49
    %p51 = scmp.ne.s32.totalorder %s40, %s43
    %p52 = scmp.eq.s32.totalorder %s23, 1
    %p53 = por %p51, %p52
    %p54 = scmp.ne.s32.totalorder %s43, %s44
    %p55 = scmp.eq.s32.totalorder %s23, 0
    %p56 = por %p54, %p55
    %p57 = scmp.ne.s32.totalorder %s43, %s44
    %p58 = scmp.eq.s32.totalorder %s24, 1
    %p59 = por %p57, %p58
    %p61 = scmp.ne.s32.totalorder %s44, %s60
    %p62 = scmp.eq.s32.totalorder %s24, 0
    %p63 = por %p61, %p62
    %s64 = ssub.s32 %s26, %s33
    %p65 = scmp.eq.s32.totalorder %s64, 0
    %s67 = sadd.s32 %s66, 1
    %s68 = scalar_select %p65, %s66, %s67
    %p71 = pneg %p65
    %p72 = scmp.eq.s32.totalorder %s18, 1
    %p73 = por %p71, %p72
    %p74 = scmp.ne.s32.totalorder %s66, %s69
    %p75 = scmp.eq.s32.totalorder %s18, 0
    %p76 = por %p74, %p75
    %p77 = scmp.ne.s32.totalorder %s66, %s69
    %p78 = scmp.eq.s32.totalorder %s23, 1
    %p79 = por %p77, %p78
    %p80 = scmp.ne.s32.totalorder %s69, %s70
    %p81 = scmp.eq.s32.totalorder %s23, 0
    %p82 = por %p80, %p81
    %p83 = scmp.ne.s32.totalorder %s69, %s70
    %p84 = scmp.eq.s32.totalorder %s24, 1
    %p85 = por %p83, %p84
    %p87 = scmp.ne.s32.totalorder %s70, %s86
    %p88 = scmp.eq.s32.totalorder %s24, 0
    %p89 = por %p87, %p88
    %s90 = ssub.s32 %s25, %s37
    %p91 = scmp.eq.s32.totalorder %s90, 0
    %s93 = sadd.s32 %s92, 1
    %s94 = scalar_select %p91, %s92, %s93
    %p97 = pneg %p91
    %p98 = scmp.eq.s32.totalorder %s18, 1
    %p99 = por %p97, %p98
    %p100 = scmp.ne.s32.totalorder %s92, %s95
    %p101 = scmp.eq.s32.totalorder %s18, 0
    %p102 = por %p100, %p101
    %p103 = scmp.ne.s32.totalorder %s92, %s95
    %p104 = scmp.eq.s32.totalorder %s23, 1
    %p105 = por %p103, %p104
    %p106 = scmp.ne.s32.totalorder %s95, %s96
    %p107 = scmp.eq.s32.totalorder %s23, 0
    %p108 = por %p106, %p107
    %p109 = scmp.ne.s32.totalorder %s95, %s96
    %p110 = scmp.eq.s32.totalorder %s24, 1
    %p111 = por %p109, %p110
    %p113 = scmp.ne.s32.totalorder %s96, %s112
    %p114 = scmp.eq.s32.totalorder %s24, 0
    %p115 = por %p113, %p114
    %s116 = ssub.s32 %s25, %s37
    %s117 = ssub.s32 %s26, %s33
    %s118 = sor.u32 %s116, %s117
    %p119 = scmp.eq.s32.totalorder %s118, 0
    %s121 = sadd.s32 %s120, 1
    %s122 = scalar_select %p119, %s120, %s121
    %p125 = pneg %p119
    %p126 = scmp.eq.s32.totalorder %s18, 1
    %p127 = por %p125, %p126
    %p128 = scmp.ne.s32.totalorder %s120, %s123
    %p129 = scmp.eq.s32.totalorder %s18, 0
    %p130 = por %p128, %p129
    %p131 = scmp.ne.s32.totalorder %s120, %s123
    %p132 = scmp.eq.s32.totalorder %s23, 1
    %p133 = por %p131, %p132
    %p134 = scmp.ne.s32.totalorder %s123, %s124
    %p135 = scmp.eq.s32.totalorder %s23, 0
    %p136 = por %p134, %p135
    %p137 = scmp.ne.s32.totalorder %s123, %s124
    %p138 = scmp.eq.s32.totalorder %s24, 1
    %p139 = por %p137, %p138
    %p141 = scmp.ne.s32.totalorder %s124, %s140
    %p142 = scmp.eq.s32.totalorder %s24, 0
    %p143 = por %p141, %p142
    %s145 = sadd.s32 %s144, 1
    %p148 = scmp.eq.s32.totalorder %s18, 1
    %p149 = scmp.ne.s32.totalorder %s144, %s146
    %p150 = scmp.eq.s32.totalorder %s18, 0
    %p151 = por %p149, %p150
    %p152 = scmp.ne.s32.totalorder %s144, %s146
    %p153 = scmp.eq.s32.totalorder %s23, 1
    %p154 = por %p152, %p153
    %p155 = scmp.ne.s32.totalorder %s146, %s147
    %p156 = scmp.eq.s32.totalorder %s23, 0
    %p157 = por %p155, %p156
    %p158 = scmp.ne.s32.totalorder %s146, %s147
    %p159 = scmp.eq.s32.totalorder %s24, 1
    %p160 = por %p158, %p159
    %p162 = scmp.ne.s32.totalorder %s147, %s161
    %p163 = scmp.eq.s32.totalorder %s24, 0
    %p164 = por %p162, %p163
    %s166 = sadd.s32 %s165, 1
    %p169 = scmp.eq.s32.totalorder %s18, 1
    %p170 = scmp.ne.s32.totalorder %s165, %s167
    %p171 = scmp.eq.s32.totalorder %s18, 0
    %p172 = por %p170, %p171
    %p173 = scmp.ne.s32.totalorder %s165, %s167
    %p174 = scmp.eq.s32.totalorder %s23, 1
    %p175 = por %p173, %p174
    %p176 = scmp.ne.s32.totalorder %s167, %s168
    %p177 = scmp.eq.s32.totalorder %s23, 0
    %p178 = por %p176, %p177
    %p179 = scmp.ne.s32.totalorder %s167, %s168
    %p180 = scmp.eq.s32.totalorder %s24, 1
    %p181 = por %p179, %p180
    %p183 = scmp.ne.s32.totalorder %s168, %s182
    %p184 = scmp.eq.s32.totalorder %s24, 0
    %p185 = por %p183, %p184
    %s187 = sadd.s32 %s186, 1
    %p190 = scmp.eq.s32.totalorder %s18, 1
    %p191 = scmp.ne.s32.totalorder %s186, %s188
    %p192 = scmp.eq.s32.totalorder %s18, 0
    %p193 = por %p191, %p192
    %p194 = scmp.ne.s32.totalorder %s186, %s188
    %p195 = scmp.eq.s32.totalorder %s23, 1
    %p196 = por %p194, %p195
    %p197 = scmp.ne.s32.totalorder %s188, %s189
    %p198 = scmp.eq.s32.totalorder %s23, 0
    %p199 = por %p197, %p198
    %p200 = scmp.ne.s32.totalorder %s188, %s189
    %p201 = scmp.eq.s32.totalorder %s24, 1
    %p202 = por %p200, %p201
    %p204 = scmp.ne.s32.totalorder %s189, %s203
    %p205 = scmp.eq.s32.totalorder %s24, 0
    %p206 = por %p204, %p205
    %s208 = sadd.s32 %s207, 1
    %p211 = scmp.eq.s32.totalorder %s18, 1
    %p212 = scmp.ne.s32.totalorder %s207, %s209
    %p213 = scmp.eq.s32.totalorder %s18, 0
    %p214 = por %p212, %p213
    %p215 = scmp.ne.s32.totalorder %s207, %s209
    %p216 = scmp.eq.s32.totalorder %s23, 1
    %p217 = por %p215, %p216
    %p218 = scmp.ne.s32.totalorder %s209, %s210
    %p219 = scmp.eq.s32.totalorder %s23, 0
    %p220 = por %p218, %p219
    %p221 = scmp.ne.s32.totalorder %s209, %s210
    %p222 = scmp.eq.s32.totalorder %s24, 1
    %p223 = por %p221, %p222
    %p225 = scmp.ne.s32.totalorder %s210, %s224
    %p226 = scmp.eq.s32.totalorder %s24, 0
    %p227 = por %p225, %p226
    %s229 = sadd.s32 %s228, 1
    %p232 = scmp.eq.s32.totalorder %s18, 1
    %p233 = scmp.ne.s32.totalorder %s228, %s230
    %p234 = scmp.eq.s32.totalorder %s18, 0
    %p235 = por %p233, %p234
    %p236 = scmp.ne.s32.totalorder %s228, %s230
    %p237 = scmp.eq.s32.totalorder %s23, 1
    %p238 = por %p236, %p237
    %p239 = scmp.ne.s32.totalorder %s230, %s231
    %p240 = scmp.eq.s32.totalorder %s23, 0
    %p241 = por %p239, %p240
    %p242 = scmp.ne.s32.totalorder %s230, %s231
    %p243 = scmp.eq.s32.totalorder %s24, 1
    %p244 = por %p242, %p243
    %p246 = scmp.ne.s32.totalorder %s231, %s245
    %p247 = scmp.eq.s32.totalorder %s24, 0
    %p248 = por %p246, %p247
    %s250 = sadd.s32 %s249, 1
    %p253 = scmp.eq.s32.totalorder %s18, 1
    %p254 = scmp.ne.s32.totalorder %s249, %s251
    %p255 = scmp.eq.s32.totalorder %s18, 0
    %p256 = por %p254, %p255
    %p257 = scmp.ne.s32.totalorder %s249, %s251
    %p258 = scmp.eq.s32.totalorder %s23, 1
    %p259 = por %p257, %p258
    %p260 = scmp.ne.s32.totalorder %s251, %s252
    %p261 = scmp.eq.s32.totalorder %s23, 0
    %p262 = por %p260, %p261
    %p263 = scmp.ne.s32.totalorder %s251, %s252
    %p264 = scmp.eq.s32.totalorder %s24, 1
    %p265 = por %p263, %p264
    %p267 = scmp.ne.s32.totalorder %s252, %s266
    %p268 = scmp.eq.s32.totalorder %s24, 0
    %p269 = por %p267, %p268
    %s271 = sadd.s32 %s270, 1
    %p274 = scmp.eq.s32.totalorder %s18, 1
    %p275 = scmp.ne.s32.totalorder %s270, %s272
    %p276 = scmp.eq.s32.totalorder %s18, 0
    %p277 = por %p275, %p276
    %p278 = scmp.ne.s32.totalorder %s270, %s272
    %p279 = scmp.eq.s32.totalorder %s23, 1
    %p280 = por %p278, %p279
    %p281 = scmp.ne.s32.totalorder %s272, %s273
    %p282 = scmp.eq.s32.totalorder %s23, 0
    %p283 = por %p281, %p282
    %p284 = scmp.ne.s32.totalorder %s272, %s273
    %p285 = scmp.eq.s32.totalorder %s24, 1
    %p286 = por %p284, %p285
    %p288 = scmp.ne.s32.totalorder %s273, %s287
    %p289 = scmp.eq.s32.totalorder %s24, 0
    %p290 = por %p288, %p289
    %s292 = sadd.s32 %s291, 1
    %p295 = scmp.eq.s32.totalorder %s18, 1
    %p296 = scmp.ne.s32.totalorder %s291, %s293
    %p297 = scmp.eq.s32.totalorder %s18, 0
    %p298 = por %p296, %p297
    %p299 = scmp.ne.s32.totalorder %s291, %s293
    %p300 = scmp.eq.s32.totalorder %s23, 1
    %p301 = por %p299, %p300
    %p302 = scmp.ne.s32.totalorder %s293, %s294
    %p303 = scmp.eq.s32.totalorder %s23, 0
    %p304 = por %p302, %p303
    %p305 = scmp.ne.s32.totalorder %s293, %s294
    %p306 = scmp.eq.s32.totalorder %s24, 1
    %p307 = por %p305, %p306
    %p309 = scmp.ne.s32.totalorder %s294, %s308
    %p310 = scmp.eq.s32.totalorder %s24, 0
    %p311 = por %p309, %p310
    %s312 = ssub.s32 %s25, %s37
    %s313 = ssub.s32 %s26, %s33
    %s314 = sor.u32 %s312, %s313
    %p315 = scmp.eq.s32.totalorder %s314, 0
    %s317 = sadd.s32 %s316, 1
    %s318 = scalar_select %p315, %s316, %s317
    %p321 = pneg %p315
    %p322 = scmp.eq.s32.totalorder %s18, 1
    %p323 = por %p321, %p322
    %p324 = scmp.ne.s32.totalorder %s316, %s319
    %p325 = scmp.eq.s32.totalorder %s18, 0
    %p326 = por %p324, %p325
    %p327 = scmp.ne.s32.totalorder %s316, %s319
    %p328 = scmp.eq.s32.totalorder %s23, 1
    %p329 = por %p327, %p328
    %p330 = scmp.ne.s32.totalorder %s319, %s320
    %p331 = scmp.eq.s32.totalorder %s23, 0
    %p332 = por %p330, %p331
    %p333 = scmp.ne.s32.totalorder %s319, %s320
    %p334 = scmp.eq.s32.totalorder %s24, 1
    %p335 = por %p333, %p334
    %p337 = scmp.ne.s32.totalorder %s320, %s336
    %p338 = scmp.eq.s32.totalorder %s24, 0
    %p339 = por %p337, %p338
    %p340 = scmp.le.s32.totalorder 1, %s18
    %p341 = scmp.lt.s32.totalorder %s18, 3
    %p342 = pnand %p340, %p341
    %p343 = pneg %p342
    // Predicated region
    $region9: #{temp_mp_forward.7} parent=5 // pred_check
      _
    $region10: #{temp_mp_forward.7} parent=5 // pred_check_branch
      %345 = sbr.rel (%p342) target = $region12
    $region11: #{temp_mp_forward.7} parent=5 // pred_region
      %s346 = ssub.s32 %s18, 1
      // Predicated region
      $region13: #{temp_mp_forward.7} parent=11 // pred_check
        %p347 = pneg %p56
      $region14: #{temp_mp_forward.7} parent=11 // pred_check_branch
        %349 = sbr.rel (%p347) target = $region16
      $region15: #{temp_mp_forward.7} parent=11 // pred_region
        %s350 = smul.u32 3, %s28
        %p351 = scmp.lt.s32.totalorder %s350, 2
        %s352 = scalar_select %p351, %s350, 2
        %s353 = smul.addr %s352, 8
        %s354 = scalar_lea.vmem %s0, %s353
        %s355 = smul.u32 3, %s28
      $region16: #{temp_mp_forward.7} parent=11 // pred_fallthru
        _
      // Predicated region
      $region17: #{temp_mp_forward.7} parent=11 // pred_check
        %p356 = pneg %p82
      $region18: #{temp_mp_forward.7} parent=11 // pred_check_branch
        %358 = sbr.rel (%p356) target = $region20
      $region19: #{temp_mp_forward.7} parent=11 // pred_region
        %s359 = smul.u32 3, %s28
        %p360 = scmp.lt.s32.totalorder %s359, 2
        %s361 = scalar_select %p360, %s359, 2
        %s362 = smul.addr %s361, 8
        %s363 = scalar_lea.vmem %s1, %s362
        %s364 = smul.u32 3, %s28
      $region20: #{temp_mp_forward.7} parent=11 // pred_fallthru
        _
      // Predicated region
      $region21: #{temp_mp_forward.7} parent=11 // pred_check
        %p365 = pneg %p157
      $region22: #{temp_mp_forward.7} parent=11 // pred_check_branch
        %367 = sbr.rel (%p365) target = $region24
      $region23: #{temp_mp_forward.7} parent=11 // pred_region
        _
      $region24: #{temp_mp_forward.7} parent=11 // pred_fallthru
        _
      // Predicated region
      $region25: #{temp_mp_forward.7} parent=11 // pred_check
        %p368 = pneg %p178
      $region26: #{temp_mp_forward.7} parent=11 // pred_check_branch
        %370 = sbr.rel (%p368) target = $region28
      $region27: #{temp_mp_forward.7} parent=11 // pred_region
        _
      $region28: #{temp_mp_forward.7} parent=11 // pred_fallthru
        _
      // Predicated region
      $region29: #{temp_mp_forward.7} parent=11 // pred_check
        %p371 = pneg %p199
      $region30: #{temp_mp_forward.7} parent=11 // pred_check_branch
        %373 = sbr.rel (%p371) target = $region32
      $region31: #{temp_mp_forward.7} parent=11 // pred_region
        _
      $region32: #{temp_mp_forward.7} parent=11 // pred_fallthru
        _
      // Predicated region
      $region33: #{temp_mp_forward.7} parent=11 // pred_check
        %p374 = pneg %p220
      $region34: #{temp_mp_forward.7} parent=11 // pred_check_branch
        %376 = sbr.rel (%p374) target = $region36
      $region35: #{temp_mp_forward.7} parent=11 // pred_region
        _
      $region36: #{temp_mp_forward.7} parent=11 // pred_fallthru
        _
      // Predicated region
      $region37: #{temp_mp_forward.7} parent=11 // pred_check
        %p377 = pneg %p241
      $region38: #{temp_mp_forward.7} parent=11 // pred_check_branch
        %379 = sbr.rel (%p377) target = $region40
      $region39: #{temp_mp_forward.7} parent=11 // pred_region
        _
      $region40: #{temp_mp_forward.7} parent=11 // pred_fallthru
        _
      // Predicated region
      $region41: #{temp_mp_forward.7} parent=11 // pred_check
        %p380 = pneg %p262
      $region42: #{temp_mp_forward.7} parent=11 // pred_check_branch
        %382 = sbr.rel (%p380) target = $region44
      $region43: #{temp_mp_forward.7} parent=11 // pred_region
        _
      $region44: #{temp_mp_forward.7} parent=11 // pred_fallthru
        _
      // Predicated region
      $region45: #{temp_mp_forward.7} parent=11 // pred_check
        %p383 = pneg %p283
      $region46: #{temp_mp_forward.7} parent=11 // pred_check_branch
        %385 = sbr.rel (%p383) target = $region48
      $region47: #{temp_mp_forward.7} parent=11 // pred_region
        _
      $region48: #{temp_mp_forward.7} parent=11 // pred_fallthru
        _
      // Predicated region
      $region49: #{temp_mp_forward.7} parent=11 // pred_check
        %p386 = pneg %p304
      $region50: #{temp_mp_forward.7} parent=11 // pred_check_branch
        %388 = sbr.rel (%p386) target = $region52
      $region51: #{temp_mp_forward.7} parent=11 // pred_region
        _
      $region52: #{temp_mp_forward.7} parent=11 // pred_fallthru
        _
    $region12: #{temp_mp_forward.7} parent=5 // pred_fallthru
      _
    %p389 = scmp.lt.s32.totalorder %s18, 2
    // Predicated region
    $region53: #{temp_mp_forward.7} parent=5 // pred_check
      %p390 = pneg %p389
    $region54: #{temp_mp_forward.7} parent=5 // pred_check_branch
      %392 = sbr.rel (%p390) target = $region56
    $region55: #{temp_mp_forward.7} parent=5 // pred_region
      // Predicated region
      $region57: #{temp_mp_forward.7} parent=55 // pred_check
        %p393 = pneg %p102
      $region58: #{temp_mp_forward.7} parent=55 // pred_check_branch
        %395 = sbr.rel (%p393) target = $region60
      $region59: #{temp_mp_forward.7} parent=55 // pred_region
        %p396 = scmp.lt.s32.totalorder %s25, 1
        %s397 = scalar_select %p396, %s25, 1
        %s398 = smul.addr %s397, 8
        %s399 = scalar_lea.vmem %s2, %s398
      $region60: #{temp_mp_forward.7} parent=55 // pred_fallthru
        _
      // Predicated region
      $region61: #{temp_mp_forward.7} parent=55 // pred_check
        %p400 = pneg %p130
      $region62: #{temp_mp_forward.7} parent=55 // pred_check_branch
        %402 = sbr.rel (%p400) target = $region64
      $region63: #{temp_mp_forward.7} parent=55 // pred_region
        %s403 = smul.u32 3, %s26
        %p404 = scmp.lt.s32.totalorder %s25, 1
        %s405 = scalar_select %p404, %s25, 1
        %p406 = scmp.lt.s32.totalorder %s403, 2
        %s407 = scalar_select %p406, %s403, 2
        %s408 = smul.addr %s405, 3
        %s409 = sadd.s32 %s407, %s408
        %s410 = smul.addr %s409, 8
        %s411 = scalar_lea.vmem %s3, %s410
        %s412 = smul.u32 3, %s26
      $region64: #{temp_mp_forward.7} parent=55 // pred_fallthru
        _
    $region56: #{temp_mp_forward.7} parent=5 // pred_fallthru
      _
    %p413 = scmp.le.s32.totalorder 1, %s18
    %p414 = scmp.lt.s32.totalorder %s18, 3
    %p415 = pnand %p413, %p414
    %p416 = pneg %p415
    // Predicated region
    $region65: #{temp_mp_forward.7} parent=5 // pred_check
      _
    $region66: #{temp_mp_forward.7} parent=5 // pred_check_branch
      %418 = sbr.rel (%p415) target = $region68
    $region67: #{temp_mp_forward.7} parent=5 // pred_region
      %s419 = ssub.s32 %s18, 1
      %s420 = smul.u32 3, %s28
      %p421 = scmp.lt.s32.totalorder %s420, 2
      %s422 = scalar_select %p421, %s420, 2
      %s423 = smul.addr %s422, 8
      %s424 = scalar_lea.vmem %s0, %s423
      %p425 = pneg %p56
      %p426 = pneg %p53
      %s427 = smul.u32 3, %s28
      %p428 = scmp.lt.s32.totalorder %s427, 2
      %s429 = scalar_select %p428, %s427, 2
      %s430 = smul.addr %s429, 8
      %s431 = scalar_lea.vmem %s1, %s430
      %p432 = pneg %p82
      %p433 = pneg %p79
      %p434 = scmp.lt.s32.totalorder %s27, 1
      %s435 = scalar_select %p434, %s27, 1
      %s436 = smul.addr %s435, 8
      %s437 = scalar_lea.vmem %s2, %s436
      %p438 = pneg %p108
      %p439 = pneg %p105
      %s440 = smul.u32 3, %s28
      %p441 = scmp.lt.s32.totalorder %s27, 1
      %s442 = scalar_select %p441, %s27, 1
      %p443 = scmp.lt.s32.totalorder %s440, 2
      %s444 = scalar_select %p443, %s440, 2
      %s445 = smul.addr %s442, 3
      %s446 = sadd.s32 %s444, %s445
      %s447 = smul.addr %s446, 8
      %s448 = scalar_lea.vmem %s3, %s447
      %p449 = pneg %p136
      %p450 = pneg %p133
      %p451 = pneg %p157
      %p452 = pneg %p154
      %p453 = pneg %p178
      %p454 = pneg %p175
      %p455 = pneg %p199
      %p456 = pneg %p196
      %p457 = pneg %p220
      %p458 = pneg %p217
      %p459 = pneg %p241
      %p460 = pneg %p238
      %p461 = pneg %p262
      %p462 = pneg %p259
      %p463 = pneg %p283
      %p464 = pneg %p280
      %p465 = pneg %p304
      %p466 = pneg %p301
      %p467 = pneg %p332
      %p468 = pneg %p329
      %s469 = smul.u32 3, %s28
      %p470 = scmp.lt.s32.totalorder %s27, 1
      %s471 = scalar_select %p470, %s27, 1
      %p472 = scmp.lt.s32.totalorder %s469, 2
      %s473 = scalar_select %p472, %s469, 2
      %s474 = smul.addr %s471, 3
      %s475 = sadd.s32 %s473, %s474
      %s476 = smul.addr %s475, 8
      %s477 = scalar_lea.vmem %s12, %s476
      %s478 = smul.u32 3, %s28
      %p479 = scmp.lt.s32.totalorder %s478, 2
      %s480 = scalar_select %p479, %s478, 2
      %s481 = smul.addr %s480, 8
      %s482 = scalar_lea.vmem %s0, %s481
      %s483 = smul.u32 3, %s28
      %s484 = smul.u32 3, %s28
      %p485 = scmp.lt.s32.totalorder %s484, 2
      %s486 = scalar_select %p485, %s484, 2
      %s487 = smul.addr %s486, 8
      %s488 = scalar_lea.vmem %s1, %s487
      %s489 = smul.u32 3, %s28
      %p490 = scmp.lt.s32.totalorder %s27, 1
      %s491 = scalar_select %p490, %s27, 1
      %s492 = smul.addr %s491, 8
      %s493 = scalar_lea.vmem %s2, %s492
      %s494 = smul.u32 3, %s28
      %p495 = scmp.lt.s32.totalorder %s27, 1
      %s496 = scalar_select %p495, %s27, 1
      %p497 = scmp.lt.s32.totalorder %s494, 2
      %s498 = scalar_select %p497, %s494, 2
      %s499 = smul.addr %s496, 3
      %s500 = sadd.s32 %s498, %s499
      %s501 = smul.addr %s500, 8
      %s502 = scalar_lea.vmem %s3, %s501
      %s503 = smul.u32 3, %s28
      %s504 = smul.u32 3, %s28
      %p505 = scmp.lt.s32.totalorder %s27, 1
      %s506 = scalar_select %p505, %s27, 1
      %p507 = scmp.lt.s32.totalorder %s504, 2
      %s508 = scalar_select %p507, %s504, 2
      %s509 = smul.addr %s506, 3
      %s510 = sadd.s32 %s508, %s509
      %s511 = smul.addr %s510, 8
      %s512 = scalar_lea.vmem %s12, %s511
      %s513 = smul.u32 3, %s28
      %v514 = vld [vmem:[%s493] sm:$0x1f]
      %v515 = vld [vmem:[%s482] sm:$0xff]
      %v516 = vld [vmem:[%s482 + $0x8] sm:$0xff]
      %v517 = vld [vmem:[%s482 + $0x10] sm:$0xf]
      %vm518 = vcmask 39936
      %v520 = vsel %vm518, %v515, 0
      %v523 = vsel %vm518, %v516, 0
      %v526 = vsel %vm518, %v517, 0
      %vm528 = vcmask 1044480
      %v530 = vsel %vm528, %v514, 0
      %532 = vmatprep.subr.mxu0 0.0
      %533 = vmatpush1.msra.mxu0 0.0
      %534 = vmatprep.subr.mxu0 0.0
      %535 = vmatpush1.msra.mxu0 0.0
      %536 = vmatprep.subr.mxu0 0.0
      %537 = vmatpush1.msra.mxu0 0.0
      %538 = vmatprep.subr.mxu0 0.0
      %539 = vmatpush1.msra.mxu0 0.0
      %540 = vmatprep.subr.mxu0 0.0
      %541 = vmatpush1.msra.mxu0 0.0
      %542 = vmatprep.subr.mxu0 0.0
      %543 = vmatpush1.msra.mxu0 0.0
      %544 = vmatprep.subr.mxu0 0.0
      %545 = vmatpush1.msra.mxu0 0.0
      %546 = vmatprep.subr.mxu0 0.0
      %547 = vmatpush1.msra.mxu0 0.0
      %548 = vmatprep.subr.mxu0 0.0
      %549 = vmatpush1.msra.mxu0 0.0
      %550 = vmatprep.subr.mxu0 0.0
      %551 = vmatpush1.msra.mxu0 0.0
      %552 = vmatprep.subr.mxu0 0.0
      %553 = vmatpush1.msra.mxu0 0.0
      %554 = vmatprep.subr.mxu0 0.0
      %555 = vmatpush1.msra.mxu0 0.0
      %556 = vmatprep.subr.mxu0 0.0
      %557 = vmatpush1.msra.mxu0 0.0
      %558 = vmatprep.subr.mxu0 0.0
      %559 = vmatpush1.msra.mxu0 0.0
      %560 = vmatprep.subr.mxu0 0.0
      %561 = vmatpush1.msra.mxu0 0.0
      %562 = vmatprep.subr.mxu0 0.0
      %563 = vmatpush1.msra.mxu0 %v530
      %564 = vmatprep.subr.mxu0 0.0
      %565 = vmatpush2.msra.mxu0 0.0
      %566 = vmatprep.subr.mxu0 0.0
      %567 = vmatpush2.msra.mxu0 0.0
      %568 = vmatprep.subr.mxu0 0.0
      %569 = vmatpush2.msra.mxu0 0.0
      %570 = vmatprep.subr.mxu0 0.0
      %571 = vmatpush2.msra.mxu0 0.0
      %572 = vmatprep.subr.mxu0 0.0
      %573 = vmatpush2.msra.mxu0 0.0
      %574 = vmatprep.subr.mxu0 0.0
      %575 = vmatpush2.msra.mxu0 0.0
      %576 = vmatprep.subr.mxu0 0.0
      %577 = vmatpush2.msra.mxu0 0.0
      %578 = vmatprep.subr.mxu0 0.0
      %579 = vmatpush2.msra.mxu0 0.0
      %580 = vmatprep.subr.mxu0 0.0
      %581 = vmatpush2.msra.mxu0 0.0
      %582 = vmatprep.subr.mxu0 0.0
      %583 = vmatpush2.msra.mxu0 0.0
      %584 = vmatprep.subr.mxu0 0.0
      %585 = vmatpush2.msra.mxu0 0.0
      %586 = vmatprep.subr.mxu0 0.0
      %587 = vmatpush2.msra.mxu0 0.0
      %588 = vmatprep.subr.mxu0 0.0
      %589 = vmatpush2.msra.mxu0 0.0
      %590 = vmatprep.subr.mxu0 0.0
      %591 = vmatpush2.msra.mxu0 0.0
      %592 = vmatprep.subr.mxu0 0.0
      %593 = vmatpush2.msra.mxu0 0.0
      %594 = vmatprep.subr.mxu0 0.0
      %595 = vmatpush2.msra.mxu0 0.0
      %596 = vmatprep.mubr.f32.mxu0 0.0
      %597 = vmatmul.mubr.f32.gmra.mxu0 %v520
      %v598 = vpop.f32.mrf.mxu0
      %v599 = vadd.f32 0.0, %v598
      %v600 = vpop.f32.mrf.mxu0
      %601 = vmatprep.mubr.f32.mxu0 0.0
      %602 = vmatmul.mubr.f32.gmra.mxu0 %v523
      %v603 = vpop.f32.mrf.mxu0
      %v604 = vadd.f32 0.0, %v603
      %v605 = vpop.f32.mrf.mxu0
      %606 = vmatprep.mubr.f32.mxu0 0.0
      %607 = vmatmul.mubr.f32.gmra.mxu0 %v526
      %v608 = vpop.f32.mrf.mxu0
      %v609 = vadd.f32 0.0, %v608
      %v610 = vpop.f32.mrf.mxu0
      %611 = vdwg.mxu0
      %v612 = vld [vmem:[%s488] sm:$0xff]
      %v613 = vld [vmem:[%s488 + $0x8] sm:$0xff]
      %v614 = vld [vmem:[%s488 + $0x10] sm:$0xf]
      %v616 = vsel %vm518, %v612, 0
      %v619 = vsel %vm518, %v613, 0
      %v622 = vsel %vm518, %v614, 0
      %624 = vmatprep.subr.mxu0 0.0
      %625 = vmatpush1.msra.mxu0 0.0
      %626 = vmatprep.subr.mxu0 0.0
      %627 = vmatpush1.msra.mxu0 0.0
      %628 = vmatprep.subr.mxu0 0.0
      %629 = vmatpush1.msra.mxu0 0.0
      %630 = vmatprep.subr.mxu0 0.0
      %631 = vmatpush1.msra.mxu0 0.0
      %632 = vmatprep.subr.mxu0 0.0
      %633 = vmatpush1.msra.mxu0 0.0
      %634 = vmatprep.subr.mxu0 0.0
      %635 = vmatpush1.msra.mxu0 0.0
      %636 = vmatprep.subr.mxu0 0.0
      %637 = vmatpush1.msra.mxu0 0.0
      %638 = vmatprep.subr.mxu0 0.0
      %639 = vmatpush1.msra.mxu0 0.0
      %640 = vmatprep.subr.mxu0 0.0
      %641 = vmatpush1.msra.mxu0 0.0
      %642 = vmatprep.subr.mxu0 0.0
      %643 = vmatpush1.msra.mxu0 0.0
      %644 = vmatprep.subr.mxu0 0.0
      %645 = vmatpush1.msra.mxu0 0.0
      %646 = vmatprep.subr.mxu0 0.0
      %647 = vmatpush1.msra.mxu0 0.0
      %648 = vmatprep.subr.mxu0 0.0
      %649 = vmatpush1.msra.mxu0 0.0
      %650 = vmatprep.subr.mxu0 0.0
      %651 = vmatpush1.msra.mxu0 0.0
      %652 = vmatprep.subr.mxu0 0.0
      %653 = vmatpush1.msra.mxu0 0.0
      %654 = vmatprep.subr.mxu0 0.0
      %655 = vmatpush1.msra.mxu0 %v530
      %656 = vmatprep.subr.mxu0 0.0
      %657 = vmatpush2.msra.mxu0 0.0
      %658 = vmatprep.subr.mxu0 0.0
      %659 = vmatpush2.msra.mxu0 0.0
      %660 = vmatprep.subr.mxu0 0.0
      %661 = vmatpush2.msra.mxu0 0.0
      %662 = vmatprep.subr.mxu0 0.0
      %663 = vmatpush2.msra.mxu0 0.0
      %664 = vmatprep.subr.mxu0 0.0
      %665 = vmatpush2.msra.mxu0 0.0
      %666 = vmatprep.subr.mxu0 0.0
      %667 = vmatpush2.msra.mxu0 0.0
      %668 = vmatprep.subr.mxu0 0.0
      %669 = vmatpush2.msra.mxu0 0.0
      %670 = vmatprep.subr.mxu0 0.0
      %671 = vmatpush2.msra.mxu0 0.0
      %672 = vmatprep.subr.mxu0 0.0
      %673 = vmatpush2.msra.mxu0 0.0
      %674 = vmatprep.subr.mxu0 0.0
      %675 = vmatpush2.msra.mxu0 0.0
      %676 = vmatprep.subr.mxu0 0.0
      %677 = vmatpush2.msra.mxu0 0.0
      %678 = vmatprep.subr.mxu0 0.0
      %679 = vmatpush2.msra.mxu0 0.0
      %680 = vmatprep.subr.mxu0 0.0
      %681 = vmatpush2.msra.mxu0 0.0
      %682 = vmatprep.subr.mxu0 0.0
      %683 = vmatpush2.msra.mxu0 0.0
      %684 = vmatprep.subr.mxu0 0.0
      %685 = vmatpush2.msra.mxu0 0.0
      %686 = vmatprep.subr.mxu0 0.0
      %687 = vmatpush2.msra.mxu0 0.0
      %688 = vmatprep.mubr.f32.mxu0 0.0
      %689 = vmatmul.mubr.f32.gmra.mxu0 %v616
      %v690 = vpop.f32.mrf.mxu0
      %v691 = vadd.f32 0.0, %v690
      %v692 = vpop.f32.mrf.mxu0
      %693 = vmatprep.mubr.f32.mxu0 0.0
      %694 = vmatmul.mubr.f32.gmra.mxu0 %v619
      %v695 = vpop.f32.mrf.mxu0
      %v696 = vadd.f32 0.0, %v695
      %v697 = vpop.f32.mrf.mxu0
      %698 = vmatprep.mubr.f32.mxu0 0.0
      %699 = vmatmul.mubr.f32.gmra.mxu0 %v622
      %v700 = vpop.f32.mrf.mxu0
      %v701 = vadd.f32 0.0, %v700
      %v702 = vpop.f32.mrf.mxu0
      %703 = vdwg.mxu0
      %v704 = vld [vmem:[%s4] sm:$0xff]
      %v705 = vld [vmem:[%s4 + $0x8] sm:$0xff]
      %v706 = vld [vmem:[%s4 + $0x10] sm:$0xff]
      %v707 = vld [vmem:[%s4 + $0x18] sm:$0xff]
      %v708 = vld [vmem:[%s5] sm:$0xff]
      %v709 = vld [vmem:[%s5 + $0x8] sm:$0xff]
      %v710 = vld [vmem:[%s5 + $0x10] sm:$0xff]
      %v711 = vld [vmem:[%s5 + $0x18] sm:$0xff]
      %vm712 = vcmask 261120
      %v714 = vsel %vm712, %v691, 0
      %v717 = vsel %vm712, %v696, 0
      %v720 = vsel %vm712, %v701, 0
      %722 = vmatprep.subr.mxu0 0.0
      %723 = vmatpush1.msra.mxu0 0.0
      %724 = vmatprep.subr.mxu0 0.0
      %725 = vmatpush1.msra.mxu0 0.0
      %726 = vmatprep.subr.mxu0 0.0
      %727 = vmatpush1.msra.mxu0 0.0
      %728 = vmatprep.subr.mxu0 0.0
      %729 = vmatpush1.msra.mxu0 0.0
      %730 = vmatprep.subr.mxu0 0.0
      %731 = vmatpush1.msra.mxu0 0.0
      %732 = vmatprep.subr.mxu0 0.0
      %733 = vmatpush1.msra.mxu0 0.0
      %734 = vmatprep.subr.mxu0 0.0
      %735 = vmatpush1.msra.mxu0 0.0
      %736 = vmatprep.subr.mxu0 0.0
      %737 = vmatpush1.msra.mxu0 0.0
      %738 = vmatprep.subr.mxu0 0.0
      %739 = vmatpush1.msra.mxu0 0.0
      %740 = vmatprep.subr.mxu0 0.0
      %741 = vmatpush1.msra.mxu0 0.0
      %742 = vmatprep.subr.mxu0 0.0
      %743 = vmatpush1.msra.mxu0 0.0
      %744 = vmatprep.subr.mxu0 0.0
      %745 = vmatpush1.msra.mxu0 0.0
      %746 = vmatprep.subr.mxu0 0.0
      %747 = vmatpush1.msra.mxu0 %v711
      %748 = vmatprep.subr.mxu0 0.0
      %749 = vmatpush1.msra.mxu0 %v710
      %750 = vmatprep.subr.mxu0 0.0
      %751 = vmatpush1.msra.mxu0 %v709
      %752 = vmatprep.subr.mxu0 0.0
      %753 = vmatpush1.msra.mxu0 %v708
      %754 = vmatprep.subr.mxu0 0.0
      %755 = vmatpush2.msra.mxu0 0.0
      %756 = vmatprep.subr.mxu0 0.0
      %757 = vmatpush2.msra.mxu0 0.0
      %758 = vmatprep.subr.mxu0 0.0
      %759 = vmatpush2.msra.mxu0 0.0
      %760 = vmatprep.subr.mxu0 0.0
      %761 = vmatpush2.msra.mxu0 0.0
      %762 = vmatprep.subr.mxu0 0.0
      %763 = vmatpush2.msra.mxu0 0.0
      %764 = vmatprep.subr.mxu0 0.0
      %765 = vmatpush2.msra.mxu0 0.0
      %766 = vmatprep.subr.mxu0 0.0
      %767 = vmatpush2.msra.mxu0 0.0
      %768 = vmatprep.subr.mxu0 0.0
      %769 = vmatpush2.msra.mxu0 0.0
      %770 = vmatprep.subr.mxu0 0.0
      %771 = vmatpush2.msra.mxu0 0.0
      %772 = vmatprep.subr.mxu0 0.0
      %773 = vmatpush2.msra.mxu0 0.0
      %774 = vmatprep.subr.mxu0 0.0
      %775 = vmatpush2.msra.mxu0 0.0
      %776 = vmatprep.subr.mxu0 0.0
      %777 = vmatpush2.msra.mxu0 0.0
      %778 = vmatprep.subr.mxu0 0.0
      %779 = vmatpush2.msra.mxu0 0.0
      %780 = vmatprep.subr.mxu0 0.0
      %781 = vmatpush2.msra.mxu0 0.0
      %782 = vmatprep.subr.mxu0 0.0
      %783 = vmatpush2.msra.mxu0 0.0
      %784 = vmatprep.subr.mxu0 0.0
      %785 = vmatpush2.msra.mxu0 0.0
      %786 = vmatprep.mubr.f32.mxu0 0.0
      %787 = vmatmul.mubr.f32.gmra.mxu0 %v714
      %v788 = vpop.f32.mrf.mxu0
      %v789 = vadd.f32 0.0, %v788
      %v790 = vpop.f32.mrf.mxu0
      %791 = vmatprep.mubr.f32.mxu0 0.0
      %792 = vmatmul.mubr.f32.gmra.mxu0 %v717
      %v793 = vpop.f32.mrf.mxu0
      %v794 = vadd.f32 0.0, %v793
      %v795 = vpop.f32.mrf.mxu0
      %796 = vmatprep.mubr.f32.mxu0 0.0
      %797 = vmatmul.mubr.f32.gmra.mxu0 %v720
      %v798 = vpop.f32.mrf.mxu0
      %v799 = vadd.f32 0.0, %v798
      %v800 = vpop.f32.mrf.mxu0
      %801 = vdwg.mxu0
      %v803 = vsel %vm712, %v599, 0
      %v806 = vsel %vm712, %v604, 0
      %v809 = vsel %vm712, %v609, 0
      %811 = vmatprep.subr.mxu0 0.0
      %812 = vmatpush1.msra.mxu0 0.0
      %813 = vmatprep.subr.mxu0 0.0
      %814 = vmatpush1.msra.mxu0 0.0
      %815 = vmatprep.subr.mxu0 0.0
      %816 = vmatpush1.msra.mxu0 0.0
      %817 = vmatprep.subr.mxu0 0.0
      %818 = vmatpush1.msra.mxu0 0.0
      %819 = vmatprep.subr.mxu0 0.0
      %820 = vmatpush1.msra.mxu0 0.0
      %821 = vmatprep.subr.mxu0 0.0
      %822 = vmatpush1.msra.mxu0 0.0
      %823 = vmatprep.subr.mxu0 0.0
      %824 = vmatpush1.msra.mxu0 0.0
      %825 = vmatprep.subr.mxu0 0.0
      %826 = vmatpush1.msra.mxu0 0.0
      %827 = vmatprep.subr.mxu0 0.0
      %828 = vmatpush1.msra.mxu0 0.0
      %829 = vmatprep.subr.mxu0 0.0
      %830 = vmatpush1.msra.mxu0 0.0
      %831 = vmatprep.subr.mxu0 0.0
      %832 = vmatpush1.msra.mxu0 0.0
      %833 = vmatprep.subr.mxu0 0.0
      %834 = vmatpush1.msra.mxu0 0.0
      %835 = vmatprep.subr.mxu0 0.0
      %836 = vmatpush1.msra.mxu0 %v707
      %837 = vmatprep.subr.mxu0 0.0
      %838 = vmatpush1.msra.mxu0 %v706
      %839 = vmatprep.subr.mxu0 0.0
      %840 = vmatpush1.msra.mxu0 %v705
      %841 = vmatprep.subr.mxu0 0.0
      %842 = vmatpush1.msra.mxu0 %v704
      %843 = vmatprep.subr.mxu0 0.0
      %844 = vmatpush2.msra.mxu0 0.0
      %845 = vmatprep.subr.mxu0 0.0
      %846 = vmatpush2.msra.mxu0 0.0
      %847 = vmatprep.subr.mxu0 0.0
      %848 = vmatpush2.msra.mxu0 0.0
      %849 = vmatprep.subr.mxu0 0.0
      %850 = vmatpush2.msra.mxu0 0.0
      %851 = vmatprep.subr.mxu0 0.0
      %852 = vmatpush2.msra.mxu0 0.0
      %853 = vmatprep.subr.mxu0 0.0
      %854 = vmatpush2.msra.mxu0 0.0
      %855 = vmatprep.subr.mxu0 0.0
      %856 = vmatpush2.msra.mxu0 0.0
      %857 = vmatprep.subr.mxu0 0.0
      %858 = vmatpush2.msra.mxu0 0.0
      %859 = vmatprep.subr.mxu0 0.0
      %860 = vmatpush2.msra.mxu0 0.0
      %861 = vmatprep.subr.mxu0 0.0
      %862 = vmatpush2.msra.mxu0 0.0
      %863 = vmatprep.subr.mxu0 0.0
      %864 = vmatpush2.msra.mxu0 0.0
      %865 = vmatprep.subr.mxu0 0.0
      %866 = vmatpush2.msra.mxu0 0.0
      %867 = vmatprep.subr.mxu0 0.0
      %868 = vmatpush2.msra.mxu0 0.0
      %869 = vmatprep.subr.mxu0 0.0
      %870 = vmatpush2.msra.mxu0 0.0
      %871 = vmatprep.subr.mxu0 0.0
      %872 = vmatpush2.msra.mxu0 0.0
      %873 = vmatprep.subr.mxu0 0.0
      %874 = vmatpush2.msra.mxu0 0.0
      %875 = vmatprep.mubr.f32.mxu0 0.0
      %876 = vmatmul.mubr.f32.gmra.mxu0 %v803
      %v877 = vpop.f32.mrf.mxu0
      %v878 = vadd.f32 %v789, %v877
      %v879 = vpop.f32.mrf.mxu0
      %880 = vmatprep.mubr.f32.mxu0 0.0
      %881 = vmatmul.mubr.f32.gmra.mxu0 %v806
      %v882 = vpop.f32.mrf.mxu0
      %v883 = vadd.f32 %v794, %v882
      %v884 = vpop.f32.mrf.mxu0
      %885 = vmatprep.mubr.f32.mxu0 0.0
      %886 = vmatmul.mubr.f32.gmra.mxu0 %v809
      %v887 = vpop.f32.mrf.mxu0
      %v888 = vadd.f32 %v799, %v887
      %v889 = vpop.f32.mrf.mxu0
      %890 = vdwg.mxu0
      %v891 = vld [vmem:[%s502] sm:$0xff]
      %v892 = vld [vmem:[%s502 + $0x8] sm:$0xff]
      %v893 = vld [vmem:[%s502 + $0x10] sm:$0xf]
      %v894 = vld [vmem:[%s6] sm:$0xff]
      %v895 = vld [vmem:[%s6 + $0x8] sm:$0xff]
      %v896 = vld [vmem:[%s6 + $0x10] sm:$0xff]
      %v897 = vld [vmem:[%s6 + $0x18] sm:$0xff]
      %v899 = vsel %vm712, %v891, 0
      %v902 = vsel %vm712, %v892, 0
      %v905 = vsel %vm712, %v893, 0
      %907 = vmatprep.subr.mxu0 0.0
      %908 = vmatpush1.msra.mxu0 0.0
      %909 = vmatprep.subr.mxu0 0.0
      %910 = vmatpush1.msra.mxu0 0.0
      %911 = vmatprep.subr.mxu0 0.0
      %912 = vmatpush1.msra.mxu0 0.0
      %913 = vmatprep.subr.mxu0 0.0
      %914 = vmatpush1.msra.mxu0 0.0
      %915 = vmatprep.subr.mxu0 0.0
      %916 = vmatpush1.msra.mxu0 0.0
      %917 = vmatprep.subr.mxu0 0.0
      %918 = vmatpush1.msra.mxu0 0.0
      %919 = vmatprep.subr.mxu0 0.0
      %920 = vmatpush1.msra.mxu0 0.0
      %921 = vmatprep.subr.mxu0 0.0
      %922 = vmatpush1.msra.mxu0 0.0
      %923 = vmatprep.subr.mxu0 0.0
      %924 = vmatpush1.msra.mxu0 0.0
      %925 = vmatprep.subr.mxu0 0.0
      %926 = vmatpush1.msra.mxu0 0.0
      %927 = vmatprep.subr.mxu0 0.0
      %928 = vmatpush1.msra.mxu0 0.0
      %929 = vmatprep.subr.mxu0 0.0
      %930 = vmatpush1.msra.mxu0 0.0
      %931 = vmatprep.subr.mxu0 0.0
      %932 = vmatpush1.msra.mxu0 %v897
      %933 = vmatprep.subr.mxu0 0.0
      %934 = vmatpush1.msra.mxu0 %v896
      %935 = vmatprep.subr.mxu0 0.0
      %936 = vmatpush1.msra.mxu0 %v895
      %937 = vmatprep.subr.mxu0 0.0
      %938 = vmatpush1.msra.mxu0 %v894
      %939 = vmatprep.subr.mxu0 0.0
      %940 = vmatpush2.msra.mxu0 0.0
      %941 = vmatprep.subr.mxu0 0.0
      %942 = vmatpush2.msra.mxu0 0.0
      %943 = vmatprep.subr.mxu0 0.0
      %944 = vmatpush2.msra.mxu0 0.0
      %945 = vmatprep.subr.mxu0 0.0
      %946 = vmatpush2.msra.mxu0 0.0
      %947 = vmatprep.subr.mxu0 0.0
      %948 = vmatpush2.msra.mxu0 0.0
      %949 = vmatprep.subr.mxu0 0.0
      %950 = vmatpush2.msra.mxu0 0.0
      %951 = vmatprep.subr.mxu0 0.0
      %952 = vmatpush2.msra.mxu0 0.0
      %953 = vmatprep.subr.mxu0 0.0
      %954 = vmatpush2.msra.mxu0 0.0
      %955 = vmatprep.subr.mxu0 0.0
      %956 = vmatpush2.msra.mxu0 0.0
      %957 = vmatprep.subr.mxu0 0.0
      %958 = vmatpush2.msra.mxu0 0.0
      %959 = vmatprep.subr.mxu0 0.0
      %960 = vmatpush2.msra.mxu0 0.0
      %961 = vmatprep.subr.mxu0 0.0
      %962 = vmatpush2.msra.mxu0 0.0
      %963 = vmatprep.subr.mxu0 0.0
      %964 = vmatpush2.msra.mxu0 0.0
      %965 = vmatprep.subr.mxu0 0.0
      %966 = vmatpush2.msra.mxu0 0.0
      %967 = vmatprep.subr.mxu0 0.0
      %968 = vmatpush2.msra.mxu0 0.0
      %969 = vmatprep.subr.mxu0 0.0
      %970 = vmatpush2.msra.mxu0 0.0
      %971 = vmatprep.mubr.f32.mxu0 0.0
      %972 = vmatmul.mubr.f32.gmra.mxu0 %v899
      %v973 = vpop.f32.mrf.mxu0
      %v974 = vadd.f32 0.0, %v973
      %v975 = vpop.f32.mrf.mxu0
      %976 = vmatprep.mubr.f32.mxu0 0.0
      %977 = vmatmul.mubr.f32.gmra.mxu0 %v902
      %v978 = vpop.f32.mrf.mxu0
      %v979 = vadd.f32 0.0, %v978
      %v980 = vpop.f32.mrf.mxu0
      %981 = vmatprep.mubr.f32.mxu0 0.0
      %982 = vmatmul.mubr.f32.gmra.mxu0 %v905
      %v983 = vpop.f32.mrf.mxu0
      %v984 = vadd.f32 0.0, %v983
      %v985 = vpop.f32.mrf.mxu0
      %986 = vdwg.mxu0
      %v987 = vadd.f32 %v878, %v974
      %v988 = vadd.f32 %v883, %v979
      %v989 = vadd.f32 %v888, %v984
      %v990 = vld [vmem:[%s7] sm:$0x1]
      %v992 = vlaneseq
      %v993 = vshrl.u32 %v992, 7
      %v994 = vsub.s32 0, %v993
      %v995 = vrot.slane %v990, %v994
      %v997 = vadd.f32 %v987, %v995
      %v998 = vadd.f32 %v988, %v995
      %v999 = vadd.f32 %v989, %v995
      %vm1000 = vcmp.gt.f32.partialorder %v997, 0.0
      %vm1001 = vcmp.gt.f32.partialorder %v998, 0.0
      %vm1002 = vcmp.gt.f32.partialorder %v999, 0.0
      %v1003 = vmin.f32 %v997, 0.0
      %v1004 = vmin.f32 %v998, 0.0
      %v1005 = vmin.f32 %v999, 0.0
      %v1006 = vmul.f32 %v1003, 1.442695
      %v1007 = vpow.pop %v1006
      %v1008 = vmul.f32 %v1004, 1.442695
      %v1009 = vpow.pop %v1008
      %v1010 = vmul.f32 %v1005, 1.442695
      %v1011 = vpow.pop %v1010
      %v1012 = vsub.f32 %v1007, 1.0
      %v1013 = vsub.f32 %v1009, 1.0
      %v1014 = vsub.f32 %v1011, 1.0
      %v1015 = vsel %vm1000, %v997, %v1012
      %v1016 = vsel %vm1001, %v998, %v1013
      %v1017 = vsel %vm1002, %v999, %v1014
      %v1018 = vld [vmem:[%s8] sm:$0xff]
      %v1019 = vld [vmem:[%s8 + $0x8] sm:$0xff]
      %v1020 = vld [vmem:[%s8 + $0x10] sm:$0xff]
      %v1021 = vld [vmem:[%s8 + $0x18] sm:$0xff]
      %v1022 = vld [vmem:[%s9] sm:$0x1]
      %v1024 = vlaneseq
      %v1025 = vshrl.u32 %v1024, 7
      %v1026 = vsub.s32 0, %v1025
      %v1027 = vrot.slane %v1022, %v1026
      %v1030 = vsel %vm712, %v1015, 0
      %v1033 = vsel %vm712, %v1016, 0
      %v1036 = vsel %vm712, %v1017, 0
      %1038 = vmatprep.subr.mxu0 0.0
      %1039 = vmatpush1.msra.mxu0 0.0
      %1040 = vmatprep.subr.mxu0 0.0
      %1041 = vmatpush1.msra.mxu0 0.0
      %1042 = vmatprep.subr.mxu0 0.0
      %1043 = vmatpush1.msra.mxu0 0.0
      %1044 = vmatprep.subr.mxu0 0.0
      %1045 = vmatpush1.msra.mxu0 0.0
      %1046 = vmatprep.subr.mxu0 0.0
      %1047 = vmatpush1.msra.mxu0 0.0
      %1048 = vmatprep.subr.mxu0 0.0
      %1049 = vmatpush1.msra.mxu0 0.0
      %1050 = vmatprep.subr.mxu0 0.0
      %1051 = vmatpush1.msra.mxu0 0.0
      %1052 = vmatprep.subr.mxu0 0.0
      %1053 = vmatpush1.msra.mxu0 0.0
      %1054 = vmatprep.subr.mxu0 0.0
      %1055 = vmatpush1.msra.mxu0 0.0
      %1056 = vmatprep.subr.mxu0 0.0
      %1057 = vmatpush1.msra.mxu0 0.0
      %1058 = vmatprep.subr.mxu0 0.0
      %1059 = vmatpush1.msra.mxu0 0.0
      %1060 = vmatprep.subr.mxu0 0.0
      %1061 = vmatpush1.msra.mxu0 0.0
      %1062 = vmatprep.subr.mxu0 0.0
      %1063 = vmatpush1.msra.mxu0 %v1021
      %1064 = vmatprep.subr.mxu0 0.0
      %1065 = vmatpush1.msra.mxu0 %v1020
      %1066 = vmatprep.subr.mxu0 0.0
      %1067 = vmatpush1.msra.mxu0 %v1019
      %1068 = vmatprep.subr.mxu0 0.0
      %1069 = vmatpush1.msra.mxu0 %v1018
      %1070 = vmatprep.subr.mxu0 0.0
      %1071 = vmatpush2.msra.mxu0 0.0
      %1072 = vmatprep.subr.mxu0 0.0
      %1073 = vmatpush2.msra.mxu0 0.0
      %1074 = vmatprep.subr.mxu0 0.0
      %1075 = vmatpush2.msra.mxu0 0.0
      %1076 = vmatprep.subr.mxu0 0.0
      %1077 = vmatpush2.msra.mxu0 0.0
      %1078 = vmatprep.subr.mxu0 0.0
      %1079 = vmatpush2.msra.mxu0 0.0
      %1080 = vmatprep.subr.mxu0 0.0
      %1081 = vmatpush2.msra.mxu0 0.0
      %1082 = vmatprep.subr.mxu0 0.0
      %1083 = vmatpush2.msra.mxu0 0.0
      %1084 = vmatprep.subr.mxu0 0.0
      %1085 = vmatpush2.msra.mxu0 0.0
      %1086 = vmatprep.subr.mxu0 0.0
      %1087 = vmatpush2.msra.mxu0 0.0
      %1088 = vmatprep.subr.mxu0 0.0
      %1089 = vmatpush2.msra.mxu0 0.0
      %1090 = vmatprep.subr.mxu0 0.0
      %1091 = vmatpush2.msra.mxu0 0.0
      %1092 = vmatprep.subr.mxu0 0.0
      %1093 = vmatpush2.msra.mxu0 0.0
      %1094 = vmatprep.subr.mxu0 0.0
      %1095 = vmatpush2.msra.mxu0 0.0
      %1096 = vmatprep.subr.mxu0 0.0
      %1097 = vmatpush2.msra.mxu0 0.0
      %1098 = vmatprep.subr.mxu0 0.0
      %1099 = vmatpush2.msra.mxu0 0.0
      %1100 = vmatprep.subr.mxu0 0.0
      %1101 = vmatpush2.msra.mxu0 0.0
      %1102 = vmatprep.mubr.f32.mxu0 0.0
      %1103 = vmatmul.mubr.f32.gmra.mxu0 %v1030
      %v1104 = vpop.f32.mrf.mxu0
      %v1105 = vadd.f32 %v1027, %v1104
      %v1106 = vpop.f32.mrf.mxu0
      %1107 = vmatprep.mubr.f32.mxu0 0.0
      %1108 = vmatmul.mubr.f32.gmra.mxu0 %v1033
      %v1109 = vpop.f32.mrf.mxu0
      %v1110 = vadd.f32 %v1027, %v1109
      %v1111 = vpop.f32.mrf.mxu0
      %1112 = vmatprep.mubr.f32.mxu0 0.0
      %1113 = vmatmul.mubr.f32.gmra.mxu0 %v1036
      %v1114 = vpop.f32.mrf.mxu0
      %v1115 = vadd.f32 %v1027, %v1114
      %v1116 = vpop.f32.mrf.mxu0
      %1117 = vdwg.mxu0
      %vm1118 = vcmp.gt.f32.partialorder %v1105, 0.0
      %vm1119 = vcmp.gt.f32.partialorder %v1110, 0.0
      %vm1120 = vcmp.gt.f32.partialorder %v1115, 0.0
      %v1121 = vmin.f32 %v1105, 0.0
      %v1122 = vmin.f32 %v1110, 0.0
      %v1123 = vmin.f32 %v1115, 0.0
      %v1124 = vmul.f32 %v1121, 1.442695
      %v1125 = vpow.pop %v1124
      %v1126 = vmul.f32 %v1122, 1.442695
      %v1127 = vpow.pop %v1126
      %v1128 = vmul.f32 %v1123, 1.442695
      %v1129 = vpow.pop %v1128
      %v1130 = vsub.f32 %v1125, 1.0
      %v1131 = vsub.f32 %v1127, 1.0
      %v1132 = vsub.f32 %v1129, 1.0
      %v1133 = vsel %vm1118, %v1105, %v1130
      %v1134 = vsel %vm1119, %v1110, %v1131
      %v1135 = vsel %vm1120, %v1115, %v1132
      %v1136 = vld [vmem:[%s10] sm:$0x1]
      %v1138 = vlaneseq
      %v1139 = vshrl.u32 %v1138, 7
      %v1140 = vsub.s32 0, %v1139
      %v1141 = vrot.slane %v1136, %v1140
      %v1143 = vmul.f32 %v1133, %v1141
      %v1144 = vmul.f32 %v1134, %v1141
      %v1145 = vmul.f32 %v1135, %v1141
      %v1146 = vld [vmem:[%s11] sm:$0x1]
      %v1148 = vlaneseq
      %v1149 = vshrl.u32 %v1148, 7
      %v1150 = vsub.s32 0, %v1149
      %v1151 = vrot.slane %v1146, %v1150
      %v1153 = vadd.f32 %v1143, %v1151
      %v1154 = vadd.f32 %v1144, %v1151
      %v1155 = vadd.f32 %v1145, %v1151
      %1156 = vst.msk [vmem:[%s512] sm:$0xff] %vm712, %v1153
      %1157 = vst.msk [vmem:[%s512 + $0x8] sm:$0xff] %vm712, %v1154
      %vm1158 = vcmask 257024
      %1159 = vst.msk [vmem:[%s512 + $0x10] sm:$0xf] %vm1158, %v1155
      %s1160 = smul.u32 3, %s28
      %p1161 = scmp.lt.s32.totalorder %s27, 1
      %s1162 = scalar_select %p1161, %s27, 1
      %p1163 = scmp.lt.s32.totalorder %s1160, 2
      %s1164 = scalar_select %p1163, %s1160, 2
      %s1165 = smul.addr %s1162, 3
      %s1166 = sadd.s32 %s1164, %s1165
      %s1167 = smul.addr %s1166, 8
      %s1168 = scalar_lea.vmem %s12, %s1167
      // Predicated region
      $region69: #{temp_mp_forward.7} parent=67 // pred_check
        %p1169 = pneg %p329
      $region70: #{temp_mp_forward.7} parent=67 // pred_check_branch
        %1171 = sbr.rel (%p1169) target = $region72
      $region71: #{temp_mp_forward.7} parent=67 // pred_region
        %s1172 = smul.u32 3, %s28
      $region72: #{temp_mp_forward.7} parent=67 // pred_fallthru
        _
    $region68: #{temp_mp_forward.7} parent=5 // pred_fallthru
      _
    %p1173 = scmp.le.s32.totalorder 2, %s18
    // Predicated region
    $region73: #{temp_mp_forward.7} parent=5 // pred_check
      %p1174 = pneg %p1173
    $region74: #{temp_mp_forward.7} parent=5 // pred_check_branch
      %1176 = sbr.rel (%p1174) target = $region76
    $region75: #{temp_mp_forward.7} parent=5 // pred_region
      %s1177 = ssub.s32 %s18, 2
      // Predicated region
      $region77: #{temp_mp_forward.7} parent=75 // pred_check
        %p1178 = pneg %p335
      $region78: #{temp_mp_forward.7} parent=75 // pred_check_branch
        %1180 = sbr.rel (%p1178) target = $region80
      $region79: #{temp_mp_forward.7} parent=75 // pred_region
        %s1181 = smul.u32 3, %s30
        %p1182 = scmp.lt.s32.totalorder %s29, 1
        %s1183 = scalar_select %p1182, %s29, 1
        %p1184 = scmp.lt.s32.totalorder %s1181, 2
        %s1185 = scalar_select %p1184, %s1181, 2
        %s1186 = smul.addr %s1183, 3
        %s1187 = sadd.s32 %s1185, %s1186
        %s1188 = smul.addr %s1187, 8
        %s1189 = scalar_lea.vmem %s12, %s1188
      $region80: #{temp_mp_forward.7} parent=75 // pred_fallthru
        _
    $region76: #{temp_mp_forward.7} parent=5 // pred_fallthru
      _
  $region6: #{temp_mp_forward.7} parent=0 // loop_footer
    %s22 = sadd.s32 1, %s18
  $region7: #{temp_mp_forward.7} parent=0 // loop_footer_branch
    %17 = sbr.rel target = $region3
  $region8: #{temp_mp_forward.7} parent=0 // loop_exit
    _

</llo_original>
